<compile_context>
chip_gen: v6e
topology: v6e:2x2x1
jax: 0.10.0
libtpu: 0.0.40
codegen_flags: <defaults>
</compile_context>

<pallas_src>
import functools

import numpy as np
import jax
import jax.numpy as jnp
from jax.experimental import pallas as pl
from jax.experimental.pallas import tpu as pltpu

_LANE = 128


def _round_up(v, m):
    return (v + m - 1) // m * m


# ---------------------------------------------------------------------------
# Host-side helpers: tiny pooling / interpolation matrices.
# ---------------------------------------------------------------------------
def _avgpool_matrix(in_size: int, k: int, s: int) -> np.ndarray:
    """1-D averaging matrix for AvgPool2d(k, s) (no padding)."""
    out_size = (in_size - k) // s + 1
    m = np.zeros((out_size, in_size), dtype=np.float32)
    for p in range(out_size):
        m[p, p * s:p * s + k] = 1.0 / k
    return m


def _bilinear_matrix(out_size: int, in_size: int) -> np.ndarray:
    """1-D bilinear interpolation matrix, align_corners=True semantics."""
    m = np.zeros((out_size, in_size), dtype=np.float32)
    if in_size == 1:
        m[:, 0] = 1.0
        return m
    if out_size == 1:
        m[0, 0] = 1.0
        return m
    for i in range(out_size):
        c = i * (in_size - 1) / (out_size - 1)
        i0 = min(int(np.floor(c)), in_size - 2)
        w1 = c - i0
        m[i, i0] += 1.0 - w1
        m[i, i0 + 1] += w1
    return m


# ---------------------------------------------------------------------------
# Pallas kernel: grid = (batch "parallel", Cin-chunk "arbitrary").
# ---------------------------------------------------------------------------
def spp_block1_kernel(x_ref, w_ref, b_ref, ph_ref, pw_ref, uh_ref, uw_ref,
                      o_ref, acc_ref, *, k, s, fast_pool):
    c = pl.program_id(1)

    x = x_ref[...]                                   # (H, W, TC) f32, lanes = C
    h, w, tc = x.shape
    hp = (h - k) // s + 1

    # ---- AvgPool2d(k, s) on this Cin chunk ---------------------------------
    if fast_pool:
        # k == s and H % k == 0: pool H with a leading-dim reshape + mean
        # (pure VPU adds, no MXU / XLU work).
        th = x.reshape(hp, k, w, tc).mean(axis=1)                 # (Hp, W, TC)
    else:
        # General / overlapping pooling via the 1-D averaging matrix.
        th = jnp.einsum('ph,hwc->pwc', ph_ref[...], x,
                        preferred_element_type=jnp.float32)       # (Hp, W, TC)
    # W sits on the sublane axis -> pool it with one lane-dense contraction;
    # result kept in (Wp, Hp, C) "natural" order (no output transpose).
    pooled = jnp.einsum('qw,pwc->qpc', pw_ref[...], th,
                        preferred_element_type=jnp.float32)       # (Wp, Hp, TC)
    wp = pooled.shape[0]
    pooled2 = pooled.reshape(wp * hp, tc)                         # rows = (q, p)

    # ---- conv1x1 (BN scale folded into w), accumulated over Cin chunks -----
    @pl.when(c == 0)
    def _init():
        acc_ref[...] = jnp.zeros_like(acc_ref)

    acc_ref[...] += jnp.dot(pooled2, w_ref[...],
                            preferred_element_type=jnp.float32)   # (Wp*Hp, Cp)

    # ---- last Cin chunk: bias (BN shift) + ReLU + bilinear upsample --------
    @pl.when(c == pl.num_programs(1) - 1)
    def _finalize():
        y = jnp.maximum(acc_ref[...] + b_ref[...], 0.0)           # (Wp*Hp, Cp)
        y3 = y.reshape(wp, hp, y.shape[-1])                       # (Wp, Hp, Cp)
        t = jnp.einsum('hp,qpc->hqc', uh_ref[...], y3,
                       preferred_element_type=jnp.float32)        # (H, Wp, Cp)
        out = jnp.einsum('wq,hqc->whc', uw_ref[...], t,
                         preferred_element_type=jnp.float32)      # (W, H, Cp)
        o_ref[...] = out.astype(o_ref.dtype)


def spp_block1(x, conv_w, bn_scale, bn_shift, *, k, s):
    """x: (B, Cin, H, W) f32; conv_w: (Cout, Cin); bn_scale/shift: (Cout,)."""
    B, Cin, H, W = x.shape
    Cout = conv_w.shape[0]
    Hp = (H - k) // s + 1
    Wp = (W - k) // s + 1
    Cin_p = _round_up(Cin, _LANE)
    Cout_p = _round_up(Cout, _LANE)
    f32 = jnp.float32

    # Fold eval-mode BN into the conv: w <- scale * w, bias <- shift.
    w_folded = (conv_w.astype(f32) * bn_scale.astype(f32)[:, None]).T  # (Cin, Cout)
    w_p = jnp.zeros((Cin_p, Cout_p), f32).at[:Cin, :Cout].set(w_folded)
    b_p = jnp.zeros((1, Cout_p), f32).at[0, :Cout].set(bn_shift.astype(f32))

    # NCHW -> NHWC (channels on the 128-lane axis), zero-pad channels.
    x_nhwc = jnp.transpose(x.astype(f32), (0, 2, 3, 1))
    x_p = jnp.pad(x_nhwc, ((0, 0), (0, 0), (0, 0), (0, Cin_p - Cin)))

    ph = jnp.asarray(_avgpool_matrix(H, k, s))        # (Hp, H)
    pw = jnp.asarray(_avgpool_matrix(W, k, s))        # (Wp, W)
    uh = jnp.asarray(_bilinear_matrix(H, Hp))         # (H, Hp)
    uw = jnp.asarray(_bilinear_matrix(W, Wp))         # (W, Wp)

    # Cin chunking (reduction grid axis) so blocks stay inside v7x's 64 MiB
    # VMEM at real PSPNet sizes; a single chunk for the small demo.
    m = Cin_p // _LANE
    d = max(dd for dd in (4, 3, 2, 1) if m % dd == 0)
    tc = _LANE * d
    nc = Cin_p // tc

    fast_pool = (k == s) and (H % k == 0)
    kern = functools.partial(spp_block1_kernel, k=k, s=s, fast_pool=fast_pool)

    grid_spec = pltpu.PrefetchScalarGridSpec(
        num_scalar_prefetch=0,
        grid=(B, nc),
        in_specs=[
            pl.BlockSpec((None, H, W, tc), lambda b, c: (b, 0, 0, c)),   # x (NHWC)
            pl.BlockSpec((tc, Cout_p), lambda b, c: (c, 0)),             # folded conv w
            pl.BlockSpec((1, Cout_p), lambda b, c: (0, 0)),              # BN shift (bias)
            pl.BlockSpec((Hp, H), lambda b, c: (0, 0)),                  # avgpool H
            pl.BlockSpec((Wp, W), lambda b, c: (0, 0)),                  # avgpool W
            pl.BlockSpec((H, Hp), lambda b, c: (0, 0)),                  # bilinear H
            pl.BlockSpec((W, Wp), lambda b, c: (0, 0)),                  # bilinear W
        ],
        out_specs=pl.BlockSpec((None, W, H, Cout_p), lambda b, c: (b, 0, 0, 0)),
        scratch_shapes=[pltpu.VMEM((Wp * Hp, Cout_p), f32)],
    )

    out_p = pl.pallas_call(
        kern,
        out_shape=jax.ShapeDtypeStruct((B, W, H, Cout_p), f32),
        grid_spec=grid_spec,
        compiler_params=pltpu.CompilerParams(
            dimension_semantics=("parallel", "arbitrary"),
            # Default scoped limit is 32 MiB; 64 MiB is safe on all gens
            # (raise toward ~100 MiB on v6e for larger Cin chunks).
            vmem_limit_bytes=64 * 1024 * 1024),
    )(x_p, w_p, b_p, ph, pw, uh, uw)

    # (B, W, H, Cout_p) -> (B, Cout, H, W); drop channel padding (layout only).
    return jnp.transpose(out_p[..., :Cout], (0, 3, 2, 1))


# ---------------------------------------------------------------------------
# Pure-JAX reference (PyTorch semantics) used to validate the Pallas lowering.
# ---------------------------------------------------------------------------
def spp_block1_reference(x, conv_w, bn_scale, bn_shift, *, k, s):
    B, Cin, H, W = x.shape
    Hp = (H - k) // s + 1
    Wp = (W - k) // s + 1
    ph = jnp.asarray(_avgpool_matrix(H, k, s))
    pw = jnp.asarray(_avgpool_matrix(W, k, s))
    uh = jnp.asarray(_bilinear_matrix(H, Hp))
    uw = jnp.asarray(_bilinear_matrix(W, Wp))
    t = jnp.einsum('ph,bchw->bcpw', ph, x)
    pooled = jnp.einsum('bcpw,qw->bcpq', t, pw)
    y = jnp.einsum('oc,bcpq->bopq', conv_w, pooled)
    y = jnp.maximum(y * bn_scale[None, :, None, None]
                    + bn_shift[None, :, None, None], 0.0)
    y1 = jnp.einsum('bopq,wq->bopw', y, uw)
    return jnp.einsum('hp,bopw->bohw', uh, y1)


if __name__ == "__main__":
    # SppBlock1(level=1, k=2, s=2, in_channel=16, out_numput=8), small shapes.
    B, Cin, Cout, H, W = 2, 16, 8, 16, 16

    key = jax.random.PRNGKey(0)
    kx, kw, kg, kb, km, kv = jax.random.split(key, 6)

    x = jax.random.normal(kx, (B, Cin, H, W), dtype=jnp.float32)
    conv_w = jax.random.normal(kw, (Cout, Cin), dtype=jnp.float32) * 0.1

    # BatchNorm2d (eval mode) folded to per-channel scale / shift.
    eps = 1e-5
    gamma = 1.0 + 0.1 * jax.random.normal(kg, (Cout,), dtype=jnp.float32)
    beta = 0.1 * jax.random.normal(kb, (Cout,), dtype=jnp.float32)
    run_mean = 0.1 * jax.random.normal(km, (Cout,), dtype=jnp.float32)
    run_var = jnp.abs(jax.random.normal(kv, (Cout,), dtype=jnp.float32)) + 0.5
    bn_scale = gamma / jnp.sqrt(run_var + eps)
    bn_shift = beta - run_mean * bn_scale
    # TODO(synk): training-mode BatchNorm (batch statistics) is not modelled;
    # eval-mode (running stats) semantics are used, as standard for inference.

    # Case 1: non-overlapping pooling (the common PSPNet configuration).
    out = jax.block_until_ready(spp_block1(x, conv_w, bn_scale, bn_shift, k=2, s=2))
    ref = spp_block1_reference(x, conv_w, bn_scale, bn_shift, k=2, s=2)
    np.testing.assert_allclose(np.asarray(out), np.asarray(ref),
                               rtol=1e-4, atol=1e-4)
    assert out.shape == (B, Cout, H, W)

    # Case 2: overlapping pooling (general k != s fallback path).
    out2 = jax.block_until_ready(spp_block1(x, conv_w, bn_scale, bn_shift, k=3, s=2))
    ref2 = spp_block1_reference(x, conv_w, bn_scale, bn_shift, k=3, s=2)
    np.testing.assert_allclose(np.asarray(out2), np.asarray(ref2),
                               rtol=1e-4, atol=1e-4)
    assert out2.shape == (B, Cout, H, W)

    print("KERNEL_OK")
</pallas_src>

<mosaic_0001>
module attributes {stable_mosaic.version = 11 : i64} {
  func.func @spp_block1_kernel(%arg0: i32, %arg1: i32, %arg2: memref<1x16x16x128xf32, #tpu.memory_space<vmem>>, %arg3: memref<128x128xf32, #tpu.memory_space<vmem>>, %arg4: memref<1x128xf32, #tpu.memory_space<vmem>>, %arg5: memref<8x16xf32, #tpu.memory_space<vmem>>, %arg6: memref<8x16xf32, #tpu.memory_space<vmem>>, %arg7: memref<16x8xf32, #tpu.memory_space<vmem>>, %arg8: memref<16x8xf32, #tpu.memory_space<vmem>>, %arg9: memref<1x16x16x128xf32, #tpu.memory_space<vmem>>, %arg10: memref<64x128xf32, #tpu.memory_space<vmem>>) attributes {dimension_semantics = [#tpu.dimension_semantics<parallel>, #tpu.dimension_semantics<arbitrary>], iteration_bounds = array<i64: 2, 1>, scalar_prefetch = 0 : i64, scratch_operands = 1 : i64, tpu.core_type = #tpu.core_type<tc>, window_params = [{transform_indices = @transform_0, window_bounds = array<i64: 1, 16, 16, 128>}, {transform_indices = @transform_1, window_bounds = array<i64: 128, 128>}, {pipeline_mode = #tpu.pipeline_mode<synchronous>, transform_indices = @transform_2, window_bounds = array<i64: 1, 128>}, {pipeline_mode = #tpu.pipeline_mode<synchronous>, transform_indices = @transform_3, window_bounds = array<i64: 8, 16>}, {pipeline_mode = #tpu.pipeline_mode<synchronous>, transform_indices = @transform_4, window_bounds = array<i64: 8, 16>}, {pipeline_mode = #tpu.pipeline_mode<synchronous>, transform_indices = @transform_5, window_bounds = array<i64: 16, 8>}, {pipeline_mode = #tpu.pipeline_mode<synchronous>, transform_indices = @transform_6, window_bounds = array<i64: 16, 8>}, {transform_indices = @transform_7, window_bounds = array<i64: 1, 16, 16, 128>}]} {
    %c0 = arith.constant 0 : index
    %c0_0 = arith.constant 0 : index
    %c0_1 = arith.constant 0 : index
    %c0_2 = arith.constant 0 : index
    %0 = vector.load %arg2[%c0, %c0_0, %c0_1, %c0_2] : memref<1x16x16x128xf32, #tpu.memory_space<vmem>>, vector<1x16x16x128xf32>
    %1 = vector.shape_cast %0 : vector<1x16x16x128xf32> to vector<16x16x128xf32>
    %2 = vector.shape_cast %1 : vector<16x16x128xf32> to vector<8x2x16x128xf32>
    %cst = arith.constant dense<0.000000e+00> : vector<8x16x128xf32>
    %3 = vector.multi_reduction <add>, %2, %cst [1] : vector<8x2x16x128xf32> to vector<8x16x128xf32>
    %cst_3 = arith.constant 2.000000e+00 : f32
    %4 = vector.broadcast %cst_3 : f32 to vector<8x16x128xf32>
    %5 = arith.divf %3, %4 : vector<8x16x128xf32>
    %c0_4 = arith.constant 0 : index
    %c0_5 = arith.constant 0 : index
    %6 = vector.load %arg6[%c0_4, %c0_5] : memref<8x16xf32, #tpu.memory_space<vmem>>, vector<8x16xf32>
    "tpu.trace_start"() <{level = 10 : i32, message = "qw,pwc->qpc"}> : () -> ()
    %cst_6 = arith.constant dense<0.000000e+00> : vector<8x8x128xf32>
    %7 = tpu.matmul %6, %5, %cst_6 {dimension_numbers = #tpu.dot_dimension_numbers<[1], [1], [0], [0, 2], [0, 0, 1, 0, 1, 2], [], []>} : vector<8x16xf32>, vector<8x16x128xf32>, vector<8x8x128xf32> -> vector<8x8x128xf32>
    "tpu.trace_stop"() : () -> ()
    %8 = vector.shape_cast %7 : vector<8x8x128xf32> to vector<64x128xf32>
    %c0_i32 = arith.constant 0 : i32
    %9 = arith.cmpi eq, %arg1, %c0_i32 : i32
    %10 = arith.extui %9 : i1 to i32
    %c0_i32_7 = arith.constant 0 : i32
    %11 = arith.cmpi ne, %10, %c0_i32_7 : i32
    scf.if %11 {
      %cst_17 = arith.constant 0.000000e+00 : f32
      %20 = vector.broadcast %cst_17 : f32 to vector<64x128xf32>
      %c0_18 = arith.constant 0 : index
      %c0_19 = arith.constant 0 : index
      %21 = vector.load %arg10[%c0_18, %c0_19] : memref<64x128xf32, #tpu.memory_space<vmem>>, vector<64x128xf32>
      tpu.vector_store %arg10[%c0_18, %c0_19], %20 {strides = array<i32>} : memref<64x128xf32, #tpu.memory_space<vmem>>, vector<64x128xf32>,
    } else {
    }
    %c0_8 = arith.constant 0 : index
    %c0_9 = arith.constant 0 : index
    %12 = vector.load %arg10[%c0_8, %c0_9] : memref<64x128xf32, #tpu.memory_space<vmem>>, vector<64x128xf32>
    %c0_10 = arith.constant 0 : index
    %c0_11 = arith.constant 0 : index
    %13 = vector.load %arg3[%c0_10, %c0_11] : memref<128x128xf32, #tpu.memory_space<vmem>>, vector<128x128xf32>
    %cst_12 = arith.constant dense<0.000000e+00> : vector<64x128xf32>
    %14 = tpu.matmul %8, %13, %cst_12 {dimension_numbers = #tpu.dot_dimension_numbers<[1], [0], [0], [1], [0, 0, 1, 1], [], []>} : vector<64x128xf32>, vector<128x128xf32>, vector<64x128xf32> -> vector<64x128xf32>
    %15 = arith.addf %12, %14 : vector<64x128xf32>
    %c0_13 = arith.constant 0 : index
    %c0_14 = arith.constant 0 : index
    %16 = vector.load %arg10[%c0_13, %c0_14] : memref<64x128xf32, #tpu.memory_space<vmem>>, vector<64x128xf32>
    tpu.vector_store %arg10[%c0_13, %c0_14], %15 {strides = array<i32>} : memref<64x128xf32, #tpu.memory_space<vmem>>, vector<64x128xf32>,
    %c0_i32_15 = arith.constant 0 : i32
    %17 = arith.cmpi eq, %arg1, %c0_i32_15 : i32
    %18 = arith.extui %17 : i1 to i32
    %c0_i32_16 = arith.constant 0 : i32
    %19 = arith.cmpi ne, %18, %c0_i32_16 : i32
    scf.if %19 {
      %c0_17 = arith.constant 0 : index
      %c0_18 = arith.constant 0 : index
      %20 = vector.load %arg10[%c0_17, %c0_18] : memref<64x128xf32, #tpu.memory_space<vmem>>, vector<64x128xf32>
      %c0_19 = arith.constant 0 : index
      %c0_20 = arith.constant 0 : index
      %21 = vector.load %arg4[%c0_19, %c0_20] : memref<1x128xf32, #tpu.memory_space<vmem>>, vector<1x128xf32>
      %22 = vector.broadcast %21 : vector<1x128xf32> to vector<64x128xf32>
      %23 = arith.addf %20, %22 : vector<64x128xf32>
      %cst_21 = arith.constant 0.000000e+00 : f32
      %24 = vector.broadcast %cst_21 : f32 to vector<64x128xf32>
      %25 = arith.maximumf %23, %24 : vector<64x128xf32>
      %26 = vector.shape_cast %25 : vector<64x128xf32> to vector<8x8x128xf32>
      %c0_22 = arith.constant 0 : index
      %c0_23 = arith.constant 0 : index
      %27 = vector.load %arg7[%c0_22, %c0_23] : memref<16x8xf32, #tpu.memory_space<vmem>>, vector<16x8xf32>
      "tpu.trace_start"() <{level = 10 : i32, message = "hp,qpc->hqc"}> : () -> ()
      %cst_24 = arith.constant dense<0.000000e+00> : vector<16x8x128xf32>
      %28 = tpu.matmul %27, %26, %cst_24 {dimension_numbers = #tpu.dot_dimension_numbers<[1], [1], [0], [0, 2], [0, 0, 1, 0, 1, 2], [], []>} : vector<16x8xf32>, vector<8x8x128xf32>, vector<16x8x128xf32> -> vector<16x8x128xf32>
      "tpu.trace_stop"() : () -> ()
      %c0_25 = arith.constant 0 : index
      %c0_26 = arith.constant 0 : index
      %29 = vector.load %arg8[%c0_25, %c0_26] : memref<16x8xf32, #tpu.memory_space<vmem>>, vector<16x8xf32>
      "tpu.trace_start"() <{level = 10 : i32, message = "wq,hqc->whc"}> : () -> ()
      %cst_27 = arith.constant dense<0.000000e+00> : vector<16x16x128xf32>
      %30 = tpu.matmul %29, %28, %cst_27 {dimension_numbers = #tpu.dot_dimension_numbers<[1], [1], [0], [0, 2], [0, 0, 1, 0, 1, 2], [], []>} : vector<16x8xf32>, vector<16x8x128xf32>, vector<16x16x128xf32> -> vector<16x16x128xf32>
      "tpu.trace_stop"() : () -> ()
      %c0_28 = arith.constant 0 : index
      %c0_29 = arith.constant 0 : index
      %c0_30 = arith.constant 0 : index
      %c0_31 = arith.constant 0 : index
      %31 = vector.load %arg9[%c0_28, %c0_29, %c0_30, %c0_31] : memref<1x16x16x128xf32, #tpu.memory_space<vmem>>, vector<1x16x16x128xf32>
      %32 = vector.shape_cast %31 : vector<1x16x16x128xf32> to vector<16x16x128xf32>
      %33 = vector.shape_cast %30 : vector<16x16x128xf32> to vector<1x16x16x128xf32>
      tpu.vector_store %arg9[%c0_28, %c0_29, %c0_30, %c0_31], %33 {strides = array<i32>} : memref<1x16x16x128xf32, #tpu.memory_space<vmem>>, vector<1x16x16x128xf32>,
    } else {
    }
    return
  }
  func.func @transform_0(%arg0: i32, %arg1: i32) -> (i32, i32, i32, i32) {
    %c0_i32 = arith.constant 0 : i32
    %c0_i32_0 = arith.constant 0 : i32
    %c0_i32_1 = arith.constant 0 : i32
    return %arg0, %c0_i32, %c0_i32_0, %arg1 : i32, i32, i32, i32
  }
  func.func @transform_1(%arg0: i32, %arg1: i32) -> (i32, i32) {
    %c0_i32 = arith.constant 0 : i32
    %c0_i32_0 = arith.constant 0 : i32
    return %arg1, %c0_i32 : i32, i32
  }
  func.func @transform_2(%arg0: i32, %arg1: i32) -> (i32, i32) {
    %c0_i32 = arith.constant 0 : i32
    %c0_i32_0 = arith.constant 0 : i32
    %c0_i32_1 = arith.constant 0 : i32
    return %c0_i32, %c0_i32_0 : i32, i32
  }
  func.func @transform_3(%arg0: i32, %arg1: i32) -> (i32, i32) {
    %c0_i32 = arith.constant 0 : i32
    %c0_i32_0 = arith.constant 0 : i32
    %c0_i32_1 = arith.constant 0 : i32
    return %c0_i32, %c0_i32_0 : i32, i32
  }
  func.func @transform_4(%arg0: i32, %arg1: i32) -> (i32, i32) {
    %c0_i32 = arith.constant 0 : i32
    %c0_i32_0 = arith.constant 0 : i32
    %c0_i32_1 = arith.constant 0 : i32
    return %c0_i32, %c0_i32_0 : i32, i32
  }
  func.func @transform_5(%arg0: i32, %arg1: i32) -> (i32, i32) {
    %c0_i32 = arith.constant 0 : i32
    %c0_i32_0 = arith.constant 0 : i32
    %c0_i32_1 = arith.constant 0 : i32
    return %c0_i32, %c0_i32_0 : i32, i32
  }
  func.func @transform_6(%arg0: i32, %arg1: i32) -> (i32, i32) {
    %c0_i32 = arith.constant 0 : i32
    %c0_i32_0 = arith.constant 0 : i32
    %c0_i32_1 = arith.constant 0 : i32
    return %c0_i32, %c0_i32_0 : i32, i32
  }
  func.func @transform_7(%arg0: i32, %arg1: i32) -> (i32, i32, i32, i32) {
    %c0_i32 = arith.constant 0 : i32
    %c0_i32_0 = arith.constant 0 : i32
    %c0_i32_1 = arith.constant 0 : i32
    %c0_i32_2 = arith.constant 0 : i32
    return %arg0, %c0_i32, %c0_i32_0, %c0_i32_1 : i32, i32, i32, i32
  }
}

</mosaic_0001>

<llo_original>
// kernel: tpu_custom_call.1
$region0: #{tpu_custom_call.1}
  #allocation0 [shape = 'u32[]', space=smem, size = 0x4, offset = 0x4, fixed_abs, tag = 'smem constant byte address 0x4 - core index']
  #allocation1 [shape = 'u32[144,128]{1,0:T(1,128)}', space=vmem, size = 0x12000, scoped, tag = 'internal scratch']
  #allocation2 [shape = 'f32[64,128]{1,0:T(8,128)}', space=vmem, size = 0x8000, scoped, tag = 'scratch operand']
  %s0 = inlined_call_operand.hbm [shape: f32[2,16,16,128], index: 0, kind: input, shape index: {}]
  %s1 = inlined_call_operand.hbm [shape: f32[128,128], index: 1, kind: input, shape index: {}]
  %s2 = inlined_call_operand.vmem [shape: f32[1,128], index: 2, kind: input, shape index: {}]
  %s3 = inlined_call_operand.vmem [shape: f32[8,16], index: 3, kind: input, shape index: {}]
  %s4 = inlined_call_operand.vmem [shape: f32[8,16], index: 4, kind: input, shape index: {}]
  %s5 = inlined_call_operand.vmem [shape: f32[16,8], index: 5, kind: input, shape index: {}]
  %s6 = inlined_call_operand.vmem [shape: f32[16,8], index: 6, kind: input, shape index: {}]
  %s7 = inlined_call_operand.hbm [shape: f32[2,16,16,128], index: 7, kind: output, shape index: {}]
  %s8 = sld [smem:[#allocation0]]
  $region77: #{tpu_custom_call.1} parent=0
    _
  %s10 = ssub.s32 1, %s8
  %s11 = scalar_select 0, %s10, %s8
  $region1: #{tpu_custom_call.1} parent=0
    #allocation3 [shape = 'u8[262144]{0}', space=vmem, size = 0x40000, scoped, tag = 'input window, operand 0']
    #allocation4 [shape = 's32[2]{0}', space=sflag, size = 0x8, scoped, tag = 'scoped memory for tpu_custom_call.1']
    #allocation5 [shape = 's32[2]{0}', space=sflag, size = 0x8, scoped, tag = 'scoped memory for tpu_custom_call.1']
    #allocation6 [shape = 'u8[65536]{0}', space=vmem, size = 0x10000, scoped, tag = 'input window, operand 1, single buffered']
    #allocation7 [shape = 's32[1]{0}', space=sflag, size = 0x4, scoped, tag = 'scoped memory for tpu_custom_call.1']
    #allocation8 [shape = 'u8[262144]{0}', space=vmem, size = 0x40000, scoped, tag = 'output window, operand 0']
    %12 = vsyncpa [#allocation4], 0
    %s13 = scalar_lea.sflag [#allocation4], 1
    %14 = vsyncpa %s13, 0
    %15 = vsyncpa [#allocation7], 0
    %16 = vsyncpa [#allocation5], 0
    %s17 = scalar_lea.sflag [#allocation5], 1
    %18 = vsyncpa %s17, 0
    loop: start=0, step=1, limit=4
    $region2: #{tpu_custom_call.1} parent=1 // loop_pre_header
      _
    $region3: #{tpu_custom_call.1} parent=1 // loop_header
      %s20 = sphi 0, %s24
      %p21 = scmp.ge.s32.totalorder %s20, 4
      %s27 = sphi 0, %s39
      %s28 = sphi 0, %s35
      %s29 = sphi 0, %s27
      %s30 = sphi 0, %s28
      %s31 = sphi 0, %s29
      %s32 = sphi 0, %s30
      %s44 = sphi 0, %s46
      %s47 = sphi 0, %s44
      %s48 = sphi 0, %s47
      %s64 = sphi 0, %s48
      %s70 = sphi 0, %s72
      %s73 = sphi 0, %s70
      %s74 = sphi 0, %s73
      %s90 = sphi 0, %s74
      %s94 = sphi 0, %s94
      %s96 = sphi 0, %s94
      %s97 = sphi 0, %s96
      %s111 = sphi 0, %s97
      %s115 = sphi 0, %s115
      %s117 = sphi 0, %s115
      %s118 = sphi 0, %s117
      %s132 = sphi 0, %s118
      %s136 = sphi 0, %s136
      %s138 = sphi 0, %s136
      %s139 = sphi 0, %s138
      %s153 = sphi 0, %s139
      %s157 = sphi 0, %s157
      %s159 = sphi 0, %s157
      %s160 = sphi 0, %s159
      %s174 = sphi 0, %s160
      %s178 = sphi 0, %s178
      %s180 = sphi 0, %s178
      %s181 = sphi 0, %s180
      %s195 = sphi 0, %s181
      %s201 = sphi 0, %s203
      %s204 = sphi 0, %s201
      %s205 = sphi 0, %s204
      %s221 = sphi 0, %s205
    $region4: #{tpu_custom_call.1} parent=1 // loop_header_branch
      %23 = sbr.rel (%p21) target = $region8
    $region5: #{tpu_custom_call.1} parent=1 // loop_body
      %s25 = ssub.s32 %s20, 1
      %s26 = ssub.s32 %s20, 2
      %s33 = sadd.s32 1, %s28
      %p34 = scmp.ge.s32.totalorder %s33, 1
      %s35 = scalar_select %p34, 0, %s33
      %s36 = sadd.s32 1, %s27
      %s37 = scalar_select %p34, %s36, %s27
      %p38 = scmp.ge.s32.totalorder %s37, 2
      %s39 = scalar_select %p38, 0, %s37
      %s40 = ssub.s32 %s27, %s39
      %s41 = ssub.s32 %s28, %s35
      %s42 = sor.u32 %s40, %s41
      %p43 = scmp.eq.s32.totalorder %s42, 0
      %s45 = sadd.s32 %s44, 1
      %s46 = scalar_select %p43, %s44, %s45
      %p49 = pneg %p43
      %p50 = scmp.eq.s32.totalorder %s20, 1
      %p51 = por %p49, %p50
      %p52 = scmp.ne.s32.totalorder %s44, %s47
      %p53 = scmp.eq.s32.totalorder %s20, 0
      %p54 = por %p52, %p53
      %p55 = scmp.ne.s32.totalorder %s44, %s47
      %p56 = scmp.eq.s32.totalorder %s25, 1
      %p57 = por %p55, %p56
      %p58 = scmp.ne.s32.totalorder %s47, %s48
      %p59 = scmp.eq.s32.totalorder %s25, 0
      %p60 = por %p58, %p59
      %p61 = scmp.ne.s32.totalorder %s47, %s48
      %p62 = scmp.eq.s32.totalorder %s26, 1
      %p63 = por %p61, %p62
      %p65 = scmp.ne.s32.totalorder %s48, %s64
      %p66 = scmp.eq.s32.totalorder %s26, 0
      %p67 = por %p65, %p66
      %s68 = ssub.s32 %s28, %s35
      %p69 = scmp.eq.s32.totalorder %s68, 0
      %s71 = sadd.s32 %s70, 1
      %s72 = scalar_select %p69, %s70, %s71
      %p75 = pneg %p69
      %p76 = scmp.eq.s32.totalorder %s20, 1
      %p77 = por %p75, %p76
      %p78 = scmp.ne.s32.totalorder %s70, %s73
      %p79 = scmp.eq.s32.totalorder %s20, 0
      %p80 = por %p78, %p79
      %p81 = scmp.ne.s32.totalorder %s70, %s73
      %p82 = scmp.eq.s32.totalorder %s25, 1
      %p83 = por %p81, %p82
      %p84 = scmp.ne.s32.totalorder %s73, %s74
      %p85 = scmp.eq.s32.totalorder %s25, 0
      %p86 = por %p84, %p85
      %p87 = scmp.ne.s32.totalorder %s73, %s74
      %p88 = scmp.eq.s32.totalorder %s26, 1
      %p89 = por %p87, %p88
      %p91 = scmp.ne.s32.totalorder %s74, %s90
      %p92 = scmp.eq.s32.totalorder %s26, 0
      %p93 = por %p91, %p92
      %s95 = sadd.s32 %s94, 1
      %p98 = scmp.eq.s32.totalorder %s20, 1
      %p99 = scmp.ne.s32.totalorder %s94, %s96
      %p100 = scmp.eq.s32.totalorder %s20, 0
      %p101 = por %p99, %p100
      %p102 = scmp.ne.s32.totalorder %s94, %s96
      %p103 = scmp.eq.s32.totalorder %s25, 1
      %p104 = por %p102, %p103
      %p105 = scmp.ne.s32.totalorder %s96, %s97
      %p106 = scmp.eq.s32.totalorder %s25, 0
      %p107 = por %p105, %p106
      %p108 = scmp.ne.s32.totalorder %s96, %s97
      %p109 = scmp.eq.s32.totalorder %s26, 1
      %p110 = por %p108, %p109
      %p112 = scmp.ne.s32.totalorder %s97, %s111
      %p113 = scmp.eq.s32.totalorder %s26, 0
      %p114 = por %p112, %p113
      %s116 = sadd.s32 %s115, 1
      %p119 = scmp.eq.s32.totalorder %s20, 1
      %p120 = scmp.ne.s32.totalorder %s115, %s117
      %p121 = scmp.eq.s32.totalorder %s20, 0
      %p122 = por %p120, %p121
      %p123 = scmp.ne.s32.totalorder %s115, %s117
      %p124 = scmp.eq.s32.totalorder %s25, 1
      %p125 = por %p123, %p124
      %p126 = scmp.ne.s32.totalorder %s117, %s118
      %p127 = scmp.eq.s32.totalorder %s25, 0
      %p128 = por %p126, %p127
      %p129 = scmp.ne.s32.totalorder %s117, %s118
      %p130 = scmp.eq.s32.totalorder %s26, 1
      %p131 = por %p129, %p130
      %p133 = scmp.ne.s32.totalorder %s118, %s132
      %p134 = scmp.eq.s32.totalorder %s26, 0
      %p135 = por %p133, %p134
      %s137 = sadd.s32 %s136, 1
      %p140 = scmp.eq.s32.totalorder %s20, 1
      %p141 = scmp.ne.s32.totalorder %s136, %s138
      %p142 = scmp.eq.s32.totalorder %s20, 0
      %p143 = por %p141, %p142
      %p144 = scmp.ne.s32.totalorder %s136, %s138
      %p145 = scmp.eq.s32.totalorder %s25, 1
      %p146 = por %p144, %p145
      %p147 = scmp.ne.s32.totalorder %s138, %s139
      %p148 = scmp.eq.s32.totalorder %s25, 0
      %p149 = por %p147, %p148
      %p150 = scmp.ne.s32.totalorder %s138, %s139
      %p151 = scmp.eq.s32.totalorder %s26, 1
      %p152 = por %p150, %p151
      %p154 = scmp.ne.s32.totalorder %s139, %s153
      %p155 = scmp.eq.s32.totalorder %s26, 0
      %p156 = por %p154, %p155
      %s158 = sadd.s32 %s157, 1
      %p161 = scmp.eq.s32.totalorder %s20, 1
      %p162 = scmp.ne.s32.totalorder %s157, %s159
      %p163 = scmp.eq.s32.totalorder %s20, 0
      %p164 = por %p162, %p163
      %p165 = scmp.ne.s32.totalorder %s157, %s159
      %p166 = scmp.eq.s32.totalorder %s25, 1
      %p167 = por %p165, %p166
      %p168 = scmp.ne.s32.totalorder %s159, %s160
      %p169 = scmp.eq.s32.totalorder %s25, 0
      %p170 = por %p168, %p169
      %p171 = scmp.ne.s32.totalorder %s159, %s160
      %p172 = scmp.eq.s32.totalorder %s26, 1
      %p173 = por %p171, %p172
      %p175 = scmp.ne.s32.totalorder %s160, %s174
      %p176 = scmp.eq.s32.totalorder %s26, 0
      %p177 = por %p175, %p176
      %s179 = sadd.s32 %s178, 1
      %p182 = scmp.eq.s32.totalorder %s20, 1
      %p183 = scmp.ne.s32.totalorder %s178, %s180
      %p184 = scmp.eq.s32.totalorder %s20, 0
      %p185 = por %p183, %p184
      %p186 = scmp.ne.s32.totalorder %s178, %s180
      %p187 = scmp.eq.s32.totalorder %s25, 1
      %p188 = por %p186, %p187
      %p189 = scmp.ne.s32.totalorder %s180, %s181
      %p190 = scmp.eq.s32.totalorder %s25, 0
      %p191 = por %p189, %p190
      %p192 = scmp.ne.s32.totalorder %s180, %s181
      %p193 = scmp.eq.s32.totalorder %s26, 1
      %p194 = por %p192, %p193
      %p196 = scmp.ne.s32.totalorder %s181, %s195
      %p197 = scmp.eq.s32.totalorder %s26, 0
      %p198 = por %p196, %p197
      %s199 = ssub.s32 %s27, %s39
      %p200 = scmp.eq.s32.totalorder %s199, 0
      %s202 = sadd.s32 %s201, 1
      %s203 = scalar_select %p200, %s201, %s202
      %p206 = pneg %p200
      %p207 = scmp.eq.s32.totalorder %s20, 1
      %p208 = por %p206, %p207
      %p209 = scmp.ne.s32.totalorder %s201, %s204
      %p210 = scmp.eq.s32.totalorder %s20, 0
      %p211 = por %p209, %p210
      %p212 = scmp.ne.s32.totalorder %s201, %s204
      %p213 = scmp.eq.s32.totalorder %s25, 1
      %p214 = por %p212, %p213
      %p215 = scmp.ne.s32.totalorder %s204, %s205
      %p216 = scmp.eq.s32.totalorder %s25, 0
      %p217 = por %p215, %p216
      %p218 = scmp.ne.s32.totalorder %s204, %s205
      %p219 = scmp.eq.s32.totalorder %s26, 1
      %p220 = por %p218, %p219
      %p222 = scmp.ne.s32.totalorder %s205, %s221
      %p223 = scmp.eq.s32.totalorder %s26, 0
      %p224 = por %p222, %p223
      %p225 = scmp.le.s32.totalorder 1, %s20
      %p226 = scmp.lt.s32.totalorder %s20, 3
      %p227 = pnand %p225, %p226
      %p228 = pneg %p227
      // Predicated region
      $region9: #{tpu_custom_call.1} parent=5 // pred_check
        _
      $region10: #{tpu_custom_call.1} parent=5 // pred_check_branch
        %230 = sbr.rel (%p227) target = $region12
      $region11: #{tpu_custom_call.1} parent=5 // pred_region
        %s231 = ssub.s32 %s20, 1
        // Predicated region
        $region13: #{tpu_custom_call.1} parent=11 // pred_check
          %p232 = pneg %p86
        $region14: #{tpu_custom_call.1} parent=11 // pred_check_branch
          %234 = sbr.rel (%p232) target = $region16
        $region15: #{tpu_custom_call.1} parent=11 // pred_region
          %s235 = smul.u32 16, %s30
          %s237 = ssub.s32 2048, 2048
          %238 = vsyncadd [#allocation7], %s237
          %s239 = smul.addr %s235, 128
          %s240 = scalar_lea.hbm %s1, %s239
          %s241 = sshll.u32 [#allocation6], 4
          %s242 = int_to_ptr.vmem [resolvable:$true] %s241
          %247 = dma.hbm_to_vmem [thread:$0]  %s240, 2048, %s242, [#allocation7], 128, 128, 8
        $region16: #{tpu_custom_call.1} parent=11 // pred_fallthru
          _
        // Predicated region
        $region17: #{tpu_custom_call.1} parent=11 // pred_check
          %p248 = pneg %p107
        $region18: #{tpu_custom_call.1} parent=11 // pred_check_branch
          %250 = sbr.rel (%p248) target = $region20
        $region19: #{tpu_custom_call.1} parent=11 // pred_region
          _
        $region20: #{tpu_custom_call.1} parent=11 // pred_fallthru
          _
        // Predicated region
        $region21: #{tpu_custom_call.1} parent=11 // pred_check
          %p251 = pneg %p128
        $region22: #{tpu_custom_call.1} parent=11 // pred_check_branch
          %253 = sbr.rel (%p251) target = $region24
        $region23: #{tpu_custom_call.1} parent=11 // pred_region
          _
        $region24: #{tpu_custom_call.1} parent=11 // pred_fallthru
          _
        // Predicated region
        $region25: #{tpu_custom_call.1} parent=11 // pred_check
          %p254 = pneg %p149
        $region26: #{tpu_custom_call.1} parent=11 // pred_check_branch
          %256 = sbr.rel (%p254) target = $region28
        $region27: #{tpu_custom_call.1} parent=11 // pred_region
          _
        $region28: #{tpu_custom_call.1} parent=11 // pred_fallthru
          _
        // Predicated region
        $region29: #{tpu_custom_call.1} parent=11 // pred_check
          %p257 = pneg %p170
        $region30: #{tpu_custom_call.1} parent=11 // pred_check_branch
          %259 = sbr.rel (%p257) target = $region32
        $region31: #{tpu_custom_call.1} parent=11 // pred_region
          _
        $region32: #{tpu_custom_call.1} parent=11 // pred_fallthru
          _
        // Predicated region
        $region33: #{tpu_custom_call.1} parent=11 // pred_check
          %p260 = pneg %p191
        $region34: #{tpu_custom_call.1} parent=11 // pred_check_branch
          %262 = sbr.rel (%p260) target = $region36
        $region35: #{tpu_custom_call.1} parent=11 // pred_region
          _
        $region36: #{tpu_custom_call.1} parent=11 // pred_fallthru
          _
      $region12: #{tpu_custom_call.1} parent=5 // pred_fallthru
        _
      %p263 = scmp.lt.s32.totalorder %s20, 2
      // Predicated region
      $region37: #{tpu_custom_call.1} parent=5 // pred_check
        %p264 = pneg %p263
      $region38: #{tpu_custom_call.1} parent=5 // pred_check_branch
        %266 = sbr.rel (%p264) target = $region40
      $region39: #{tpu_custom_call.1} parent=5 // pred_region
        // Predicated region
        $region41: #{tpu_custom_call.1} parent=39 // pred_check
          %p267 = pneg %p54
        $region42: #{tpu_custom_call.1} parent=39 // pred_check_branch
          %269 = sbr.rel (%p267) target = $region44
        $region43: #{tpu_custom_call.1} parent=39 // pred_region
          %s270 = sand.u32 %s44, 1
          %s271 = scalar_lea.sflag [#allocation4], %s270
          %s272 = sand.u32 %s44, 1
          %s273 = smul.addr %s272, 256
          %s274 = scalar_lea.vmem [#allocation3], %s273
          %s276 = ssub.s32 4096, 4096
          %277 = vsyncadd %s271, %s276
          %s278 = smul.addr %s27, 32
          %s279 = sadd.s32 %s28, %s278
          %s280 = smul.addr %s279, 128
          %s281 = scalar_lea.hbm %s0, %s280
          %s282 = sshll.u32 %s274, 4
          %s283 = int_to_ptr.vmem [resolvable:$true] %s282
          %288 = dma.hbm_to_vmem [thread:$0]  %s281, 4096, %s283, %s271, 128, 128, 8
        $region44: #{tpu_custom_call.1} parent=39 // pred_fallthru
          _
      $region40: #{tpu_custom_call.1} parent=5 // pred_fallthru
        _
      %p289 = scmp.le.s32.totalorder 1, %s20
      %p290 = scmp.lt.s32.totalorder %s20, 3
      %p291 = pnand %p289, %p290
      %p292 = pneg %p291
      // Predicated region
      $region45: #{tpu_custom_call.1} parent=5 // pred_check
        _
      $region46: #{tpu_custom_call.1} parent=5 // pred_check_branch
        %294 = sbr.rel (%p291) target = $region48
      $region47: #{tpu_custom_call.1} parent=5 // pred_region
        %s295 = ssub.s32 %s20, 1
        %s296 = sand.u32 %s47, 1
        %s297 = scalar_lea.sflag [#allocation4], %s296
        %s298 = sand.u32 %s47, 1
        %s299 = smul.addr %s298, 256
        %s300 = scalar_lea.vmem [#allocation3], %s299
        // Predicated region
        $region49: #{tpu_custom_call.1} parent=47 // pred_check
          %p301 = pneg %p60
        $region50: #{tpu_custom_call.1} parent=47 // pred_check_branch
          %303 = sbr.rel (%p301) target = $region52
        $region51: #{tpu_custom_call.1} parent=47 // pred_region
          %304 = dma.done %s297, 4096
        $region52: #{tpu_custom_call.1} parent=47 // pred_fallthru
          _
        // Predicated region
        $region53: #{tpu_custom_call.1} parent=47 // pred_check
          %p305 = pneg %p86
        $region54: #{tpu_custom_call.1} parent=47 // pred_check_branch
          %307 = sbr.rel (%p305) target = $region56
        $region55: #{tpu_custom_call.1} parent=47 // pred_region
          %308 = dma.done [#allocation7], 2048
        $region56: #{tpu_custom_call.1} parent=47 // pred_fallthru
          _
        %s309 = sand.u32 %s47, 1
        %s310 = scalar_lea.sflag [#allocation4], %s309
        %s311 = sand.u32 %s47, 1
        %s312 = smul.addr %s311, 256
        %s313 = scalar_lea.vmem [#allocation3], %s312
        %p314 = pneg %p60
        %p315 = pneg %p57
        %p316 = pneg %p86
        %p317 = pneg %p83
        %p318 = pneg %p107
        %p319 = pneg %p104
        %p320 = pneg %p128
        %p321 = pneg %p125
        %p322 = pneg %p149
        %p323 = pneg %p146
        %p324 = pneg %p170
        %p325 = pneg %p167
        %p326 = pneg %p191
        %p327 = pneg %p188
        %p328 = pneg %p217
        %p329 = pneg %p214
        %s330 = sand.u32 %s204, 1
        %s331 = scalar_lea.sflag [#allocation5], %s330
        %s332 = sand.u32 %s204, 1
        %s333 = smul.addr %s332, 256
        %s334 = scalar_lea.vmem [#allocation8], %s333
        %s335 = smul.u32 16, %s30
        %v336 = vld [vmem:[%s300] sm:$0xff]
        %v337 = vld [vmem:[%s300 + $0x8] sm:$0xff]
        %v338 = vld [vmem:[%s300 + $0x10] sm:$0xff]
        %v339 = vld [vmem:[%s300 + $0x18] sm:$0xff]
        %v340 = vld [vmem:[%s300 + $0x20] sm:$0xff]
        %v341 = vld [vmem:[%s300 + $0x28] sm:$0xff]
        %v342 = vld [vmem:[%s300 + $0x30] sm:$0xff]
        %v343 = vld [vmem:[%s300 + $0x38] sm:$0xff]
        %v344 = vld [vmem:[%s300 + $0x40] sm:$0xff]
        %v345 = vld [vmem:[%s300 + $0x48] sm:$0xff]
        %v346 = vld [vmem:[%s300 + $0x50] sm:$0xff]
        %v347 = vld [vmem:[%s300 + $0x58] sm:$0xff]
        %v348 = vld [vmem:[%s300 + $0x60] sm:$0xff]
        %v349 = vld [vmem:[%s300 + $0x68] sm:$0xff]
        %v350 = vld [vmem:[%s300 + $0x70] sm:$0xff]
        %v351 = vld [vmem:[%s300 + $0x78] sm:$0xff]
        %v352 = vld [vmem:[%s300 + $0x80] sm:$0xff]
        %v353 = vld [vmem:[%s300 + $0x88] sm:$0xff]
        %v354 = vld [vmem:[%s300 + $0x90] sm:$0xff]
        %v355 = vld [vmem:[%s300 + $0x98] sm:$0xff]
        %v356 = vld [vmem:[%s300 + $0xa0] sm:$0xff]
        %v357 = vld [vmem:[%s300 + $0xa8] sm:$0xff]
        %v358 = vld [vmem:[%s300 + $0xb0] sm:$0xff]
        %v359 = vld [vmem:[%s300 + $0xb8] sm:$0xff]
        %v360 = vld [vmem:[%s300 + $0xc0] sm:$0xff]
        %v361 = vld [vmem:[%s300 + $0xc8] sm:$0xff]
        %v362 = vld [vmem:[%s300 + $0xd0] sm:$0xff]
        %v363 = vld [vmem:[%s300 + $0xd8] sm:$0xff]
        %v364 = vld [vmem:[%s300 + $0xe0] sm:$0xff]
        %v365 = vld [vmem:[%s300 + $0xe8] sm:$0xff]
        %v366 = vld [vmem:[%s300 + $0xf0] sm:$0xff]
        %v367 = vld [vmem:[%s300 + $0xf8] sm:$0xff]
        %v368 = vadd.f32 %v336, %v338
        %v369 = vadd.f32 %v337, %v339
        %v370 = vadd.f32 %v340, %v342
        %v371 = vadd.f32 %v341, %v343
        %v372 = vadd.f32 %v344, %v346
        %v373 = vadd.f32 %v345, %v347
        %v374 = vadd.f32 %v348, %v350
        %v375 = vadd.f32 %v349, %v351
        %v376 = vadd.f32 %v352, %v354
        %v377 = vadd.f32 %v353, %v355
        %v378 = vadd.f32 %v356, %v358
        %v379 = vadd.f32 %v357, %v359
        %v380 = vadd.f32 %v360, %v362
        %v381 = vadd.f32 %v361, %v363
        %v382 = vadd.f32 %v364, %v366
        %v383 = vadd.f32 %v365, %v367
        %v384 = vrcp.pop 2.0
        %v385 = vmul.f32 %v368, %v384
        %v386 = vmul.f32 %v369, %v384
        %v387 = vmul.f32 %v370, %v384
        %v388 = vmul.f32 %v371, %v384
        %v389 = vmul.f32 %v372, %v384
        %v390 = vmul.f32 %v373, %v384
        %v391 = vmul.f32 %v374, %v384
        %v392 = vmul.f32 %v375, %v384
        %v393 = vmul.f32 %v376, %v384
        %v394 = vmul.f32 %v377, %v384
        %v395 = vmul.f32 %v378, %v384
        %v396 = vmul.f32 %v379, %v384
        %v397 = vmul.f32 %v380, %v384
        %v398 = vmul.f32 %v381, %v384
        %v399 = vmul.f32 %v382, %v384
        %v400 = vmul.f32 %v383, %v384
        %v401 = vld [vmem:[%s4] sm:$0xff]
        %v402 = vcombine.low %v385, %v389
        %v403 = vcombine.high %v385, %v389
        %v405 = vunpack.c.l.s4 1983009808
        %v406 = vunpack.c.0.s8 %v405
        %v407 = vlaneseq
        %v408 = vshrl.u32 %v407, 7
        %v409 = vsub.s32 %v406, %v408
        %v410 = vrot.slane %v402, %v409
        %v412 = vunpack.c.l.s4 1983009808
        %v413 = vunpack.c.0.s8 %v412
        %v414 = vlaneseq
        %v415 = vshrl.u32 %v414, 7
        %v416 = vsub.s32 %v413, %v415
        %v417 = vrot.slane %v403, %v416
        %v418 = vcombine.low %v387, %v391
        %v419 = vcombine.high %v387, %v391
        %v421 = vunpack.c.l.s4 1983009808
        %v422 = vunpack.c.0.s8 %v421
        %v423 = vlaneseq
        %v424 = vshrl.u32 %v423, 7
        %v425 = vsub.s32 %v422, %v424
        %v426 = vrot.slane %v418, %v425
        %v428 = vunpack.c.l.s4 1983009808
        %v429 = vunpack.c.0.s8 %v428
        %v430 = vlaneseq
        %v431 = vshrl.u32 %v430, 7
        %v432 = vsub.s32 %v429, %v431
        %v433 = vrot.slane %v419, %v432
        %v434 = vcombine.low %v393, %v397
        %v435 = vcombine.high %v393, %v397
        %v437 = vunpack.c.l.s4 1983009808
        %v438 = vunpack.c.0.s8 %v437
        %v439 = vlaneseq
        %v440 = vshrl.u32 %v439, 7
        %v441 = vsub.s32 %v438, %v440
        %v442 = vrot.slane %v434, %v441
        %v444 = vunpack.c.l.s4 1983009808
        %v445 = vunpack.c.0.s8 %v444
        %v446 = vlaneseq
        %v447 = vshrl.u32 %v446, 7
        %v448 = vsub.s32 %v445, %v447
        %v449 = vrot.slane %v435, %v448
        %v450 = vcombine.low %v395, %v399
        %v451 = vcombine.high %v395, %v399
        %v453 = vunpack.c.l.s4 1983009808
        %v454 = vunpack.c.0.s8 %v453
        %v455 = vlaneseq
        %v456 = vshrl.u32 %v455, 7
        %v457 = vsub.s32 %v454, %v456
        %v458 = vrot.slane %v450, %v457
        %v460 = vunpack.c.l.s4 1983009808
        %v461 = vunpack.c.0.s8 %v460
        %v462 = vlaneseq
        %v463 = vshrl.u32 %v462, 7
        %v464 = vsub.s32 %v461, %v463
        %v465 = vrot.slane %v451, %v464
        %v466 = vcombine.low %v410, %v426
        %v467 = vcombine.high %v410, %v426
        %v469 = vunpack.c.l.s4 1934713408
        %v470 = vunpack.c.0.s8 %v469
        %v471 = vlaneseq
        %v472 = vshrl.u32 %v471, 7
        %v473 = vsub.s32 %v470, %v472
        %v474 = vrot.slane %v466, %v473
        %v476 = vunpack.c.l.s4 1934713408
        %v477 = vunpack.c.0.s8 %v476
        %v478 = vlaneseq
        %v479 = vshrl.u32 %v478, 7
        %v480 = vsub.s32 %v477, %v479
        %v481 = vrot.slane %v467, %v480
        %v482 = vcombine.low %v417, %v433
        %v483 = vcombine.high %v417, %v433
        %v485 = vunpack.c.l.s4 1934713408
        %v486 = vunpack.c.0.s8 %v485
        %v487 = vlaneseq
        %v488 = vshrl.u32 %v487, 7
        %v489 = vsub.s32 %v486, %v488
        %v490 = vrot.slane %v482, %v489
        %v492 = vunpack.c.l.s4 1934713408
        %v493 = vunpack.c.0.s8 %v492
        %v494 = vlaneseq
        %v495 = vshrl.u32 %v494, 7
        %v496 = vsub.s32 %v493, %v495
        %v497 = vrot.slane %v483, %v496
        %v498 = vcombine.low %v442, %v458
        %v499 = vcombine.high %v442, %v458
        %v501 = vunpack.c.l.s4 1934713408
        %v502 = vunpack.c.0.s8 %v501
        %v503 = vlaneseq
        %v504 = vshrl.u32 %v503, 7
        %v505 = vsub.s32 %v502, %v504
        %v506 = vrot.slane %v498, %v505
        %v508 = vunpack.c.l.s4 1934713408
        %v509 = vunpack.c.0.s8 %v508
        %v510 = vlaneseq
        %v511 = vshrl.u32 %v510, 7
        %v512 = vsub.s32 %v509, %v511
        %v513 = vrot.slane %v499, %v512
        %v514 = vcombine.low %v449, %v465
        %v515 = vcombine.high %v449, %v465
        %v517 = vunpack.c.l.s4 1934713408
        %v518 = vunpack.c.0.s8 %v517
        %v519 = vlaneseq
        %v520 = vshrl.u32 %v519, 7
        %v521 = vsub.s32 %v518, %v520
        %v522 = vrot.slane %v514, %v521
        %v524 = vunpack.c.l.s4 1934713408
        %v525 = vunpack.c.0.s8 %v524
        %v526 = vlaneseq
        %v527 = vshrl.u32 %v526, 7
        %v528 = vsub.s32 %v525, %v527
        %v529 = vrot.slane %v515, %v528
        %v530 = vcombine.low %v474, %v506
        %v531 = vcombine.high %v474, %v506
        %v532 = vcombine.low %v481, %v513
        %v533 = vcombine.high %v481, %v513
        %v534 = vcombine.low %v490, %v522
        %v535 = vcombine.high %v490, %v522
        %v536 = vcombine.low %v497, %v529
        %v537 = vcombine.high %v497, %v529
        %v538 = vcombine.low %v386, %v390
        %v539 = vcombine.high %v386, %v390
        %v541 = vunpack.c.l.s4 1983009808
        %v542 = vunpack.c.0.s8 %v541
        %v543 = vlaneseq
        %v544 = vshrl.u32 %v543, 7
        %v545 = vsub.s32 %v542, %v544
        %v546 = vrot.slane %v538, %v545
        %v548 = vunpack.c.l.s4 1983009808
        %v549 = vunpack.c.0.s8 %v548
        %v550 = vlaneseq
        %v551 = vshrl.u32 %v550, 7
        %v552 = vsub.s32 %v549, %v551
        %v553 = vrot.slane %v539, %v552
        %v554 = vcombine.low %v388, %v392
        %v555 = vcombine.high %v388, %v392
        %v557 = vunpack.c.l.s4 1983009808
        %v558 = vunpack.c.0.s8 %v557
        %v559 = vlaneseq
        %v560 = vshrl.u32 %v559, 7
        %v561 = vsub.s32 %v558, %v560
        %v562 = vrot.slane %v554, %v561
        %v564 = vunpack.c.l.s4 1983009808
        %v565 = vunpack.c.0.s8 %v564
        %v566 = vlaneseq
        %v567 = vshrl.u32 %v566, 7
        %v568 = vsub.s32 %v565, %v567
        %v569 = vrot.slane %v555, %v568
        %v570 = vcombine.low %v394, %v398
        %v571 = vcombine.high %v394, %v398
        %v573 = vunpack.c.l.s4 1983009808
        %v574 = vunpack.c.0.s8 %v573
        %v575 = vlaneseq
        %v576 = vshrl.u32 %v575, 7
        %v577 = vsub.s32 %v574, %v576
        %v578 = vrot.slane %v570, %v577
        %v580 = vunpack.c.l.s4 1983009808
        %v581 = vunpack.c.0.s8 %v580
        %v582 = vlaneseq
        %v583 = vshrl.u32 %v582, 7
        %v584 = vsub.s32 %v581, %v583
        %v585 = vrot.slane %v571, %v584
        %v586 = vcombine.low %v396, %v400
        %v587 = vcombine.high %v396, %v400
        %v589 = vunpack.c.l.s4 1983009808
        %v590 = vunpack.c.0.s8 %v589
        %v591 = vlaneseq
        %v592 = vshrl.u32 %v591, 7
        %v593 = vsub.s32 %v590, %v592
        %v594 = vrot.slane %v586, %v593
        %v596 = vunpack.c.l.s4 1983009808
        %v597 = vunpack.c.0.s8 %v596
        %v598 = vlaneseq
        %v599 = vshrl.u32 %v598, 7
        %v600 = vsub.s32 %v597, %v599
        %v601 = vrot.slane %v587, %v600
        %v602 = vcombine.low %v546, %v562
        %v603 = vcombine.high %v546, %v562
        %v605 = vunpack.c.l.s4 1934713408
        %v606 = vunpack.c.0.s8 %v605
        %v607 = vlaneseq
        %v608 = vshrl.u32 %v607, 7
        %v609 = vsub.s32 %v606, %v608
        %v610 = vrot.slane %v602, %v609
        %v612 = vunpack.c.l.s4 1934713408
        %v613 = vunpack.c.0.s8 %v612
        %v614 = vlaneseq
        %v615 = vshrl.u32 %v614, 7
        %v616 = vsub.s32 %v613, %v615
        %v617 = vrot.slane %v603, %v616
        %v618 = vcombine.low %v553, %v569
        %v619 = vcombine.high %v553, %v569
        %v621 = vunpack.c.l.s4 1934713408
        %v622 = vunpack.c.0.s8 %v621
        %v623 = vlaneseq
        %v624 = vshrl.u32 %v623, 7
        %v625 = vsub.s32 %v622, %v624
        %v626 = vrot.slane %v618, %v625
        %v628 = vunpack.c.l.s4 1934713408
        %v629 = vunpack.c.0.s8 %v628
        %v630 = vlaneseq
        %v631 = vshrl.u32 %v630, 7
        %v632 = vsub.s32 %v629, %v631
        %v633 = vrot.slane %v619, %v632
        %v634 = vcombine.low %v578, %v594
        %v635 = vcombine.high %v578, %v594
        %v637 = vunpack.c.l.s4 1934713408
        %v638 = vunpack.c.0.s8 %v637
        %v639 = vlaneseq
        %v640 = vshrl.u32 %v639, 7
        %v641 = vsub.s32 %v638, %v640
        %v642 = vrot.slane %v634, %v641
        %v644 = vunpack.c.l.s4 1934713408
        %v645 = vunpack.c.0.s8 %v644
        %v646 = vlaneseq
        %v647 = vshrl.u32 %v646, 7
        %v648 = vsub.s32 %v645, %v647
        %v649 = vrot.slane %v635, %v648
        %v650 = vcombine.low %v585, %v601
        %v651 = vcombine.high %v585, %v601
        %v653 = vunpack.c.l.s4 1934713408
        %v654 = vunpack.c.0.s8 %v653
        %v655 = vlaneseq
        %v656 = vshrl.u32 %v655, 7
        %v657 = vsub.s32 %v654, %v656
        %v658 = vrot.slane %v650, %v657
        %v660 = vunpack.c.l.s4 1934713408
        %v661 = vunpack.c.0.s8 %v660
        %v662 = vlaneseq
        %v663 = vshrl.u32 %v662, 7
        %v664 = vsub.s32 %v661, %v663
        %v665 = vrot.slane %v651, %v664
        %v666 = vcombine.low %v610, %v642
        %v667 = vcombine.high %v610, %v642
        %v668 = vcombine.low %v617, %v649
        %v669 = vcombine.high %v617, %v649
        %v670 = vcombine.low %v626, %v658
        %v671 = vcombine.high %v626, %v658
        %v672 = vcombine.low %v633, %v665
        %v673 = vcombine.high %v633, %v665
        %v674 = vcombine.low %v530, %v532
        %v675 = vcombine.high %v530, %v532
        %v677 = vunpack.c.l.s4 1983009808
        %v678 = vunpack.c.0.s8 %v677
        %v679 = vlaneseq
        %v680 = vshrl.u32 %v679, 7
        %v681 = vsub.s32 %v678, %v680
        %v682 = vrot.slane %v674, %v681
        %v684 = vunpack.c.l.s4 1983009808
        %v685 = vunpack.c.0.s8 %v684
        %v686 = vlaneseq
        %v687 = vshrl.u32 %v686, 7
        %v688 = vsub.s32 %v685, %v687
        %v689 = vrot.slane %v675, %v688
        %v690 = vcombine.low %v531, %v533
        %v691 = vcombine.high %v531, %v533
        %v693 = vunpack.c.l.s4 1983009808
        %v694 = vunpack.c.0.s8 %v693
        %v695 = vlaneseq
        %v696 = vshrl.u32 %v695, 7
        %v697 = vsub.s32 %v694, %v696
        %v698 = vrot.slane %v690, %v697
        %v700 = vunpack.c.l.s4 1983009808
        %v701 = vunpack.c.0.s8 %v700
        %v702 = vlaneseq
        %v703 = vshrl.u32 %v702, 7
        %v704 = vsub.s32 %v701, %v703
        %v705 = vrot.slane %v691, %v704
        %v706 = vcombine.low %v534, %v536
        %v707 = vcombine.high %v534, %v536
        %v709 = vunpack.c.l.s4 1983009808
        %v710 = vunpack.c.0.s8 %v709
        %v711 = vlaneseq
        %v712 = vshrl.u32 %v711, 7
        %v713 = vsub.s32 %v710, %v712
        %v714 = vrot.slane %v706, %v713
        %v716 = vunpack.c.l.s4 1983009808
        %v717 = vunpack.c.0.s8 %v716
        %v718 = vlaneseq
        %v719 = vshrl.u32 %v718, 7
        %v720 = vsub.s32 %v717, %v719
        %v721 = vrot.slane %v707, %v720
        %v722 = vcombine.low %v535, %v537
        %v723 = vcombine.high %v535, %v537
        %v725 = vunpack.c.l.s4 1983009808
        %v726 = vunpack.c.0.s8 %v725
        %v727 = vlaneseq
        %v728 = vshrl.u32 %v727, 7
        %v729 = vsub.s32 %v726, %v728
        %v730 = vrot.slane %v722, %v729
        %v732 = vunpack.c.l.s4 1983009808
        %v733 = vunpack.c.0.s8 %v732
        %v734 = vlaneseq
        %v735 = vshrl.u32 %v734, 7
        %v736 = vsub.s32 %v733, %v735
        %v737 = vrot.slane %v723, %v736
        %v738 = vcombine.low %v682, %v698
        %v739 = vcombine.high %v682, %v698
        %v741 = vunpack.c.l.s4 1934713408
        %v742 = vunpack.c.0.s8 %v741
        %v743 = vlaneseq
        %v744 = vshrl.u32 %v743, 7
        %v745 = vsub.s32 %v742, %v744
        %v746 = vrot.slane %v738, %v745
        %v748 = vunpack.c.l.s4 1934713408
        %v749 = vunpack.c.0.s8 %v748
        %v750 = vlaneseq
        %v751 = vshrl.u32 %v750, 7
        %v752 = vsub.s32 %v749, %v751
        %v753 = vrot.slane %v739, %v752
        %v754 = vcombine.low %v689, %v705
        %v755 = vcombine.high %v689, %v705
        %v757 = vunpack.c.l.s4 1934713408
        %v758 = vunpack.c.0.s8 %v757
        %v759 = vlaneseq
        %v760 = vshrl.u32 %v759, 7
        %v761 = vsub.s32 %v758, %v760
        %v762 = vrot.slane %v754, %v761
        %v764 = vunpack.c.l.s4 1934713408
        %v765 = vunpack.c.0.s8 %v764
        %v766 = vlaneseq
        %v767 = vshrl.u32 %v766, 7
        %v768 = vsub.s32 %v765, %v767
        %v769 = vrot.slane %v755, %v768
        %v770 = vcombine.low %v714, %v730
        %v771 = vcombine.high %v714, %v730
        %v773 = vunpack.c.l.s4 1934713408
        %v774 = vunpack.c.0.s8 %v773
        %v775 = vlaneseq
        %v776 = vshrl.u32 %v775, 7
        %v777 = vsub.s32 %v774, %v776
        %v778 = vrot.slane %v770, %v777
        %v780 = vunpack.c.l.s4 1934713408
        %v781 = vunpack.c.0.s8 %v780
        %v782 = vlaneseq
        %v783 = vshrl.u32 %v782, 7
        %v784 = vsub.s32 %v781, %v783
        %v785 = vrot.slane %v771, %v784
        %v786 = vcombine.low %v721, %v737
        %v787 = vcombine.high %v721, %v737
        %v789 = vunpack.c.l.s4 1934713408
        %v790 = vunpack.c.0.s8 %v789
        %v791 = vlaneseq
        %v792 = vshrl.u32 %v791, 7
        %v793 = vsub.s32 %v790, %v792
        %v794 = vrot.slane %v786, %v793
        %v796 = vunpack.c.l.s4 1934713408
        %v797 = vunpack.c.0.s8 %v796
        %v798 = vlaneseq
        %v799 = vshrl.u32 %v798, 7
        %v800 = vsub.s32 %v797, %v799
        %v801 = vrot.slane %v787, %v800
        %v802 = vcombine.low %v746, %v778
        %v803 = vcombine.high %v746, %v778
        %v804 = vcombine.low %v753, %v785
        %v805 = vcombine.high %v753, %v785
        %v806 = vcombine.low %v762, %v794
        %v807 = vcombine.high %v762, %v794
        %v808 = vcombine.low %v769, %v801
        %v809 = vcombine.high %v769, %v801
        %v810 = vcombine.low %v666, %v668
        %v811 = vcombine.high %v666, %v668
        %v813 = vunpack.c.l.s4 1983009808
        %v814 = vunpack.c.0.s8 %v813
        %v815 = vlaneseq
        %v816 = vshrl.u32 %v815, 7
        %v817 = vsub.s32 %v814, %v816
        %v818 = vrot.slane %v810, %v817
        %v820 = vunpack.c.l.s4 1983009808
        %v821 = vunpack.c.0.s8 %v820
        %v822 = vlaneseq
        %v823 = vshrl.u32 %v822, 7
        %v824 = vsub.s32 %v821, %v823
        %v825 = vrot.slane %v811, %v824
        %v826 = vcombine.low %v667, %v669
        %v827 = vcombine.high %v667, %v669
        %v829 = vunpack.c.l.s4 1983009808
        %v830 = vunpack.c.0.s8 %v829
        %v831 = vlaneseq
        %v832 = vshrl.u32 %v831, 7
        %v833 = vsub.s32 %v830, %v832
        %v834 = vrot.slane %v826, %v833
        %v836 = vunpack.c.l.s4 1983009808
        %v837 = vunpack.c.0.s8 %v836
        %v838 = vlaneseq
        %v839 = vshrl.u32 %v838, 7
        %v840 = vsub.s32 %v837, %v839
        %v841 = vrot.slane %v827, %v840
        %v842 = vcombine.low %v670, %v672
        %v843 = vcombine.high %v670, %v672
        %v845 = vunpack.c.l.s4 1983009808
        %v846 = vunpack.c.0.s8 %v845
        %v847 = vlaneseq
        %v848 = vshrl.u32 %v847, 7
        %v849 = vsub.s32 %v846, %v848
        %v850 = vrot.slane %v842, %v849
        %v852 = vunpack.c.l.s4 1983009808
        %v853 = vunpack.c.0.s8 %v852
        %v854 = vlaneseq
        %v855 = vshrl.u32 %v854, 7
        %v856 = vsub.s32 %v853, %v855
        %v857 = vrot.slane %v843, %v856
        %v858 = vcombine.low %v671, %v673
        %v859 = vcombine.high %v671, %v673
        %v861 = vunpack.c.l.s4 1983009808
        %v862 = vunpack.c.0.s8 %v861
        %v863 = vlaneseq
        %v864 = vshrl.u32 %v863, 7
        %v865 = vsub.s32 %v862, %v864
        %v866 = vrot.slane %v858, %v865
        %v868 = vunpack.c.l.s4 1983009808
        %v869 = vunpack.c.0.s8 %v868
        %v870 = vlaneseq
        %v871 = vshrl.u32 %v870, 7
        %v872 = vsub.s32 %v869, %v871
        %v873 = vrot.slane %v859, %v872
        %v874 = vcombine.low %v818, %v834
        %v875 = vcombine.high %v818, %v834
        %v877 = vunpack.c.l.s4 1934713408
        %v878 = vunpack.c.0.s8 %v877
        %v879 = vlaneseq
        %v880 = vshrl.u32 %v879, 7
        %v881 = vsub.s32 %v878, %v880
        %v882 = vrot.slane %v874, %v881
        %v884 = vunpack.c.l.s4 1934713408
        %v885 = vunpack.c.0.s8 %v884
        %v886 = vlaneseq
        %v887 = vshrl.u32 %v886, 7
        %v888 = vsub.s32 %v885, %v887
        %v889 = vrot.slane %v875, %v888
        %v890 = vcombine.low %v825, %v841
        %v891 = vcombine.high %v825, %v841
        %v893 = vunpack.c.l.s4 1934713408
        %v894 = vunpack.c.0.s8 %v893
        %v895 = vlaneseq
        %v896 = vshrl.u32 %v895, 7
        %v897 = vsub.s32 %v894, %v896
        %v898 = vrot.slane %v890, %v897
        %v900 = vunpack.c.l.s4 1934713408
        %v901 = vunpack.c.0.s8 %v900
        %v902 = vlaneseq
        %v903 = vshrl.u32 %v902, 7
        %v904 = vsub.s32 %v901, %v903
        %v905 = vrot.slane %v891, %v904
        %v906 = vcombine.low %v850, %v866
        %v907 = vcombine.high %v850, %v866
        %v909 = vunpack.c.l.s4 1934713408
        %v910 = vunpack.c.0.s8 %v909
        %v911 = vlaneseq
        %v912 = vshrl.u32 %v911, 7
        %v913 = vsub.s32 %v910, %v912
        %v914 = vrot.slane %v906, %v913
        %v916 = vunpack.c.l.s4 1934713408
        %v917 = vunpack.c.0.s8 %v916
        %v918 = vlaneseq
        %v919 = vshrl.u32 %v918, 7
        %v920 = vsub.s32 %v917, %v919
        %v921 = vrot.slane %v907, %v920
        %v922 = vcombine.low %v857, %v873
        %v923 = vcombine.high %v857, %v873
        %v925 = vunpack.c.l.s4 1934713408
        %v926 = vunpack.c.0.s8 %v925
        %v927 = vlaneseq
        %v928 = vshrl.u32 %v927, 7
        %v929 = vsub.s32 %v926, %v928
        %v930 = vrot.slane %v922, %v929
        %v932 = vunpack.c.l.s4 1934713408
        %v933 = vunpack.c.0.s8 %v932
        %v934 = vlaneseq
        %v935 = vshrl.u32 %v934, 7
        %v936 = vsub.s32 %v933, %v935
        %v937 = vrot.slane %v923, %v936
        %v938 = vcombine.low %v882, %v914
        %v939 = vcombine.high %v882, %v914
        %v940 = vcombine.low %v889, %v921
        %v941 = vcombine.high %v889, %v921
        %v942 = vcombine.low %v898, %v930
        %v943 = vcombine.high %v898, %v930
        %v944 = vcombine.low %v905, %v937
        %v945 = vcombine.high %v905, %v937
        %v946 = vcombine.low 0.0, 0.0
        %v947 = vcombine.high 0.0, 0.0
        %v949 = vunpack.c.l.s4 1983009808
        %v950 = vunpack.c.0.s8 %v949
        %v951 = vlaneseq
        %v952 = vshrl.u32 %v951, 7
        %v953 = vsub.s32 %v950, %v952
        %v954 = vrot.slane %v946, %v953
        %v956 = vunpack.c.l.s4 1983009808
        %v957 = vunpack.c.0.s8 %v956
        %v958 = vlaneseq
        %v959 = vshrl.u32 %v958, 7
        %v960 = vsub.s32 %v957, %v959
        %v961 = vrot.slane %v947, %v960
        %v962 = vcombine.low %v954, %v954
        %v963 = vcombine.high %v954, %v954
        %v965 = vunpack.c.l.s4 1934713408
        %v966 = vunpack.c.0.s8 %v965
        %v967 = vlaneseq
        %v968 = vshrl.u32 %v967, 7
        %v969 = vsub.s32 %v966, %v968
        %v970 = vrot.slane %v962, %v969
        %v972 = vunpack.c.l.s4 1934713408
        %v973 = vunpack.c.0.s8 %v972
        %v974 = vlaneseq
        %v975 = vshrl.u32 %v974, 7
        %v976 = vsub.s32 %v973, %v975
        %v977 = vrot.slane %v963, %v976
        %v978 = vcombine.low %v961, %v961
        %v979 = vcombine.high %v961, %v961
        %v981 = vunpack.c.l.s4 1934713408
        %v982 = vunpack.c.0.s8 %v981
        %v983 = vlaneseq
        %v984 = vshrl.u32 %v983, 7
        %v985 = vsub.s32 %v982, %v984
        %v986 = vrot.slane %v978, %v985
        %v988 = vunpack.c.l.s4 1934713408
        %v989 = vunpack.c.0.s8 %v988
        %v990 = vlaneseq
        %v991 = vshrl.u32 %v990, 7
        %v992 = vsub.s32 %v989, %v991
        %v993 = vrot.slane %v979, %v992
        %v994 = vcombine.low %v970, %v970
        %v995 = vcombine.high %v970, %v970
        %v996 = vcombine.low %v977, %v977
        %v997 = vcombine.high %v977, %v977
        %v998 = vcombine.low %v986, %v986
        %v999 = vcombine.high %v986, %v986
        %v1000 = vcombine.low %v993, %v993
        %v1001 = vcombine.high %v993, %v993
        %vm1002 = vcmask 130048
        %v1004 = vsel %vm1002, %v401, 0
        %1006 = vmatprep.subr.mxu0 0.0
        %1007 = vmatpush1.msra.mxu0 0.0
        %1008 = vmatprep.subr.mxu0 0.0
        %1009 = vmatpush1.msra.mxu0 0.0
        %1010 = vmatprep.subr.mxu0 0.0
        %1011 = vmatpush1.msra.mxu0 0.0
        %1012 = vmatprep.subr.mxu0 0.0
        %1013 = vmatpush1.msra.mxu0 0.0
        %1014 = vmatprep.subr.mxu0 0.0
        %1015 = vmatpush1.msra.mxu0 0.0
        %1016 = vmatprep.subr.mxu0 0.0
        %1017 = vmatpush1.msra.mxu0 0.0
        %1018 = vmatprep.subr.mxu0 0.0
        %1019 = vmatpush1.msra.mxu0 0.0
        %1020 = vmatprep.subr.mxu0 0.0
        %1021 = vmatpush1.msra.mxu0 0.0
        %1022 = vmatprep.subr.mxu0 0.0
        %1023 = vmatpush1.msra.mxu0 0.0
        %1024 = vmatprep.subr.mxu0 0.0
        %1025 = vmatpush1.msra.mxu0 0.0
        %1026 = vmatprep.subr.mxu0 0.0
        %1027 = vmatpush1.msra.mxu0 0.0
        %1028 = vmatprep.subr.mxu0 0.0
        %1029 = vmatpush1.msra.mxu0 0.0
        %1030 = vmatprep.subr.mxu0 0.0
        %1031 = vmatpush1.msra.mxu0 0.0
        %1032 = vmatprep.subr.mxu0 0.0
        %1033 = vmatpush1.msra.mxu0 0.0
        %1034 = vmatprep.subr.mxu0 %v939
        %1035 = vmatpush1.msra.mxu0 %v938
        %1036 = vmatprep.subr.mxu0 %v803
        %1037 = vmatpush1.msra.mxu0 %v802
        %1038 = vmatprep.subr.mxu0 0.0
        %1039 = vmatpush2.msra.mxu0 0.0
        %1040 = vmatprep.subr.mxu0 0.0
        %1041 = vmatpush2.msra.mxu0 0.0
        %1042 = vmatprep.subr.mxu0 0.0
        %1043 = vmatpush2.msra.mxu0 0.0
        %1044 = vmatprep.subr.mxu0 0.0
        %1045 = vmatpush2.msra.mxu0 0.0
        %1046 = vmatprep.subr.mxu0 0.0
        %1047 = vmatpush2.msra.mxu0 0.0
        %1048 = vmatprep.subr.mxu0 0.0
        %1049 = vmatpush2.msra.mxu0 0.0
        %1050 = vmatprep.subr.mxu0 0.0
        %1051 = vmatpush2.msra.mxu0 0.0
        %1052 = vmatprep.subr.mxu0 0.0
        %1053 = vmatpush2.msra.mxu0 0.0
        %1054 = vmatprep.subr.mxu0 0.0
        %1055 = vmatpush2.msra.mxu0 0.0
        %1056 = vmatprep.subr.mxu0 0.0
        %1057 = vmatpush2.msra.mxu0 0.0
        %1058 = vmatprep.subr.mxu0 0.0
        %1059 = vmatpush2.msra.mxu0 0.0
        %1060 = vmatprep.subr.mxu0 0.0
        %1061 = vmatpush2.msra.mxu0 0.0
        %1062 = vmatprep.subr.mxu0 0.0
        %1063 = vmatpush2.msra.mxu0 0.0
        %1064 = vmatprep.subr.mxu0 0.0
        %1065 = vmatpush2.msra.mxu0 0.0
        %1066 = vmatprep.subr.mxu0 0.0
        %1067 = vmatpush2.msra.mxu0 0.0
        %1068 = vmatprep.subr.mxu0 0.0
        %1069 = vmatpush2.msra.mxu0 0.0
        %1070 = vmatprep.mubr.f32.mxu0 0.0
        %1071 = vmatmul.mubr.f32.gmra.mxu0 %v1004
        %v1072 = vpop.f32.mrf.mxu0
        %v1073 = vadd.f32 %v994, %v1072
        %v1074 = vpop.f32.mrf.mxu0
        %v1075 = vadd.f32 %v995, %v1074
        %1076 = vdwg.mxu0
        %1077 = vmatprep.subr.mxu0 0.0
        %1078 = vmatpush1.msra.mxu0 0.0
        %1079 = vmatprep.subr.mxu0 0.0
        %1080 = vmatpush1.msra.mxu0 0.0
        %1081 = vmatprep.subr.mxu0 0.0
        %1082 = vmatpush1.msra.mxu0 0.0
        %1083 = vmatprep.subr.mxu0 0.0
        %1084 = vmatpush1.msra.mxu0 0.0
        %1085 = vmatprep.subr.mxu0 0.0
        %1086 = vmatpush1.msra.mxu0 0.0
        %1087 = vmatprep.subr.mxu0 0.0
        %1088 = vmatpush1.msra.mxu0 0.0
        %1089 = vmatprep.subr.mxu0 0.0
        %1090 = vmatpush1.msra.mxu0 0.0
        %1091 = vmatprep.subr.mxu0 0.0
        %1092 = vmatpush1.msra.mxu0 0.0
        %1093 = vmatprep.subr.mxu0 0.0
        %1094 = vmatpush1.msra.mxu0 0.0
        %1095 = vmatprep.subr.mxu0 0.0
        %1096 = vmatpush1.msra.mxu0 0.0
        %1097 = vmatprep.subr.mxu0 0.0
        %1098 = vmatpush1.msra.mxu0 0.0
        %1099 = vmatprep.subr.mxu0 0.0
        %1100 = vmatpush1.msra.mxu0 0.0
        %1101 = vmatprep.subr.mxu0 0.0
        %1102 = vmatpush1.msra.mxu0 0.0
        %1103 = vmatprep.subr.mxu0 0.0
        %1104 = vmatpush1.msra.mxu0 0.0
        %1105 = vmatprep.subr.mxu0 %v941
        %1106 = vmatpush1.msra.mxu0 %v940
        %1107 = vmatprep.subr.mxu0 %v805
        %1108 = vmatpush1.msra.mxu0 %v804
        %1109 = vmatprep.subr.mxu0 0.0
        %1110 = vmatpush2.msra.mxu0 0.0
        %1111 = vmatprep.subr.mxu0 0.0
        %1112 = vmatpush2.msra.mxu0 0.0
        %1113 = vmatprep.subr.mxu0 0.0
        %1114 = vmatpush2.msra.mxu0 0.0
        %1115 = vmatprep.subr.mxu0 0.0
        %1116 = vmatpush2.msra.mxu0 0.0
        %1117 = vmatprep.subr.mxu0 0.0
        %1118 = vmatpush2.msra.mxu0 0.0
        %1119 = vmatprep.subr.mxu0 0.0
        %1120 = vmatpush2.msra.mxu0 0.0
        %1121 = vmatprep.subr.mxu0 0.0
        %1122 = vmatpush2.msra.mxu0 0.0
        %1123 = vmatprep.subr.mxu0 0.0
        %1124 = vmatpush2.msra.mxu0 0.0
        %1125 = vmatprep.subr.mxu0 0.0
        %1126 = vmatpush2.msra.mxu0 0.0
        %1127 = vmatprep.subr.mxu0 0.0
        %1128 = vmatpush2.msra.mxu0 0.0
        %1129 = vmatprep.subr.mxu0 0.0
        %1130 = vmatpush2.msra.mxu0 0.0
        %1131 = vmatprep.subr.mxu0 0.0
        %1132 = vmatpush2.msra.mxu0 0.0
        %1133 = vmatprep.subr.mxu0 0.0
        %1134 = vmatpush2.msra.mxu0 0.0
        %1135 = vmatprep.subr.mxu0 0.0
        %1136 = vmatpush2.msra.mxu0 0.0
        %1137 = vmatprep.subr.mxu0 0.0
        %1138 = vmatpush2.msra.mxu0 0.0
        %1139 = vmatprep.subr.mxu0 0.0
        %1140 = vmatpush2.msra.mxu0 0.0
        %1141 = vmatprep.mubr.f32.mxu0 0.0
        %1142 = vmatmul.mubr.f32.gmra.mxu0 %v1004
        %v1143 = vpop.f32.mrf.mxu0
        %v1144 = vadd.f32 %v996, %v1143
        %v1145 = vpop.f32.mrf.mxu0
        %v1146 = vadd.f32 %v997, %v1145
        %1147 = vdwg.mxu0
        %1148 = vmatprep.subr.mxu0 0.0
        %1149 = vmatpush1.msra.mxu0 0.0
        %1150 = vmatprep.subr.mxu0 0.0
        %1151 = vmatpush1.msra.mxu0 0.0
        %1152 = vmatprep.subr.mxu0 0.0
        %1153 = vmatpush1.msra.mxu0 0.0
        %1154 = vmatprep.subr.mxu0 0.0
        %1155 = vmatpush1.msra.mxu0 0.0
        %1156 = vmatprep.subr.mxu0 0.0
        %1157 = vmatpush1.msra.mxu0 0.0
        %1158 = vmatprep.subr.mxu0 0.0
        %1159 = vmatpush1.msra.mxu0 0.0
        %1160 = vmatprep.subr.mxu0 0.0
        %1161 = vmatpush1.msra.mxu0 0.0
        %1162 = vmatprep.subr.mxu0 0.0
        %1163 = vmatpush1.msra.mxu0 0.0
        %1164 = vmatprep.subr.mxu0 0.0
        %1165 = vmatpush1.msra.mxu0 0.0
        %1166 = vmatprep.subr.mxu0 0.0
        %1167 = vmatpush1.msra.mxu0 0.0
        %1168 = vmatprep.subr.mxu0 0.0
        %1169 = vmatpush1.msra.mxu0 0.0
        %1170 = vmatprep.subr.mxu0 0.0
        %1171 = vmatpush1.msra.mxu0 0.0
        %1172 = vmatprep.subr.mxu0 0.0
        %1173 = vmatpush1.msra.mxu0 0.0
        %1174 = vmatprep.subr.mxu0 0.0
        %1175 = vmatpush1.msra.mxu0 0.0
        %1176 = vmatprep.subr.mxu0 %v943
        %1177 = vmatpush1.msra.mxu0 %v942
        %1178 = vmatprep.subr.mxu0 %v807
        %1179 = vmatpush1.msra.mxu0 %v806
        %1180 = vmatprep.subr.mxu0 0.0
        %1181 = vmatpush2.msra.mxu0 0.0
        %1182 = vmatprep.subr.mxu0 0.0
        %1183 = vmatpush2.msra.mxu0 0.0
        %1184 = vmatprep.subr.mxu0 0.0
        %1185 = vmatpush2.msra.mxu0 0.0
        %1186 = vmatprep.subr.mxu0 0.0
        %1187 = vmatpush2.msra.mxu0 0.0
        %1188 = vmatprep.subr.mxu0 0.0
        %1189 = vmatpush2.msra.mxu0 0.0
        %1190 = vmatprep.subr.mxu0 0.0
        %1191 = vmatpush2.msra.mxu0 0.0
        %1192 = vmatprep.subr.mxu0 0.0
        %1193 = vmatpush2.msra.mxu0 0.0
        %1194 = vmatprep.subr.mxu0 0.0
        %1195 = vmatpush2.msra.mxu0 0.0
        %1196 = vmatprep.subr.mxu0 0.0
        %1197 = vmatpush2.msra.mxu0 0.0
        %1198 = vmatprep.subr.mxu0 0.0
        %1199 = vmatpush2.msra.mxu0 0.0
        %1200 = vmatprep.subr.mxu0 0.0
        %1201 = vmatpush2.msra.mxu0 0.0
        %1202 = vmatprep.subr.mxu0 0.0
        %1203 = vmatpush2.msra.mxu0 0.0
        %1204 = vmatprep.subr.mxu0 0.0
        %1205 = vmatpush2.msra.mxu0 0.0
        %1206 = vmatprep.subr.mxu0 0.0
        %1207 = vmatpush2.msra.mxu0 0.0
        %1208 = vmatprep.subr.mxu0 0.0
        %1209 = vmatpush2.msra.mxu0 0.0
        %1210 = vmatprep.subr.mxu0 0.0
        %1211 = vmatpush2.msra.mxu0 0.0
        %1212 = vmatprep.mubr.f32.mxu0 0.0
        %1213 = vmatmul.mubr.f32.gmra.mxu0 %v1004
        %v1214 = vpop.f32.mrf.mxu0
        %v1215 = vadd.f32 %v998, %v1214
        %v1216 = vpop.f32.mrf.mxu0
        %v1217 = vadd.f32 %v999, %v1216
        %1218 = vdwg.mxu0
        %1219 = vmatprep.subr.mxu0 0.0
        %1220 = vmatpush1.msra.mxu0 0.0
        %1221 = vmatprep.subr.mxu0 0.0
        %1222 = vmatpush1.msra.mxu0 0.0
        %1223 = vmatprep.subr.mxu0 0.0
        %1224 = vmatpush1.msra.mxu0 0.0
        %1225 = vmatprep.subr.mxu0 0.0
        %1226 = vmatpush1.msra.mxu0 0.0
        %1227 = vmatprep.subr.mxu0 0.0
        %1228 = vmatpush1.msra.mxu0 0.0
        %1229 = vmatprep.subr.mxu0 0.0
        %1230 = vmatpush1.msra.mxu0 0.0
        %1231 = vmatprep.subr.mxu0 0.0
        %1232 = vmatpush1.msra.mxu0 0.0
        %1233 = vmatprep.subr.mxu0 0.0
        %1234 = vmatpush1.msra.mxu0 0.0
        %1235 = vmatprep.subr.mxu0 0.0
        %1236 = vmatpush1.msra.mxu0 0.0
        %1237 = vmatprep.subr.mxu0 0.0
        %1238 = vmatpush1.msra.mxu0 0.0
        %1239 = vmatprep.subr.mxu0 0.0
        %1240 = vmatpush1.msra.mxu0 0.0
        %1241 = vmatprep.subr.mxu0 0.0
        %1242 = vmatpush1.msra.mxu0 0.0
        %1243 = vmatprep.subr.mxu0 0.0
        %1244 = vmatpush1.msra.mxu0 0.0
        %1245 = vmatprep.subr.mxu0 0.0
        %1246 = vmatpush1.msra.mxu0 0.0
        %1247 = vmatprep.subr.mxu0 %v945
        %1248 = vmatpush1.msra.mxu0 %v944
        %1249 = vmatprep.subr.mxu0 %v809
        %1250 = vmatpush1.msra.mxu0 %v808
        %1251 = vmatprep.subr.mxu0 0.0
        %1252 = vmatpush2.msra.mxu0 0.0
        %1253 = vmatprep.subr.mxu0 0.0
        %1254 = vmatpush2.msra.mxu0 0.0
        %1255 = vmatprep.subr.mxu0 0.0
        %1256 = vmatpush2.msra.mxu0 0.0
        %1257 = vmatprep.subr.mxu0 0.0
        %1258 = vmatpush2.msra.mxu0 0.0
        %1259 = vmatprep.subr.mxu0 0.0
        %1260 = vmatpush2.msra.mxu0 0.0
        %1261 = vmatprep.subr.mxu0 0.0
        %1262 = vmatpush2.msra.mxu0 0.0
        %1263 = vmatprep.subr.mxu0 0.0
        %1264 = vmatpush2.msra.mxu0 0.0
        %1265 = vmatprep.subr.mxu0 0.0
        %1266 = vmatpush2.msra.mxu0 0.0
        %1267 = vmatprep.subr.mxu0 0.0
        %1268 = vmatpush2.msra.mxu0 0.0
        %1269 = vmatprep.subr.mxu0 0.0
        %1270 = vmatpush2.msra.mxu0 0.0
        %1271 = vmatprep.subr.mxu0 0.0
        %1272 = vmatpush2.msra.mxu0 0.0
        %1273 = vmatprep.subr.mxu0 0.0
        %1274 = vmatpush2.msra.mxu0 0.0
        %1275 = vmatprep.subr.mxu0 0.0
        %1276 = vmatpush2.msra.mxu0 0.0
        %1277 = vmatprep.subr.mxu0 0.0
        %1278 = vmatpush2.msra.mxu0 0.0
        %1279 = vmatprep.subr.mxu0 0.0
        %1280 = vmatpush2.msra.mxu0 0.0
        %1281 = vmatprep.subr.mxu0 0.0
        %1282 = vmatpush2.msra.mxu0 0.0
        %1283 = vmatprep.mubr.f32.mxu0 0.0
        %1284 = vmatmul.mubr.f32.gmra.mxu0 %v1004
        %v1285 = vpop.f32.mrf.mxu0
        %v1286 = vadd.f32 %v1000, %v1285
        %v1287 = vpop.f32.mrf.mxu0
        %v1288 = vadd.f32 %v1001, %v1287
        %1289 = vdwg.mxu0
        %v1290 = vcombine.low %v1073, %v1144
        %v1291 = vcombine.high %v1073, %v1144
        %v1293 = vunpack.c.l.s4 1983009808
        %v1294 = vunpack.c.0.s8 %v1293
        %v1295 = vlaneseq
        %v1296 = vshrl.u32 %v1295, 7
        %v1297 = vsub.s32 %v1294, %v1296
        %v1298 = vrot.slane %v1290, %v1297
        %v1300 = vunpack.c.l.s4 1983009808
        %v1301 = vunpack.c.0.s8 %v1300
        %v1302 = vlaneseq
        %v1303 = vshrl.u32 %v1302, 7
        %v1304 = vsub.s32 %v1301, %v1303
        %v1305 = vrot.slane %v1291, %v1304
        %v1306 = vcombine.low %v1075, %v1146
        %v1307 = vcombine.high %v1075, %v1146
        %v1309 = vunpack.c.l.s4 1983009808
        %v1310 = vunpack.c.0.s8 %v1309
        %v1311 = vlaneseq
        %v1312 = vshrl.u32 %v1311, 7
        %v1313 = vsub.s32 %v1310, %v1312
        %v1314 = vrot.slane %v1306, %v1313
        %v1316 = vunpack.c.l.s4 1983009808
        %v1317 = vunpack.c.0.s8 %v1316
        %v1318 = vlaneseq
        %v1319 = vshrl.u32 %v1318, 7
        %v1320 = vsub.s32 %v1317, %v1319
        %v1321 = vrot.slane %v1307, %v1320
        %v1322 = vcombine.low %v1215, %v1286
        %v1323 = vcombine.high %v1215, %v1286
        %v1325 = vunpack.c.l.s4 1983009808
        %v1326 = vunpack.c.0.s8 %v1325
        %v1327 = vlaneseq
        %v1328 = vshrl.u32 %v1327, 7
        %v1329 = vsub.s32 %v1326, %v1328
        %v1330 = vrot.slane %v1322, %v1329
        %v1332 = vunpack.c.l.s4 1983009808
        %v1333 = vunpack.c.0.s8 %v1332
        %v1334 = vlaneseq
        %v1335 = vshrl.u32 %v1334, 7
        %v1336 = vsub.s32 %v1333, %v1335
        %v1337 = vrot.slane %v1323, %v1336
        %v1338 = vcombine.low %v1217, %v1288
        %v1339 = vcombine.high %v1217, %v1288
        %v1341 = vunpack.c.l.s4 1983009808
        %v1342 = vunpack.c.0.s8 %v1341
        %v1343 = vlaneseq
        %v1344 = vshrl.u32 %v1343, 7
        %v1345 = vsub.s32 %v1342, %v1344
        %v1346 = vrot.slane %v1338, %v1345
        %v1348 = vunpack.c.l.s4 1983009808
        %v1349 = vunpack.c.0.s8 %v1348
        %v1350 = vlaneseq
        %v1351 = vshrl.u32 %v1350, 7
        %v1352 = vsub.s32 %v1349, %v1351
        %v1353 = vrot.slane %v1339, %v1352
        %v1354 = vcombine.low %v1298, %v1314
        %v1355 = vcombine.high %v1298, %v1314
        %v1357 = vunpack.c.l.s4 1934713408
        %v1358 = vunpack.c.0.s8 %v1357
        %v1359 = vlaneseq
        %v1360 = vshrl.u32 %v1359, 7
        %v1361 = vsub.s32 %v1358, %v1360
        %v1362 = vrot.slane %v1354, %v1361
        %v1364 = vunpack.c.l.s4 1934713408
        %v1365 = vunpack.c.0.s8 %v1364
        %v1366 = vlaneseq
        %v1367 = vshrl.u32 %v1366, 7
        %v1368 = vsub.s32 %v1365, %v1367
        %v1369 = vrot.slane %v1355, %v1368
        %v1370 = vcombine.low %v1305, %v1321
        %v1371 = vcombine.high %v1305, %v1321
        %v1373 = vunpack.c.l.s4 1934713408
        %v1374 = vunpack.c.0.s8 %v1373
        %v1375 = vlaneseq
        %v1376 = vshrl.u32 %v1375, 7
        %v1377 = vsub.s32 %v1374, %v1376
        %v1378 = vrot.slane %v1370, %v1377
        %v1380 = vunpack.c.l.s4 1934713408
        %v1381 = vunpack.c.0.s8 %v1380
        %v1382 = vlaneseq
        %v1383 = vshrl.u32 %v1382, 7
        %v1384 = vsub.s32 %v1381, %v1383
        %v1385 = vrot.slane %v1371, %v1384
        %v1386 = vcombine.low %v1330, %v1346
        %v1387 = vcombine.high %v1330, %v1346
        %v1389 = vunpack.c.l.s4 1934713408
        %v1390 = vunpack.c.0.s8 %v1389
        %v1391 = vlaneseq
        %v1392 = vshrl.u32 %v1391, 7
        %v1393 = vsub.s32 %v1390, %v1392
        %v1394 = vrot.slane %v1386, %v1393
        %v1396 = vunpack.c.l.s4 1934713408
        %v1397 = vunpack.c.0.s8 %v1396
        %v1398 = vlaneseq
        %v1399 = vshrl.u32 %v1398, 7
        %v1400 = vsub.s32 %v1397, %v1399
        %v1401 = vrot.slane %v1387, %v1400
        %v1402 = vcombine.low %v1337, %v1353
        %v1403 = vcombine.high %v1337, %v1353
        %v1405 = vunpack.c.l.s4 1934713408
        %v1406 = vunpack.c.0.s8 %v1405
        %v1407 = vlaneseq
        %v1408 = vshrl.u32 %v1407, 7
        %v1409 = vsub.s32 %v1406, %v1408
        %v1410 = vrot.slane %v1402, %v1409
        %v1412 = vunpack.c.l.s4 1934713408
        %v1413 = vunpack.c.0.s8 %v1412
        %v1414 = vlaneseq
        %v1415 = vshrl.u32 %v1414, 7
        %v1416 = vsub.s32 %v1413, %v1415
        %v1417 = vrot.slane %v1403, %v1416
        %v1418 = vcombine.low %v1362, %v1394
        %v1419 = vcombine.high %v1362, %v1394
        %v1420 = vcombine.low %v1369, %v1401
        %v1421 = vcombine.high %v1369, %v1401
        %v1422 = vcombine.low %v1378, %v1410
        %v1423 = vcombine.high %v1378, %v1410
        %v1424 = vcombine.low %v1385, %v1417
        %v1425 = vcombine.high %v1385, %v1417
        %p1426 = scmp.eq.s32.totalorder %s30, 0
        // Predicated region
        $region57: #{tpu_custom_call.1} parent=47 // pred_check
          %p1427 = pneg %p1426
        $region58: #{tpu_custom_call.1} parent=47 // pred_check_branch
          %1429 = sbr.rel (%p1427) target = $region60
        $region59: #{tpu_custom_call.1} parent=47 // pred_region
          %1430 = vst [vmem:[#allocation2] sm:$0xff] 0.0
          %1431 = vst [vmem:[#allocation2 + $0x8] sm:$0xff] 0.0
          %1432 = vst [vmem:[#allocation2 + $0x10] sm:$0xff] 0.0
          %1433 = vst [vmem:[#allocation2 + $0x18] sm:$0xff] 0.0
          %1434 = vst [vmem:[#allocation2 + $0x20] sm:$0xff] 0.0
          %1435 = vst [vmem:[#allocation2 + $0x28] sm:$0xff] 0.0
          %1436 = vst [vmem:[#allocation2 + $0x30] sm:$0xff] 0.0
          %1437 = vst [vmem:[#allocation2 + $0x38] sm:$0xff] 0.0
        $region60: #{tpu_custom_call.1} parent=47 // pred_fallthru
          _
        %v1438 = vld [vmem:[#allocation2] sm:$0xff]
        %v1439 = vld [vmem:[#allocation2 + $0x8] sm:$0xff]
        %v1440 = vld [vmem:[#allocation2 + $0x10] sm:$0xff]
        %v1441 = vld [vmem:[#allocation2 + $0x18] sm:$0xff]
        %v1442 = vld [vmem:[#allocation2 + $0x20] sm:$0xff]
        %v1443 = vld [vmem:[#allocation2 + $0x28] sm:$0xff]
        %v1444 = vld [vmem:[#allocation2 + $0x30] sm:$0xff]
        %v1445 = vld [vmem:[#allocation2 + $0x38] sm:$0xff]
        %v1446 = vld [vmem:[#allocation6] sm:$0xff]
        %v1447 = vld [vmem:[#allocation6 + $0x8] sm:$0xff]
        %v1448 = vld [vmem:[#allocation6 + $0x10] sm:$0xff]
        %v1449 = vld [vmem:[#allocation6 + $0x18] sm:$0xff]
        %v1450 = vld [vmem:[#allocation6 + $0x20] sm:$0xff]
        %v1451 = vld [vmem:[#allocation6 + $0x28] sm:$0xff]
        %v1452 = vld [vmem:[#allocation6 + $0x30] sm:$0xff]
        %v1453 = vld [vmem:[#allocation6 + $0x38] sm:$0xff]
        %v1454 = vld [vmem:[#allocation6 + $0x40] sm:$0xff]
        %v1455 = vld [vmem:[#allocation6 + $0x48] sm:$0xff]
        %v1456 = vld [vmem:[#allocation6 + $0x50] sm:$0xff]
        %v1457 = vld [vmem:[#allocation6 + $0x58] sm:$0xff]
        %v1458 = vld [vmem:[#allocation6 + $0x60] sm:$0xff]
        %v1459 = vld [vmem:[#allocation6 + $0x68] sm:$0xff]
        %v1460 = vld [vmem:[#allocation6 + $0x70] sm:$0xff]
        %v1461 = vld [vmem:[#allocation6 + $0x78] sm:$0xff]
        %1462 = vmatprep.subr.mxu0 0.0
        %1463 = vmatpush1.msra.mxu0 %v1461
        %1464 = vmatprep.subr.mxu0 0.0
        %1465 = vmatpush1.msra.mxu0 %v1460
        %1466 = vmatprep.subr.mxu0 0.0
        %1467 = vmatpush1.msra.mxu0 %v1459
        %1468 = vmatprep.subr.mxu0 0.0
        %1469 = vmatpush1.msra.mxu0 %v1458
        %1470 = vmatprep.subr.mxu0 0.0
        %1471 = vmatpush1.msra.mxu0 %v1457
        %1472 = vmatprep.subr.mxu0 0.0
        %1473 = vmatpush1.msra.mxu0 %v1456
        %1474 = vmatprep.subr.mxu0 0.0
        %1475 = vmatpush1.msra.mxu0 %v1455
        %1476 = vmatprep.subr.mxu0 0.0
        %1477 = vmatpush1.msra.mxu0 %v1454
        %1478 = vmatprep.subr.mxu0 0.0
        %1479 = vmatpush1.msra.mxu0 %v1453
        %1480 = vmatprep.subr.mxu0 0.0
        %1481 = vmatpush1.msra.mxu0 %v1452
        %1482 = vmatprep.subr.mxu0 0.0
        %1483 = vmatpush1.msra.mxu0 %v1451
        %1484 = vmatprep.subr.mxu0 0.0
        %1485 = vmatpush1.msra.mxu0 %v1450
        %1486 = vmatprep.subr.mxu0 0.0
        %1487 = vmatpush1.msra.mxu0 %v1449
        %1488 = vmatprep.subr.mxu0 0.0
        %1489 = vmatpush1.msra.mxu0 %v1448
        %1490 = vmatprep.subr.mxu0 0.0
        %1491 = vmatpush1.msra.mxu0 %v1447
        %1492 = vmatprep.subr.mxu0 0.0
        %1493 = vmatpush1.msra.mxu0 %v1446
        %1494 = vmatprep.subr.mxu0 0.0
        %1495 = vmatpush2.msra.mxu0 0.0
        %1496 = vmatprep.subr.mxu0 0.0
        %1497 = vmatpush2.msra.mxu0 0.0
        %1498 = vmatprep.subr.mxu0 0.0
        %1499 = vmatpush2.msra.mxu0 0.0
        %1500 = vmatprep.subr.mxu0 0.0
        %1501 = vmatpush2.msra.mxu0 0.0
        %1502 = vmatprep.subr.mxu0 0.0
        %1503 = vmatpush2.msra.mxu0 0.0
        %1504 = vmatprep.subr.mxu0 0.0
        %1505 = vmatpush2.msra.mxu0 0.0
        %1506 = vmatprep.subr.mxu0 0.0
        %1507 = vmatpush2.msra.mxu0 0.0
        %1508 = vmatprep.subr.mxu0 0.0
        %1509 = vmatpush2.msra.mxu0 0.0
        %1510 = vmatprep.subr.mxu0 0.0
        %1511 = vmatpush2.msra.mxu0 0.0
        %1512 = vmatprep.subr.mxu0 0.0
        %1513 = vmatpush2.msra.mxu0 0.0
        %1514 = vmatprep.subr.mxu0 0.0
        %1515 = vmatpush2.msra.mxu0 0.0
        %1516 = vmatprep.subr.mxu0 0.0
        %1517 = vmatpush2.msra.mxu0 0.0
        %1518 = vmatprep.subr.mxu0 0.0
        %1519 = vmatpush2.msra.mxu0 0.0
        %1520 = vmatprep.subr.mxu0 0.0
        %1521 = vmatpush2.msra.mxu0 0.0
        %1522 = vmatprep.subr.mxu0 0.0
        %1523 = vmatpush2.msra.mxu0 0.0
        %1524 = vmatprep.subr.mxu0 0.0
        %1525 = vmatpush2.msra.mxu0 0.0
        %1526 = vmatprep.mubr.f32.mxu0 0.0
        %1527 = vmatmul.mubr.f32.gmra.mxu0 %v1418
        %v1528 = vpop.f32.mrf.mxu0
        %v1529 = vadd.f32 0.0, %v1528
        %v1530 = vpop.f32.mrf.mxu0
        %1531 = vmatprep.mubr.f32.mxu0 0.0
        %1532 = vmatmul.mubr.f32.gmra.mxu0 %v1419
        %v1533 = vpop.f32.mrf.mxu0
        %v1534 = vadd.f32 0.0, %v1533
        %v1535 = vpop.f32.mrf.mxu0
        %1536 = vmatprep.mubr.f32.mxu0 0.0
        %1537 = vmatmul.mubr.f32.gmra.mxu0 %v1420
        %v1538 = vpop.f32.mrf.mxu0
        %v1539 = vadd.f32 0.0, %v1538
        %v1540 = vpop.f32.mrf.mxu0
        %1541 = vmatprep.mubr.f32.mxu0 0.0
        %1542 = vmatmul.mubr.f32.gmra.mxu0 %v1421
        %v1543 = vpop.f32.mrf.mxu0
        %v1544 = vadd.f32 0.0, %v1543
        %v1545 = vpop.f32.mrf.mxu0
        %1546 = vmatprep.mubr.f32.mxu0 0.0
        %1547 = vmatmul.mubr.f32.gmra.mxu0 %v1422
        %v1548 = vpop.f32.mrf.mxu0
        %v1549 = vadd.f32 0.0, %v1548
        %v1550 = vpop.f32.mrf.mxu0
        %1551 = vmatprep.mubr.f32.mxu0 0.0
        %1552 = vmatmul.mubr.f32.gmra.mxu0 %v1423
        %v1553 = vpop.f32.mrf.mxu0
        %v1554 = vadd.f32 0.0, %v1553
        %v1555 = vpop.f32.mrf.mxu0
        %1556 = vmatprep.mubr.f32.mxu0 0.0
        %1557 = vmatmul.mubr.f32.gmra.mxu0 %v1424
        %v1558 = vpop.f32.mrf.mxu0
        %v1559 = vadd.f32 0.0, %v1558
        %v1560 = vpop.f32.mrf.mxu0
        %1561 = vmatprep.mubr.f32.mxu0 0.0
        %1562 = vmatmul.mubr.f32.gmra.mxu0 %v1425
        %v1563 = vpop.f32.mrf.mxu0
        %v1564 = vadd.f32 0.0, %v1563
        %v1565 = vpop.f32.mrf.mxu0
        %1566 = vdwg.mxu0
        %v1567 = vadd.f32 %v1438, %v1529
        %v1568 = vadd.f32 %v1439, %v1534
        %v1569 = vadd.f32 %v1440, %v1539
        %v1570 = vadd.f32 %v1441, %v1544
        %v1571 = vadd.f32 %v1442, %v1549
        %v1572 = vadd.f32 %v1443, %v1554
        %v1573 = vadd.f32 %v1444, %v1559
        %v1574 = vadd.f32 %v1445, %v1564
        %1575 = vst [vmem:[#allocation2] sm:$0xff] %v1567
        %1576 = vst [vmem:[#allocation2 + $0x8] sm:$0xff] %v1568
        %1577 = vst [vmem:[#allocation2 + $0x10] sm:$0xff] %v1569
        %1578 = vst [vmem:[#allocation2 + $0x18] sm:$0xff] %v1570
        %1579 = vst [vmem:[#allocation2 + $0x20] sm:$0xff] %v1571
        %1580 = vst [vmem:[#allocation2 + $0x28] sm:$0xff] %v1572
        %1581 = vst [vmem:[#allocation2 + $0x30] sm:$0xff] %v1573
        %1582 = vst [vmem:[#allocation2 + $0x38] sm:$0xff] %v1574
        // Predicated region
        $region61: #{tpu_custom_call.1} parent=47 // pred_check
          %p1583 = pneg %p1426
        $region62: #{tpu_custom_call.1} parent=47 // pred_check_branch
          %1585 = sbr.rel (%p1583) target = $region64
        $region63: #{tpu_custom_call.1} parent=47 // pred_region
          %v1586 = vld [vmem:[#allocation2] sm:$0xff]
          %v1587 = vld [vmem:[#allocation2 + $0x8] sm:$0xff]
          %v1588 = vld [vmem:[#allocation2 + $0x10] sm:$0xff]
          %v1589 = vld [vmem:[#allocation2 + $0x18] sm:$0xff]
          %v1590 = vld [vmem:[#allocation2 + $0x20] sm:$0xff]
          %v1591 = vld [vmem:[#allocation2 + $0x28] sm:$0xff]
          %v1592 = vld [vmem:[#allocation2 + $0x30] sm:$0xff]
          %v1593 = vld [vmem:[#allocation2 + $0x38] sm:$0xff]
          %v1594 = vld [vmem:[%s2] sm:$0x1]
          %v1596 = vlaneseq
          %v1597 = vshrl.u32 %v1596, 7
          %v1598 = vsub.s32 0, %v1597
          %v1599 = vrot.slane %v1594, %v1598
          %v1601 = vadd.f32 %v1586, %v1599
          %v1602 = vadd.f32 %v1587, %v1599
          %v1603 = vadd.f32 %v1588, %v1599
          %v1604 = vadd.f32 %v1589, %v1599
          %v1605 = vadd.f32 %v1590, %v1599
          %v1606 = vadd.f32 %v1591, %v1599
          %v1607 = vadd.f32 %v1592, %v1599
          %v1608 = vadd.f32 %v1593, %v1599
          %v1609 = vmax.f32 %v1601, 0.0
          %v1610 = vmax.f32 %v1602, 0.0
          %v1611 = vmax.f32 %v1603, 0.0
          %v1612 = vmax.f32 %v1604, 0.0
          %v1613 = vmax.f32 %v1605, 0.0
          %v1614 = vmax.f32 %v1606, 0.0
          %v1615 = vmax.f32 %v1607, 0.0
          %v1616 = vmax.f32 %v1608, 0.0
          %v1617 = vld [vmem:[%s5] sm:$0xff]
          %v1618 = vld [vmem:[%s5 + $0x8] sm:$0xff]
          %v1619 = vcombine.low %v1609, %v1611
          %v1620 = vcombine.high %v1609, %v1611
          %v1622 = vunpack.c.l.s4 1983009808
          %v1623 = vunpack.c.0.s8 %v1622
          %v1624 = vlaneseq
          %v1625 = vshrl.u32 %v1624, 7
          %v1626 = vsub.s32 %v1623, %v1625
          %v1627 = vrot.slane %v1619, %v1626
          %v1629 = vunpack.c.l.s4 1983009808
          %v1630 = vunpack.c.0.s8 %v1629
          %v1631 = vlaneseq
          %v1632 = vshrl.u32 %v1631, 7
          %v1633 = vsub.s32 %v1630, %v1632
          %v1634 = vrot.slane %v1620, %v1633
          %v1635 = vcombine.low %v1610, %v1612
          %v1636 = vcombine.high %v1610, %v1612
          %v1638 = vunpack.c.l.s4 1983009808
          %v1639 = vunpack.c.0.s8 %v1638
          %v1640 = vlaneseq
          %v1641 = vshrl.u32 %v1640, 7
          %v1642 = vsub.s32 %v1639, %v1641
          %v1643 = vrot.slane %v1635, %v1642
          %v1645 = vunpack.c.l.s4 1983009808
          %v1646 = vunpack.c.0.s8 %v1645
          %v1647 = vlaneseq
          %v1648 = vshrl.u32 %v1647, 7
          %v1649 = vsub.s32 %v1646, %v1648
          %v1650 = vrot.slane %v1636, %v1649
          %v1651 = vcombine.low %v1613, %v1615
          %v1652 = vcombine.high %v1613, %v1615
          %v1654 = vunpack.c.l.s4 1983009808
          %v1655 = vunpack.c.0.s8 %v1654
          %v1656 = vlaneseq
          %v1657 = vshrl.u32 %v1656, 7
          %v1658 = vsub.s32 %v1655, %v1657
          %v1659 = vrot.slane %v1651, %v1658
          %v1661 = vunpack.c.l.s4 1983009808
          %v1662 = vunpack.c.0.s8 %v1661
          %v1663 = vlaneseq
          %v1664 = vshrl.u32 %v1663, 7
          %v1665 = vsub.s32 %v1662, %v1664
          %v1666 = vrot.slane %v1652, %v1665
          %v1667 = vcombine.low %v1614, %v1616
          %v1668 = vcombine.high %v1614, %v1616
          %v1670 = vunpack.c.l.s4 1983009808
          %v1671 = vunpack.c.0.s8 %v1670
          %v1672 = vlaneseq
          %v1673 = vshrl.u32 %v1672, 7
          %v1674 = vsub.s32 %v1671, %v1673
          %v1675 = vrot.slane %v1667, %v1674
          %v1677 = vunpack.c.l.s4 1983009808
          %v1678 = vunpack.c.0.s8 %v1677
          %v1679 = vlaneseq
          %v1680 = vshrl.u32 %v1679, 7
          %v1681 = vsub.s32 %v1678, %v1680
          %v1682 = vrot.slane %v1668, %v1681
          %v1683 = vcombine.low %v1627, %v1643
          %v1684 = vcombine.high %v1627, %v1643
          %v1686 = vunpack.c.l.s4 1934713408
          %v1687 = vunpack.c.0.s8 %v1686
          %v1688 = vlaneseq
          %v1689 = vshrl.u32 %v1688, 7
          %v1690 = vsub.s32 %v1687, %v1689
          %v1691 = vrot.slane %v1683, %v1690
          %v1693 = vunpack.c.l.s4 1934713408
          %v1694 = vunpack.c.0.s8 %v1693
          %v1695 = vlaneseq
          %v1696 = vshrl.u32 %v1695, 7
          %v1697 = vsub.s32 %v1694, %v1696
          %v1698 = vrot.slane %v1684, %v1697
          %v1699 = vcombine.low %v1634, %v1650
          %v1700 = vcombine.high %v1634, %v1650
          %v1702 = vunpack.c.l.s4 1934713408
          %v1703 = vunpack.c.0.s8 %v1702
          %v1704 = vlaneseq
          %v1705 = vshrl.u32 %v1704, 7
          %v1706 = vsub.s32 %v1703, %v1705
          %v1707 = vrot.slane %v1699, %v1706
          %v1709 = vunpack.c.l.s4 1934713408
          %v1710 = vunpack.c.0.s8 %v1709
          %v1711 = vlaneseq
          %v1712 = vshrl.u32 %v1711, 7
          %v1713 = vsub.s32 %v1710, %v1712
          %v1714 = vrot.slane %v1700, %v1713
          %v1715 = vcombine.low %v1659, %v1675
          %v1716 = vcombine.high %v1659, %v1675
          %v1718 = vunpack.c.l.s4 1934713408
          %v1719 = vunpack.c.0.s8 %v1718
          %v1720 = vlaneseq
          %v1721 = vshrl.u32 %v1720, 7
          %v1722 = vsub.s32 %v1719, %v1721
          %v1723 = vrot.slane %v1715, %v1722
          %v1725 = vunpack.c.l.s4 1934713408
          %v1726 = vunpack.c.0.s8 %v1725
          %v1727 = vlaneseq
          %v1728 = vshrl.u32 %v1727, 7
          %v1729 = vsub.s32 %v1726, %v1728
          %v1730 = vrot.slane %v1716, %v1729
          %v1731 = vcombine.low %v1666, %v1682
          %v1732 = vcombine.high %v1666, %v1682
          %v1734 = vunpack.c.l.s4 1934713408
          %v1735 = vunpack.c.0.s8 %v1734
          %v1736 = vlaneseq
          %v1737 = vshrl.u32 %v1736, 7
          %v1738 = vsub.s32 %v1735, %v1737
          %v1739 = vrot.slane %v1731, %v1738
          %v1741 = vunpack.c.l.s4 1934713408
          %v1742 = vunpack.c.0.s8 %v1741
          %v1743 = vlaneseq
          %v1744 = vshrl.u32 %v1743, 7
          %v1745 = vsub.s32 %v1742, %v1744
          %v1746 = vrot.slane %v1732, %v1745
          %v1747 = vcombine.low %v1691, %v1723
          %v1748 = vcombine.high %v1691, %v1723
          %v1749 = vcombine.low %v1698, %v1730
          %v1750 = vcombine.high %v1698, %v1730
          %v1751 = vcombine.low %v1707, %v1739
          %v1752 = vcombine.high %v1707, %v1739
          %v1753 = vcombine.low %v1714, %v1746
          %v1754 = vcombine.high %v1714, %v1746
          %v1755 = vcombine.low %v1747, %v1749
          %v1756 = vcombine.high %v1747, %v1749
          %v1758 = vunpack.c.l.s4 1983009808
          %v1759 = vunpack.c.0.s8 %v1758
          %v1760 = vlaneseq
          %v1761 = vshrl.u32 %v1760, 7
          %v1762 = vsub.s32 %v1759, %v1761
          %v1763 = vrot.slane %v1755, %v1762
          %v1765 = vunpack.c.l.s4 1983009808
          %v1766 = vunpack.c.0.s8 %v1765
          %v1767 = vlaneseq
          %v1768 = vshrl.u32 %v1767, 7
          %v1769 = vsub.s32 %v1766, %v1768
          %v1770 = vrot.slane %v1756, %v1769
          %v1771 = vcombine.low %v1748, %v1750
          %v1772 = vcombine.high %v1748, %v1750
          %v1774 = vunpack.c.l.s4 1983009808
          %v1775 = vunpack.c.0.s8 %v1774
          %v1776 = vlaneseq
          %v1777 = vshrl.u32 %v1776, 7
          %v1778 = vsub.s32 %v1775, %v1777
          %v1779 = vrot.slane %v1771, %v1778
          %v1781 = vunpack.c.l.s4 1983009808
          %v1782 = vunpack.c.0.s8 %v1781
          %v1783 = vlaneseq
          %v1784 = vshrl.u32 %v1783, 7
          %v1785 = vsub.s32 %v1782, %v1784
          %v1786 = vrot.slane %v1772, %v1785
          %v1787 = vcombine.low %v1751, %v1753
          %v1788 = vcombine.high %v1751, %v1753
          %v1790 = vunpack.c.l.s4 1983009808
          %v1791 = vunpack.c.0.s8 %v1790
          %v1792 = vlaneseq
          %v1793 = vshrl.u32 %v1792, 7
          %v1794 = vsub.s32 %v1791, %v1793
          %v1795 = vrot.slane %v1787, %v1794
          %v1797 = vunpack.c.l.s4 1983009808
          %v1798 = vunpack.c.0.s8 %v1797
          %v1799 = vlaneseq
          %v1800 = vshrl.u32 %v1799, 7
          %v1801 = vsub.s32 %v1798, %v1800
          %v1802 = vrot.slane %v1788, %v1801
          %v1803 = vcombine.low %v1752, %v1754
          %v1804 = vcombine.high %v1752, %v1754
          %v1806 = vunpack.c.l.s4 1983009808
          %v1807 = vunpack.c.0.s8 %v1806
          %v1808 = vlaneseq
          %v1809 = vshrl.u32 %v1808, 7
          %v1810 = vsub.s32 %v1807, %v1809
          %v1811 = vrot.slane %v1803, %v1810
          %v1813 = vunpack.c.l.s4 1983009808
          %v1814 = vunpack.c.0.s8 %v1813
          %v1815 = vlaneseq
          %v1816 = vshrl.u32 %v1815, 7
          %v1817 = vsub.s32 %v1814, %v1816
          %v1818 = vrot.slane %v1804, %v1817
          %v1819 = vcombine.low %v1763, %v1779
          %v1820 = vcombine.high %v1763, %v1779
          %v1822 = vunpack.c.l.s4 1934713408
          %v1823 = vunpack.c.0.s8 %v1822
          %v1824 = vlaneseq
          %v1825 = vshrl.u32 %v1824, 7
          %v1826 = vsub.s32 %v1823, %v1825
          %v1827 = vrot.slane %v1819, %v1826
          %v1829 = vunpack.c.l.s4 1934713408
          %v1830 = vunpack.c.0.s8 %v1829
          %v1831 = vlaneseq
          %v1832 = vshrl.u32 %v1831, 7
          %v1833 = vsub.s32 %v1830, %v1832
          %v1834 = vrot.slane %v1820, %v1833
          %v1835 = vcombine.low %v1770, %v1786
          %v1836 = vcombine.high %v1770, %v1786
          %v1838 = vunpack.c.l.s4 1934713408
          %v1839 = vunpack.c.0.s8 %v1838
          %v1840 = vlaneseq
          %v1841 = vshrl.u32 %v1840, 7
          %v1842 = vsub.s32 %v1839, %v1841
          %v1843 = vrot.slane %v1835, %v1842
          %v1845 = vunpack.c.l.s4 1934713408
          %v1846 = vunpack.c.0.s8 %v1845
          %v1847 = vlaneseq
          %v1848 = vshrl.u32 %v1847, 7
          %v1849 = vsub.s32 %v1846, %v1848
          %v1850 = vrot.slane %v1836, %v1849
          %v1851 = vcombine.low %v1795, %v1811
          %v1852 = vcombine.high %v1795, %v1811
          %v1854 = vunpack.c.l.s4 1934713408
          %v1855 = vunpack.c.0.s8 %v1854
          %v1856 = vlaneseq
          %v1857 = vshrl.u32 %v1856, 7
          %v1858 = vsub.s32 %v1855, %v1857
          %v1859 = vrot.slane %v1851, %v1858
          %v1861 = vunpack.c.l.s4 1934713408
          %v1862 = vunpack.c.0.s8 %v1861
          %v1863 = vlaneseq
          %v1864 = vshrl.u32 %v1863, 7
          %v1865 = vsub.s32 %v1862, %v1864
          %v1866 = vrot.slane %v1852, %v1865
          %v1867 = vcombine.low %v1802, %v1818
          %v1868 = vcombine.high %v1802, %v1818
          %v1870 = vunpack.c.l.s4 1934713408
          %v1871 = vunpack.c.0.s8 %v1870
          %v1872 = vlaneseq
          %v1873 = vshrl.u32 %v1872, 7
          %v1874 = vsub.s32 %v1871, %v1873
          %v1875 = vrot.slane %v1867, %v1874
          %v1877 = vunpack.c.l.s4 1934713408
          %v1878 = vunpack.c.0.s8 %v1877
          %v1879 = vlaneseq
          %v1880 = vshrl.u32 %v1879, 7
          %v1881 = vsub.s32 %v1878, %v1880
          %v1882 = vrot.slane %v1868, %v1881
          %v1883 = vcombine.low %v1827, %v1859
          %v1884 = vcombine.high %v1827, %v1859
          %v1885 = vcombine.low %v1834, %v1866
          %v1886 = vcombine.high %v1834, %v1866
          %v1887 = vcombine.low %v1843, %v1875
          %v1888 = vcombine.high %v1843, %v1875
          %v1889 = vcombine.low %v1850, %v1882
          %v1890 = vcombine.high %v1850, %v1882
          %vm1891 = vcmask 64512
          %v1893 = vsel %vm1891, %v1617, 0
          %v1896 = vsel %vm1891, %v1618, 0
          %1898 = vmatprep.subr.mxu0 0.0
          %1899 = vmatpush1.msra.mxu0 0.0
          %1900 = vmatprep.subr.mxu0 0.0
          %1901 = vmatpush1.msra.mxu0 0.0
          %1902 = vmatprep.subr.mxu0 0.0
          %1903 = vmatpush1.msra.mxu0 0.0
          %1904 = vmatprep.subr.mxu0 0.0
          %1905 = vmatpush1.msra.mxu0 0.0
          %1906 = vmatprep.subr.mxu0 0.0
          %1907 = vmatpush1.msra.mxu0 0.0
          %1908 = vmatprep.subr.mxu0 0.0
          %1909 = vmatpush1.msra.mxu0 0.0
          %1910 = vmatprep.subr.mxu0 0.0
          %1911 = vmatpush1.msra.mxu0 0.0
          %1912 = vmatprep.subr.mxu0 0.0
          %1913 = vmatpush1.msra.mxu0 0.0
          %1914 = vmatprep.subr.mxu0 0.0
          %1915 = vmatpush1.msra.mxu0 0.0
          %1916 = vmatprep.subr.mxu0 0.0
          %1917 = vmatpush1.msra.mxu0 0.0
          %1918 = vmatprep.subr.mxu0 0.0
          %1919 = vmatpush1.msra.mxu0 0.0
          %1920 = vmatprep.subr.mxu0 0.0
          %1921 = vmatpush1.msra.mxu0 0.0
          %1922 = vmatprep.subr.mxu0 0.0
          %1923 = vmatpush1.msra.mxu0 0.0
          %1924 = vmatprep.subr.mxu0 0.0
          %1925 = vmatpush1.msra.mxu0 0.0
          %1926 = vmatprep.subr.mxu0 0.0
          %1927 = vmatpush1.msra.mxu0 0.0
          %1928 = vmatprep.subr.mxu0 %v1884
          %1929 = vmatpush1.msra.mxu0 %v1883
          %1930 = vmatprep.subr.mxu0 0.0
          %1931 = vmatpush2.msra.mxu0 0.0
          %1932 = vmatprep.subr.mxu0 0.0
          %1933 = vmatpush2.msra.mxu0 0.0
          %1934 = vmatprep.subr.mxu0 0.0
          %1935 = vmatpush2.msra.mxu0 0.0
          %1936 = vmatprep.subr.mxu0 0.0
          %1937 = vmatpush2.msra.mxu0 0.0
          %1938 = vmatprep.subr.mxu0 0.0
          %1939 = vmatpush2.msra.mxu0 0.0
          %1940 = vmatprep.subr.mxu0 0.0
          %1941 = vmatpush2.msra.mxu0 0.0
          %1942 = vmatprep.subr.mxu0 0.0
          %1943 = vmatpush2.msra.mxu0 0.0
          %1944 = vmatprep.subr.mxu0 0.0
          %1945 = vmatpush2.msra.mxu0 0.0
          %1946 = vmatprep.subr.mxu0 0.0
          %1947 = vmatpush2.msra.mxu0 0.0
          %1948 = vmatprep.subr.mxu0 0.0
          %1949 = vmatpush2.msra.mxu0 0.0
          %1950 = vmatprep.subr.mxu0 0.0
          %1951 = vmatpush2.msra.mxu0 0.0
          %1952 = vmatprep.subr.mxu0 0.0
          %1953 = vmatpush2.msra.mxu0 0.0
          %1954 = vmatprep.subr.mxu0 0.0
          %1955 = vmatpush2.msra.mxu0 0.0
          %1956 = vmatprep.subr.mxu0 0.0
          %1957 = vmatpush2.msra.mxu0 0.0
          %1958 = vmatprep.subr.mxu0 0.0
          %1959 = vmatpush2.msra.mxu0 0.0
          %1960 = vmatprep.subr.mxu0 0.0
          %1961 = vmatpush2.msra.mxu0 0.0
          %1962 = vmatprep.mubr.f32.mxu0 0.0
          %1963 = vmatmul.mubr.f32.gmra.mxu0 %v1893
          %v1964 = vpop.f32.mrf.mxu0
          %v1965 = vadd.f32 %v994, %v1964
          %v1966 = vpop.f32.mrf.mxu0
          %v1967 = vadd.f32 %v995, %v1966
          %1968 = vmatprep.mubr.f32.mxu0 0.0
          %1969 = vmatmul.mubr.f32.gmra.mxu0 %v1896
          %v1970 = vpop.f32.mrf.mxu0
          %v1971 = vadd.f32 %v994, %v1970
          %v1972 = vpop.f32.mrf.mxu0
          %v1973 = vadd.f32 %v995, %v1972
          %1974 = vdwg.mxu0
          %1975 = vmatprep.subr.mxu0 0.0
          %1976 = vmatpush1.msra.mxu0 0.0
          %1977 = vmatprep.subr.mxu0 0.0
          %1978 = vmatpush1.msra.mxu0 0.0
          %1979 = vmatprep.subr.mxu0 0.0
          %1980 = vmatpush1.msra.mxu0 0.0
          %1981 = vmatprep.subr.mxu0 0.0
          %1982 = vmatpush1.msra.mxu0 0.0
          %1983 = vmatprep.subr.mxu0 0.0
          %1984 = vmatpush1.msra.mxu0 0.0
          %1985 = vmatprep.subr.mxu0 0.0
          %1986 = vmatpush1.msra.mxu0 0.0
          %1987 = vmatprep.subr.mxu0 0.0
          %1988 = vmatpush1.msra.mxu0 0.0
          %1989 = vmatprep.subr.mxu0 0.0
          %1990 = vmatpush1.msra.mxu0 0.0
          %1991 = vmatprep.subr.mxu0 0.0
          %1992 = vmatpush1.msra.mxu0 0.0
          %1993 = vmatprep.subr.mxu0 0.0
          %1994 = vmatpush1.msra.mxu0 0.0
          %1995 = vmatprep.subr.mxu0 0.0
          %1996 = vmatpush1.msra.mxu0 0.0
          %1997 = vmatprep.subr.mxu0 0.0
          %1998 = vmatpush1.msra.mxu0 0.0
          %1999 = vmatprep.subr.mxu0 0.0
          %2000 = vmatpush1.msra.mxu0 0.0
          %2001 = vmatprep.subr.mxu0 0.0
          %2002 = vmatpush1.msra.mxu0 0.0
          %2003 = vmatprep.subr.mxu0 0.0
          %2004 = vmatpush1.msra.mxu0 0.0
          %2005 = vmatprep.subr.mxu0 %v1886
          %2006 = vmatpush1.msra.mxu0 %v1885
          %2007 = vmatprep.subr.mxu0 0.0
          %2008 = vmatpush2.msra.mxu0 0.0
          %2009 = vmatprep.subr.mxu0 0.0
          %2010 = vmatpush2.msra.mxu0 0.0
          %2011 = vmatprep.subr.mxu0 0.0
          %2012 = vmatpush2.msra.mxu0 0.0
          %2013 = vmatprep.subr.mxu0 0.0
          %2014 = vmatpush2.msra.mxu0 0.0
          %2015 = vmatprep.subr.mxu0 0.0
          %2016 = vmatpush2.msra.mxu0 0.0
          %2017 = vmatprep.subr.mxu0 0.0
          %2018 = vmatpush2.msra.mxu0 0.0
          %2019 = vmatprep.subr.mxu0 0.0
          %2020 = vmatpush2.msra.mxu0 0.0
          %2021 = vmatprep.subr.mxu0 0.0
          %2022 = vmatpush2.msra.mxu0 0.0
          %2023 = vmatprep.subr.mxu0 0.0
          %2024 = vmatpush2.msra.mxu0 0.0
          %2025 = vmatprep.subr.mxu0 0.0
          %2026 = vmatpush2.msra.mxu0 0.0
          %2027 = vmatprep.subr.mxu0 0.0
          %2028 = vmatpush2.msra.mxu0 0.0
          %2029 = vmatprep.subr.mxu0 0.0
          %2030 = vmatpush2.msra.mxu0 0.0
          %2031 = vmatprep.subr.mxu0 0.0
          %2032 = vmatpush2.msra.mxu0 0.0
          %2033 = vmatprep.subr.mxu0 0.0
          %2034 = vmatpush2.msra.mxu0 0.0
          %2035 = vmatprep.subr.mxu0 0.0
          %2036 = vmatpush2.msra.mxu0 0.0
          %2037 = vmatprep.subr.mxu0 0.0
          %2038 = vmatpush2.msra.mxu0 0.0
          %2039 = vmatprep.mubr.f32.mxu0 0.0
          %2040 = vmatmul.mubr.f32.gmra.mxu0 %v1893
          %v2041 = vpop.f32.mrf.mxu0
          %v2042 = vadd.f32 %v996, %v2041
          %v2043 = vpop.f32.mrf.mxu0
          %v2044 = vadd.f32 %v997, %v2043
          %2045 = vmatprep.mubr.f32.mxu0 0.0
          %2046 = vmatmul.mubr.f32.gmra.mxu0 %v1896
          %v2047 = vpop.f32.mrf.mxu0
          %v2048 = vadd.f32 %v996, %v2047
          %v2049 = vpop.f32.mrf.mxu0
          %v2050 = vadd.f32 %v997, %v2049
          %2051 = vdwg.mxu0
          %2052 = vmatprep.subr.mxu0 0.0
          %2053 = vmatpush1.msra.mxu0 0.0
          %2054 = vmatprep.subr.mxu0 0.0
          %2055 = vmatpush1.msra.mxu0 0.0
          %2056 = vmatprep.subr.mxu0 0.0
          %2057 = vmatpush1.msra.mxu0 0.0
          %2058 = vmatprep.subr.mxu0 0.0
          %2059 = vmatpush1.msra.mxu0 0.0
          %2060 = vmatprep.subr.mxu0 0.0
          %2061 = vmatpush1.msra.mxu0 0.0
          %2062 = vmatprep.subr.mxu0 0.0
          %2063 = vmatpush1.msra.mxu0 0.0
          %2064 = vmatprep.subr.mxu0 0.0
          %2065 = vmatpush1.msra.mxu0 0.0
          %2066 = vmatprep.subr.mxu0 0.0
          %2067 = vmatpush1.msra.mxu0 0.0
          %2068 = vmatprep.subr.mxu0 0.0
          %2069 = vmatpush1.msra.mxu0 0.0
          %2070 = vmatprep.subr.mxu0 0.0
          %2071 = vmatpush1.msra.mxu0 0.0
          %2072 = vmatprep.subr.mxu0 0.0
          %2073 = vmatpush1.msra.mxu0 0.0
          %2074 = vmatprep.subr.mxu0 0.0
          %2075 = vmatpush1.msra.mxu0 0.0
          %2076 = vmatprep.subr.mxu0 0.0
          %2077 = vmatpush1.msra.mxu0 0.0
          %2078 = vmatprep.subr.mxu0 0.0
          %2079 = vmatpush1.msra.mxu0 0.0
          %2080 = vmatprep.subr.mxu0 0.0
          %2081 = vmatpush1.msra.mxu0 0.0
          %2082 = vmatprep.subr.mxu0 %v1888
          %2083 = vmatpush1.msra.mxu0 %v1887
          %2084 = vmatprep.subr.mxu0 0.0
          %2085 = vmatpush2.msra.mxu0 0.0
          %2086 = vmatprep.subr.mxu0 0.0
          %2087 = vmatpush2.msra.mxu0 0.0
          %2088 = vmatprep.subr.mxu0 0.0
          %2089 = vmatpush2.msra.mxu0 0.0
          %2090 = vmatprep.subr.mxu0 0.0
          %2091 = vmatpush2.msra.mxu0 0.0
          %2092 = vmatprep.subr.mxu0 0.0
          %2093 = vmatpush2.msra.mxu0 0.0
          %2094 = vmatprep.subr.mxu0 0.0
          %2095 = vmatpush2.msra.mxu0 0.0
          %2096 = vmatprep.subr.mxu0 0.0
          %2097 = vmatpush2.msra.mxu0 0.0
          %2098 = vmatprep.subr.mxu0 0.0
          %2099 = vmatpush2.msra.mxu0 0.0
          %2100 = vmatprep.subr.mxu0 0.0
          %2101 = vmatpush2.msra.mxu0 0.0
          %2102 = vmatprep.subr.mxu0 0.0
          %2103 = vmatpush2.msra.mxu0 0.0
          %2104 = vmatprep.subr.mxu0 0.0
          %2105 = vmatpush2.msra.mxu0 0.0
          %2106 = vmatprep.subr.mxu0 0.0
          %2107 = vmatpush2.msra.mxu0 0.0
          %2108 = vmatprep.subr.mxu0 0.0
          %2109 = vmatpush2.msra.mxu0 0.0
          %2110 = vmatprep.subr.mxu0 0.0
          %2111 = vmatpush2.msra.mxu0 0.0
          %2112 = vmatprep.subr.mxu0 0.0
          %2113 = vmatpush2.msra.mxu0 0.0
          %2114 = vmatprep.subr.mxu0 0.0
          %2115 = vmatpush2.msra.mxu0 0.0
          %2116 = vmatprep.mubr.f32.mxu0 0.0
          %2117 = vmatmul.mubr.f32.gmra.mxu0 %v1893
          %v2118 = vpop.f32.mrf.mxu0
          %v2119 = vadd.f32 %v998, %v2118
          %v2120 = vpop.f32.mrf.mxu0
          %v2121 = vadd.f32 %v999, %v2120
          %2122 = vmatprep.mubr.f32.mxu0 0.0
          %2123 = vmatmul.mubr.f32.gmra.mxu0 %v1896
          %v2124 = vpop.f32.mrf.mxu0
          %v2125 = vadd.f32 %v998, %v2124
          %v2126 = vpop.f32.mrf.mxu0
          %v2127 = vadd.f32 %v999, %v2126
          %2128 = vdwg.mxu0
          %2129 = vmatprep.subr.mxu0 0.0
          %2130 = vmatpush1.msra.mxu0 0.0
          %2131 = vmatprep.subr.mxu0 0.0
          %2132 = vmatpush1.msra.mxu0 0.0
          %2133 = vmatprep.subr.mxu0 0.0
          %2134 = vmatpush1.msra.mxu0 0.0
          %2135 = vmatprep.subr.mxu0 0.0
          %2136 = vmatpush1.msra.mxu0 0.0
          %2137 = vmatprep.subr.mxu0 0.0
          %2138 = vmatpush1.msra.mxu0 0.0
          %2139 = vmatprep.subr.mxu0 0.0
          %2140 = vmatpush1.msra.mxu0 0.0
          %2141 = vmatprep.subr.mxu0 0.0
          %2142 = vmatpush1.msra.mxu0 0.0
          %2143 = vmatprep.subr.mxu0 0.0
          %2144 = vmatpush1.msra.mxu0 0.0
          %2145 = vmatprep.subr.mxu0 0.0
          %2146 = vmatpush1.msra.mxu0 0.0
          %2147 = vmatprep.subr.mxu0 0.0
          %2148 = vmatpush1.msra.mxu0 0.0
          %2149 = vmatprep.subr.mxu0 0.0
          %2150 = vmatpush1.msra.mxu0 0.0
          %2151 = vmatprep.subr.mxu0 0.0
          %2152 = vmatpush1.msra.mxu0 0.0
          %2153 = vmatprep.subr.mxu0 0.0
          %2154 = vmatpush1.msra.mxu0 0.0
          %2155 = vmatprep.subr.mxu0 0.0
          %2156 = vmatpush1.msra.mxu0 0.0
          %2157 = vmatprep.subr.mxu0 0.0
          %2158 = vmatpush1.msra.mxu0 0.0
          %2159 = vmatprep.subr.mxu0 %v1890
          %2160 = vmatpush1.msra.mxu0 %v1889
          %2161 = vmatprep.subr.mxu0 0.0
          %2162 = vmatpush2.msra.mxu0 0.0
          %2163 = vmatprep.subr.mxu0 0.0
          %2164 = vmatpush2.msra.mxu0 0.0
          %2165 = vmatprep.subr.mxu0 0.0
          %2166 = vmatpush2.msra.mxu0 0.0
          %2167 = vmatprep.subr.mxu0 0.0
          %2168 = vmatpush2.msra.mxu0 0.0
          %2169 = vmatprep.subr.mxu0 0.0
          %2170 = vmatpush2.msra.mxu0 0.0
          %2171 = vmatprep.subr.mxu0 0.0
          %2172 = vmatpush2.msra.mxu0 0.0
          %2173 = vmatprep.subr.mxu0 0.0
          %2174 = vmatpush2.msra.mxu0 0.0
          %2175 = vmatprep.subr.mxu0 0.0
          %2176 = vmatpush2.msra.mxu0 0.0
          %2177 = vmatprep.subr.mxu0 0.0
          %2178 = vmatpush2.msra.mxu0 0.0
          %2179 = vmatprep.subr.mxu0 0.0
          %2180 = vmatpush2.msra.mxu0 0.0
          %2181 = vmatprep.subr.mxu0 0.0
          %2182 = vmatpush2.msra.mxu0 0.0
          %2183 = vmatprep.subr.mxu0 0.0
          %2184 = vmatpush2.msra.mxu0 0.0
          %2185 = vmatprep.subr.mxu0 0.0
          %2186 = vmatpush2.msra.mxu0 0.0
          %2187 = vmatprep.subr.mxu0 0.0
          %2188 = vmatpush2.msra.mxu0 0.0
          %2189 = vmatprep.subr.mxu0 0.0
          %2190 = vmatpush2.msra.mxu0 0.0
          %2191 = vmatprep.subr.mxu0 0.0
          %2192 = vmatpush2.msra.mxu0 0.0
          %2193 = vmatprep.mubr.f32.mxu0 0.0
          %2194 = vmatmul.mubr.f32.gmra.mxu0 %v1893
          %v2195 = vpop.f32.mrf.mxu0
          %v2196 = vadd.f32 %v1000, %v2195
          %v2197 = vpop.f32.mrf.mxu0
          %v2198 = vadd.f32 %v1001, %v2197
          %2199 = vmatprep.mubr.f32.mxu0 0.0
          %2200 = vmatmul.mubr.f32.gmra.mxu0 %v1896
          %v2201 = vpop.f32.mrf.mxu0
          %v2202 = vadd.f32 %v1000, %v2201
          %v2203 = vpop.f32.mrf.mxu0
          %v2204 = vadd.f32 %v1001, %v2203
          %2205 = vdwg.mxu0
          %v2206 = vld [vmem:[%s6] sm:$0xff]
          %v2207 = vld [vmem:[%s6 + $0x8] sm:$0xff]
          %v2208 = vcombine.low %v1965, %v2042
          %v2209 = vcombine.high %v1965, %v2042
          %v2211 = vunpack.c.l.s4 1983009808
          %v2212 = vunpack.c.0.s8 %v2211
          %v2213 = vlaneseq
          %v2214 = vshrl.u32 %v2213, 7
          %v2215 = vsub.s32 %v2212, %v2214
          %v2216 = vrot.slane %v2208, %v2215
          %v2218 = vunpack.c.l.s4 1983009808
          %v2219 = vunpack.c.0.s8 %v2218
          %v2220 = vlaneseq
          %v2221 = vshrl.u32 %v2220, 7
          %v2222 = vsub.s32 %v2219, %v2221
          %v2223 = vrot.slane %v2209, %v2222
          %v2224 = vcombine.low %v1967, %v2044
          %v2225 = vcombine.high %v1967, %v2044
          %v2227 = vunpack.c.l.s4 1983009808
          %v2228 = vunpack.c.0.s8 %v2227
          %v2229 = vlaneseq
          %v2230 = vshrl.u32 %v2229, 7
          %v2231 = vsub.s32 %v2228, %v2230
          %v2232 = vrot.slane %v2224, %v2231
          %v2234 = vunpack.c.l.s4 1983009808
          %v2235 = vunpack.c.0.s8 %v2234
          %v2236 = vlaneseq
          %v2237 = vshrl.u32 %v2236, 7
          %v2238 = vsub.s32 %v2235, %v2237
          %v2239 = vrot.slane %v2225, %v2238
          %v2240 = vcombine.low %v2119, %v2196
          %v2241 = vcombine.high %v2119, %v2196
          %v2243 = vunpack.c.l.s4 1983009808
          %v2244 = vunpack.c.0.s8 %v2243
          %v2245 = vlaneseq
          %v2246 = vshrl.u32 %v2245, 7
          %v2247 = vsub.s32 %v2244, %v2246
          %v2248 = vrot.slane %v2240, %v2247
          %v2250 = vunpack.c.l.s4 1983009808
          %v2251 = vunpack.c.0.s8 %v2250
          %v2252 = vlaneseq
          %v2253 = vshrl.u32 %v2252, 7
          %v2254 = vsub.s32 %v2251, %v2253
          %v2255 = vrot.slane %v2241, %v2254
          %v2256 = vcombine.low %v2121, %v2198
          %v2257 = vcombine.high %v2121, %v2198
          %v2259 = vunpack.c.l.s4 1983009808
          %v2260 = vunpack.c.0.s8 %v2259
          %v2261 = vlaneseq
          %v2262 = vshrl.u32 %v2261, 7
          %v2263 = vsub.s32 %v2260, %v2262
          %v2264 = vrot.slane %v2256, %v2263
          %v2266 = vunpack.c.l.s4 1983009808
          %v2267 = vunpack.c.0.s8 %v2266
          %v2268 = vlaneseq
          %v2269 = vshrl.u32 %v2268, 7
          %v2270 = vsub.s32 %v2267, %v2269
          %v2271 = vrot.slane %v2257, %v2270
          %v2272 = vcombine.low %v2216, %v2232
          %v2273 = vcombine.high %v2216, %v2232
          %v2275 = vunpack.c.l.s4 1934713408
          %v2276 = vunpack.c.0.s8 %v2275
          %v2277 = vlaneseq
          %v2278 = vshrl.u32 %v2277, 7
          %v2279 = vsub.s32 %v2276, %v2278
          %v2280 = vrot.slane %v2272, %v2279
          %v2282 = vunpack.c.l.s4 1934713408
          %v2283 = vunpack.c.0.s8 %v2282
          %v2284 = vlaneseq
          %v2285 = vshrl.u32 %v2284, 7
          %v2286 = vsub.s32 %v2283, %v2285
          %v2287 = vrot.slane %v2273, %v2286
          %v2288 = vcombine.low %v2223, %v2239
          %v2289 = vcombine.high %v2223, %v2239
          %v2291 = vunpack.c.l.s4 1934713408
          %v2292 = vunpack.c.0.s8 %v2291
          %v2293 = vlaneseq
          %v2294 = vshrl.u32 %v2293, 7
          %v2295 = vsub.s32 %v2292, %v2294
          %v2296 = vrot.slane %v2288, %v2295
          %v2298 = vunpack.c.l.s4 1934713408
          %v2299 = vunpack.c.0.s8 %v2298
          %v2300 = vlaneseq
          %v2301 = vshrl.u32 %v2300, 7
          %v2302 = vsub.s32 %v2299, %v2301
          %v2303 = vrot.slane %v2289, %v2302
          %v2304 = vcombine.low %v2248, %v2264
          %v2305 = vcombine.high %v2248, %v2264
          %v2307 = vunpack.c.l.s4 1934713408
          %v2308 = vunpack.c.0.s8 %v2307
          %v2309 = vlaneseq
          %v2310 = vshrl.u32 %v2309, 7
          %v2311 = vsub.s32 %v2308, %v2310
          %v2312 = vrot.slane %v2304, %v2311
          %v2314 = vunpack.c.l.s4 1934713408
          %v2315 = vunpack.c.0.s8 %v2314
          %v2316 = vlaneseq
          %v2317 = vshrl.u32 %v2316, 7
          %v2318 = vsub.s32 %v2315, %v2317
          %v2319 = vrot.slane %v2305, %v2318
          %v2320 = vcombine.low %v2255, %v2271
          %v2321 = vcombine.high %v2255, %v2271
          %v2323 = vunpack.c.l.s4 1934713408
          %v2324 = vunpack.c.0.s8 %v2323
          %v2325 = vlaneseq
          %v2326 = vshrl.u32 %v2325, 7
          %v2327 = vsub.s32 %v2324, %v2326
          %v2328 = vrot.slane %v2320, %v2327
          %v2330 = vunpack.c.l.s4 1934713408
          %v2331 = vunpack.c.0.s8 %v2330
          %v2332 = vlaneseq
          %v2333 = vshrl.u32 %v2332, 7
          %v2334 = vsub.s32 %v2331, %v2333
          %v2335 = vrot.slane %v2321, %v2334
          %v2336 = vcombine.low %v2280, %v2312
          %v2337 = vcombine.high %v2280, %v2312
          %v2338 = vcombine.low %v2287, %v2319
          %v2339 = vcombine.high %v2287, %v2319
          %v2340 = vcombine.low %v2296, %v2328
          %v2341 = vcombine.high %v2296, %v2328
          %v2342 = vcombine.low %v2303, %v2335
          %v2343 = vcombine.high %v2303, %v2335
          %v2344 = vcombine.low %v1971, %v2048
          %v2345 = vcombine.high %v1971, %v2048
          %v2347 = vunpack.c.l.s4 1983009808
          %v2348 = vunpack.c.0.s8 %v2347
          %v2349 = vlaneseq
          %v2350 = vshrl.u32 %v2349, 7
          %v2351 = vsub.s32 %v2348, %v2350
          %v2352 = vrot.slane %v2344, %v2351
          %v2354 = vunpack.c.l.s4 1983009808
          %v2355 = vunpack.c.0.s8 %v2354
          %v2356 = vlaneseq
          %v2357 = vshrl.u32 %v2356, 7
          %v2358 = vsub.s32 %v2355, %v2357
          %v2359 = vrot.slane %v2345, %v2358
          %v2360 = vcombine.low %v1973, %v2050
          %v2361 = vcombine.high %v1973, %v2050
          %v2363 = vunpack.c.l.s4 1983009808
          %v2364 = vunpack.c.0.s8 %v2363
          %v2365 = vlaneseq
          %v2366 = vshrl.u32 %v2365, 7
          %v2367 = vsub.s32 %v2364, %v2366
          %v2368 = vrot.slane %v2360, %v2367
          %v2370 = vunpack.c.l.s4 1983009808
          %v2371 = vunpack.c.0.s8 %v2370
          %v2372 = vlaneseq
          %v2373 = vshrl.u32 %v2372, 7
          %v2374 = vsub.s32 %v2371, %v2373
          %v2375 = vrot.slane %v2361, %v2374
          %v2376 = vcombine.low %v2125, %v2202
          %v2377 = vcombine.high %v2125, %v2202
          %v2379 = vunpack.c.l.s4 1983009808
          %v2380 = vunpack.c.0.s8 %v2379
          %v2381 = vlaneseq
          %v2382 = vshrl.u32 %v2381, 7
          %v2383 = vsub.s32 %v2380, %v2382
          %v2384 = vrot.slane %v2376, %v2383
          %v2386 = vunpack.c.l.s4 1983009808
          %v2387 = vunpack.c.0.s8 %v2386
          %v2388 = vlaneseq
          %v2389 = vshrl.u32 %v2388, 7
          %v2390 = vsub.s32 %v2387, %v2389
          %v2391 = vrot.slane %v2377, %v2390
          %v2392 = vcombine.low %v2127, %v2204
          %v2393 = vcombine.high %v2127, %v2204
          %v2395 = vunpack.c.l.s4 1983009808
          %v2396 = vunpack.c.0.s8 %v2395
          %v2397 = vlaneseq
          %v2398 = vshrl.u32 %v2397, 7
          %v2399 = vsub.s32 %v2396, %v2398
          %v2400 = vrot.slane %v2392, %v2399
          %v2402 = vunpack.c.l.s4 1983009808
          %v2403 = vunpack.c.0.s8 %v2402
          %v2404 = vlaneseq
          %v2405 = vshrl.u32 %v2404, 7
          %v2406 = vsub.s32 %v2403, %v2405
          %v2407 = vrot.slane %v2393, %v2406
          %v2408 = vcombine.low %v2352, %v2368
          %v2409 = vcombine.high %v2352, %v2368
          %v2411 = vunpack.c.l.s4 1934713408
          %v2412 = vunpack.c.0.s8 %v2411
          %v2413 = vlaneseq
          %v2414 = vshrl.u32 %v2413, 7
          %v2415 = vsub.s32 %v2412, %v2414
          %v2416 = vrot.slane %v2408, %v2415
          %v2418 = vunpack.c.l.s4 1934713408
          %v2419 = vunpack.c.0.s8 %v2418
          %v2420 = vlaneseq
          %v2421 = vshrl.u32 %v2420, 7
          %v2422 = vsub.s32 %v2419, %v2421
          %v2423 = vrot.slane %v2409, %v2422
          %v2424 = vcombine.low %v2359, %v2375
          %v2425 = vcombine.high %v2359, %v2375
          %v2427 = vunpack.c.l.s4 1934713408
          %v2428 = vunpack.c.0.s8 %v2427
          %v2429 = vlaneseq
          %v2430 = vshrl.u32 %v2429, 7
          %v2431 = vsub.s32 %v2428, %v2430
          %v2432 = vrot.slane %v2424, %v2431
          %v2434 = vunpack.c.l.s4 1934713408
          %v2435 = vunpack.c.0.s8 %v2434
          %v2436 = vlaneseq
          %v2437 = vshrl.u32 %v2436, 7
          %v2438 = vsub.s32 %v2435, %v2437
          %v2439 = vrot.slane %v2425, %v2438
          %v2440 = vcombine.low %v2384, %v2400
          %v2441 = vcombine.high %v2384, %v2400
          %v2443 = vunpack.c.l.s4 1934713408
          %v2444 = vunpack.c.0.s8 %v2443
          %v2445 = vlaneseq
          %v2446 = vshrl.u32 %v2445, 7
          %v2447 = vsub.s32 %v2444, %v2446
          %v2448 = vrot.slane %v2440, %v2447
          %v2450 = vunpack.c.l.s4 1934713408
          %v2451 = vunpack.c.0.s8 %v2450
          %v2452 = vlaneseq
          %v2453 = vshrl.u32 %v2452, 7
          %v2454 = vsub.s32 %v2451, %v2453
          %v2455 = vrot.slane %v2441, %v2454
          %v2456 = vcombine.low %v2391, %v2407
          %v2457 = vcombine.high %v2391, %v2407
          %v2459 = vunpack.c.l.s4 1934713408
          %v2460 = vunpack.c.0.s8 %v2459
          %v2461 = vlaneseq
          %v2462 = vshrl.u32 %v2461, 7
          %v2463 = vsub.s32 %v2460, %v2462
          %v2464 = vrot.slane %v2456, %v2463
          %v2466 = vunpack.c.l.s4 1934713408
          %v2467 = vunpack.c.0.s8 %v2466
          %v2468 = vlaneseq
          %v2469 = vshrl.u32 %v2468, 7
          %v2470 = vsub.s32 %v2467, %v2469
          %v2471 = vrot.slane %v2457, %v2470
          %v2472 = vcombine.low %v2416, %v2448
          %v2473 = vcombine.high %v2416, %v2448
          %v2474 = vcombine.low %v2423, %v2455
          %v2475 = vcombine.high %v2423, %v2455
          %v2476 = vcombine.low %v2432, %v2464
          %v2477 = vcombine.high %v2432, %v2464
          %v2478 = vcombine.low %v2439, %v2471
          %v2479 = vcombine.high %v2439, %v2471
          %v2481 = vsel %vm1891, %v2206, 0
          %v2484 = vsel %vm1891, %v2207, 0
          %2486 = vmatprep.subr.mxu0 0.0
          %2487 = vmatpush1.msra.mxu0 0.0
          %2488 = vmatprep.subr.mxu0 0.0
          %2489 = vmatpush1.msra.mxu0 0.0
          %2490 = vmatprep.subr.mxu0 0.0
          %2491 = vmatpush1.msra.mxu0 0.0
          %2492 = vmatprep.subr.mxu0 0.0
          %2493 = vmatpush1.msra.mxu0 0.0
          %2494 = vmatprep.subr.mxu0 0.0
          %2495 = vmatpush1.msra.mxu0 0.0
          %2496 = vmatprep.subr.mxu0 0.0
          %2497 = vmatpush1.msra.mxu0 0.0
          %2498 = vmatprep.subr.mxu0 0.0
          %2499 = vmatpush1.msra.mxu0 0.0
          %2500 = vmatprep.subr.mxu0 0.0
          %2501 = vmatpush1.msra.mxu0 0.0
          %2502 = vmatprep.subr.mxu0 0.0
          %2503 = vmatpush1.msra.mxu0 0.0
          %2504 = vmatprep.subr.mxu0 0.0
          %2505 = vmatpush1.msra.mxu0 0.0
          %2506 = vmatprep.subr.mxu0 0.0
          %2507 = vmatpush1.msra.mxu0 0.0
          %2508 = vmatprep.subr.mxu0 0.0
          %2509 = vmatpush1.msra.mxu0 0.0
          %2510 = vmatprep.subr.mxu0 0.0
          %2511 = vmatpush1.msra.mxu0 0.0
          %2512 = vmatprep.subr.mxu0 0.0
          %2513 = vmatpush1.msra.mxu0 0.0
          %2514 = vmatprep.subr.mxu0 0.0
          %2515 = vmatpush1.msra.mxu0 0.0
          %2516 = vmatprep.subr.mxu0 %v2337
          %2517 = vmatpush1.msra.mxu0 %v2336
          %2518 = vmatprep.subr.mxu0 0.0
          %2519 = vmatpush2.msra.mxu0 0.0
          %2520 = vmatprep.subr.mxu0 0.0
          %2521 = vmatpush2.msra.mxu0 0.0
          %2522 = vmatprep.subr.mxu0 0.0
          %2523 = vmatpush2.msra.mxu0 0.0
          %2524 = vmatprep.subr.mxu0 0.0
          %2525 = vmatpush2.msra.mxu0 0.0
          %2526 = vmatprep.subr.mxu0 0.0
          %2527 = vmatpush2.msra.mxu0 0.0
          %2528 = vmatprep.subr.mxu0 0.0
          %2529 = vmatpush2.msra.mxu0 0.0
          %2530 = vmatprep.subr.mxu0 0.0
          %2531 = vmatpush2.msra.mxu0 0.0
          %2532 = vmatprep.subr.mxu0 0.0
          %2533 = vmatpush2.msra.mxu0 0.0
          %2534 = vmatprep.subr.mxu0 0.0
          %2535 = vmatpush2.msra.mxu0 0.0
          %2536 = vmatprep.subr.mxu0 0.0
          %2537 = vmatpush2.msra.mxu0 0.0
          %2538 = vmatprep.subr.mxu0 0.0
          %2539 = vmatpush2.msra.mxu0 0.0
          %2540 = vmatprep.subr.mxu0 0.0
          %2541 = vmatpush2.msra.mxu0 0.0
          %2542 = vmatprep.subr.mxu0 0.0
          %2543 = vmatpush2.msra.mxu0 0.0
          %2544 = vmatprep.subr.mxu0 0.0
          %2545 = vmatpush2.msra.mxu0 0.0
          %2546 = vmatprep.subr.mxu0 0.0
          %2547 = vmatpush2.msra.mxu0 0.0
          %2548 = vmatprep.subr.mxu0 0.0
          %2549 = vmatpush2.msra.mxu0 0.0
          %2550 = vmatprep.mubr.f32.mxu0 0.0
          %2551 = vmatmul.mubr.f32.gmra.mxu0 %v2481
          %v2552 = vpop.f32.mrf.mxu0
          %v2553 = vadd.f32 %v994, %v2552
          %v2554 = vpop.f32.mrf.mxu0
          %v2555 = vadd.f32 %v995, %v2554
          %2556 = vmatprep.mubr.f32.mxu0 0.0
          %2557 = vmatmul.mubr.f32.gmra.mxu0 %v2484
          %v2558 = vpop.f32.mrf.mxu0
          %v2559 = vadd.f32 %v994, %v2558
          %v2560 = vpop.f32.mrf.mxu0
          %v2561 = vadd.f32 %v995, %v2560
          %2562 = vdwg.mxu0
          %2563 = vmatprep.subr.mxu0 0.0
          %2564 = vmatpush1.msra.mxu0 0.0
          %2565 = vmatprep.subr.mxu0 0.0
          %2566 = vmatpush1.msra.mxu0 0.0
          %2567 = vmatprep.subr.mxu0 0.0
          %2568 = vmatpush1.msra.mxu0 0.0
          %2569 = vmatprep.subr.mxu0 0.0
          %2570 = vmatpush1.msra.mxu0 0.0
          %2571 = vmatprep.subr.mxu0 0.0
          %2572 = vmatpush1.msra.mxu0 0.0
          %2573 = vmatprep.subr.mxu0 0.0
          %2574 = vmatpush1.msra.mxu0 0.0
          %2575 = vmatprep.subr.mxu0 0.0
          %2576 = vmatpush1.msra.mxu0 0.0
          %2577 = vmatprep.subr.mxu0 0.0
          %2578 = vmatpush1.msra.mxu0 0.0
          %2579 = vmatprep.subr.mxu0 0.0
          %2580 = vmatpush1.msra.mxu0 0.0
          %2581 = vmatprep.subr.mxu0 0.0
          %2582 = vmatpush1.msra.mxu0 0.0
          %2583 = vmatprep.subr.mxu0 0.0
          %2584 = vmatpush1.msra.mxu0 0.0
          %2585 = vmatprep.subr.mxu0 0.0
          %2586 = vmatpush1.msra.mxu0 0.0
          %2587 = vmatprep.subr.mxu0 0.0
          %2588 = vmatpush1.msra.mxu0 0.0
          %2589 = vmatprep.subr.mxu0 0.0
          %2590 = vmatpush1.msra.mxu0 0.0
          %2591 = vmatprep.subr.mxu0 0.0
          %2592 = vmatpush1.msra.mxu0 0.0
          %2593 = vmatprep.subr.mxu0 %v2339
          %2594 = vmatpush1.msra.mxu0 %v2338
          %2595 = vmatprep.subr.mxu0 0.0
          %2596 = vmatpush2.msra.mxu0 0.0
          %2597 = vmatprep.subr.mxu0 0.0
          %2598 = vmatpush2.msra.mxu0 0.0
          %2599 = vmatprep.subr.mxu0 0.0
          %2600 = vmatpush2.msra.mxu0 0.0
          %2601 = vmatprep.subr.mxu0 0.0
          %2602 = vmatpush2.msra.mxu0 0.0
          %2603 = vmatprep.subr.mxu0 0.0
          %2604 = vmatpush2.msra.mxu0 0.0
          %2605 = vmatprep.subr.mxu0 0.0
          %2606 = vmatpush2.msra.mxu0 0.0
          %2607 = vmatprep.subr.mxu0 0.0
          %2608 = vmatpush2.msra.mxu0 0.0
          %2609 = vmatprep.subr.mxu0 0.0
          %2610 = vmatpush2.msra.mxu0 0.0
          %2611 = vmatprep.subr.mxu0 0.0
          %2612 = vmatpush2.msra.mxu0 0.0
          %2613 = vmatprep.subr.mxu0 0.0
          %2614 = vmatpush2.msra.mxu0 0.0
          %2615 = vmatprep.subr.mxu0 0.0
          %2616 = vmatpush2.msra.mxu0 0.0
          %2617 = vmatprep.subr.mxu0 0.0
          %2618 = vmatpush2.msra.mxu0 0.0
          %2619 = vmatprep.subr.mxu0 0.0
          %2620 = vmatpush2.msra.mxu0 0.0
          %2621 = vmatprep.subr.mxu0 0.0
          %2622 = vmatpush2.msra.mxu0 0.0
          %2623 = vmatprep.subr.mxu0 0.0
          %2624 = vmatpush2.msra.mxu0 0.0
          %2625 = vmatprep.subr.mxu0 0.0
          %2626 = vmatpush2.msra.mxu0 0.0
          %2627 = vmatprep.mubr.f32.mxu0 0.0
          %2628 = vmatmul.mubr.f32.gmra.mxu0 %v2481
          %v2629 = vpop.f32.mrf.mxu0
          %v2630 = vadd.f32 %v996, %v2629
          %v2631 = vpop.f32.mrf.mxu0
          %v2632 = vadd.f32 %v997, %v2631
          %2633 = vmatprep.mubr.f32.mxu0 0.0
          %2634 = vmatmul.mubr.f32.gmra.mxu0 %v2484
          %v2635 = vpop.f32.mrf.mxu0
          %v2636 = vadd.f32 %v996, %v2635
          %v2637 = vpop.f32.mrf.mxu0
          %v2638 = vadd.f32 %v997, %v2637
          %2639 = vdwg.mxu0
          %2640 = vmatprep.subr.mxu0 0.0
          %2641 = vmatpush1.msra.mxu0 0.0
          %2642 = vmatprep.subr.mxu0 0.0
          %2643 = vmatpush1.msra.mxu0 0.0
          %2644 = vmatprep.subr.mxu0 0.0
          %2645 = vmatpush1.msra.mxu0 0.0
          %2646 = vmatprep.subr.mxu0 0.0
          %2647 = vmatpush1.msra.mxu0 0.0
          %2648 = vmatprep.subr.mxu0 0.0
          %2649 = vmatpush1.msra.mxu0 0.0
          %2650 = vmatprep.subr.mxu0 0.0
          %2651 = vmatpush1.msra.mxu0 0.0
          %2652 = vmatprep.subr.mxu0 0.0
          %2653 = vmatpush1.msra.mxu0 0.0
          %2654 = vmatprep.subr.mxu0 0.0
          %2655 = vmatpush1.msra.mxu0 0.0
          %2656 = vmatprep.subr.mxu0 0.0
          %2657 = vmatpush1.msra.mxu0 0.0
          %2658 = vmatprep.subr.mxu0 0.0
          %2659 = vmatpush1.msra.mxu0 0.0
          %2660 = vmatprep.subr.mxu0 0.0
          %2661 = vmatpush1.msra.mxu0 0.0
          %2662 = vmatprep.subr.mxu0 0.0
          %2663 = vmatpush1.msra.mxu0 0.0
          %2664 = vmatprep.subr.mxu0 0.0
          %2665 = vmatpush1.msra.mxu0 0.0
          %2666 = vmatprep.subr.mxu0 0.0
          %2667 = vmatpush1.msra.mxu0 0.0
          %2668 = vmatprep.subr.mxu0 0.0
          %2669 = vmatpush1.msra.mxu0 0.0
          %2670 = vmatprep.subr.mxu0 %v2341
          %2671 = vmatpush1.msra.mxu0 %v2340
          %2672 = vmatprep.subr.mxu0 0.0
          %2673 = vmatpush2.msra.mxu0 0.0
          %2674 = vmatprep.subr.mxu0 0.0
          %2675 = vmatpush2.msra.mxu0 0.0
          %2676 = vmatprep.subr.mxu0 0.0
          %2677 = vmatpush2.msra.mxu0 0.0
          %2678 = vmatprep.subr.mxu0 0.0
          %2679 = vmatpush2.msra.mxu0 0.0
          %2680 = vmatprep.subr.mxu0 0.0
          %2681 = vmatpush2.msra.mxu0 0.0
          %2682 = vmatprep.subr.mxu0 0.0
          %2683 = vmatpush2.msra.mxu0 0.0
          %2684 = vmatprep.subr.mxu0 0.0
          %2685 = vmatpush2.msra.mxu0 0.0
          %2686 = vmatprep.subr.mxu0 0.0
          %2687 = vmatpush2.msra.mxu0 0.0
          %2688 = vmatprep.subr.mxu0 0.0
          %2689 = vmatpush2.msra.mxu0 0.0
          %2690 = vmatprep.subr.mxu0 0.0
          %2691 = vmatpush2.msra.mxu0 0.0
          %2692 = vmatprep.subr.mxu0 0.0
          %2693 = vmatpush2.msra.mxu0 0.0
          %2694 = vmatprep.subr.mxu0 0.0
          %2695 = vmatpush2.msra.mxu0 0.0
          %2696 = vmatprep.subr.mxu0 0.0
          %2697 = vmatpush2.msra.mxu0 0.0
          %2698 = vmatprep.subr.mxu0 0.0
          %2699 = vmatpush2.msra.mxu0 0.0
          %2700 = vmatprep.subr.mxu0 0.0
          %2701 = vmatpush2.msra.mxu0 0.0
          %2702 = vmatprep.subr.mxu0 0.0
          %2703 = vmatpush2.msra.mxu0 0.0
          %2704 = vmatprep.mubr.f32.mxu0 0.0
          %2705 = vmatmul.mubr.f32.gmra.mxu0 %v2481
          %v2706 = vpop.f32.mrf.mxu0
          %v2707 = vadd.f32 %v998, %v2706
          %v2708 = vpop.f32.mrf.mxu0
          %v2709 = vadd.f32 %v999, %v2708
          %2710 = vmatprep.mubr.f32.mxu0 0.0
          %2711 = vmatmul.mubr.f32.gmra.mxu0 %v2484
          %v2712 = vpop.f32.mrf.mxu0
          %v2713 = vadd.f32 %v998, %v2712
          %v2714 = vpop.f32.mrf.mxu0
          %v2715 = vadd.f32 %v999, %v2714
          %2716 = vdwg.mxu0
          %2717 = vmatprep.subr.mxu0 0.0
          %2718 = vmatpush1.msra.mxu0 0.0
          %2719 = vmatprep.subr.mxu0 0.0
          %2720 = vmatpush1.msra.mxu0 0.0
          %2721 = vmatprep.subr.mxu0 0.0
          %2722 = vmatpush1.msra.mxu0 0.0
          %2723 = vmatprep.subr.mxu0 0.0
          %2724 = vmatpush1.msra.mxu0 0.0
          %2725 = vmatprep.subr.mxu0 0.0
          %2726 = vmatpush1.msra.mxu0 0.0
          %2727 = vmatprep.subr.mxu0 0.0
          %2728 = vmatpush1.msra.mxu0 0.0
          %2729 = vmatprep.subr.mxu0 0.0
          %2730 = vmatpush1.msra.mxu0 0.0
          %2731 = vmatprep.subr.mxu0 0.0
          %2732 = vmatpush1.msra.mxu0 0.0
          %2733 = vmatprep.subr.mxu0 0.0
          %2734 = vmatpush1.msra.mxu0 0.0
          %2735 = vmatprep.subr.mxu0 0.0
          %2736 = vmatpush1.msra.mxu0 0.0
          %2737 = vmatprep.subr.mxu0 0.0
          %2738 = vmatpush1.msra.mxu0 0.0
          %2739 = vmatprep.subr.mxu0 0.0
          %2740 = vmatpush1.msra.mxu0 0.0
          %2741 = vmatprep.subr.mxu0 0.0
          %2742 = vmatpush1.msra.mxu0 0.0
          %2743 = vmatprep.subr.mxu0 0.0
          %2744 = vmatpush1.msra.mxu0 0.0
          %2745 = vmatprep.subr.mxu0 0.0
          %2746 = vmatpush1.msra.mxu0 0.0
          %2747 = vmatprep.subr.mxu0 %v2343
          %2748 = vmatpush1.msra.mxu0 %v2342
          %2749 = vmatprep.subr.mxu0 0.0
          %2750 = vmatpush2.msra.mxu0 0.0
          %2751 = vmatprep.subr.mxu0 0.0
          %2752 = vmatpush2.msra.mxu0 0.0
          %2753 = vmatprep.subr.mxu0 0.0
          %2754 = vmatpush2.msra.mxu0 0.0
          %2755 = vmatprep.subr.mxu0 0.0
          %2756 = vmatpush2.msra.mxu0 0.0
          %2757 = vmatprep.subr.mxu0 0.0
          %2758 = vmatpush2.msra.mxu0 0.0
          %2759 = vmatprep.subr.mxu0 0.0
          %2760 = vmatpush2.msra.mxu0 0.0
          %2761 = vmatprep.subr.mxu0 0.0
          %2762 = vmatpush2.msra.mxu0 0.0
          %2763 = vmatprep.subr.mxu0 0.0
          %2764 = vmatpush2.msra.mxu0 0.0
          %2765 = vmatprep.subr.mxu0 0.0
          %2766 = vmatpush2.msra.mxu0 0.0
          %2767 = vmatprep.subr.mxu0 0.0
          %2768 = vmatpush2.msra.mxu0 0.0
          %2769 = vmatprep.subr.mxu0 0.0
          %2770 = vmatpush2.msra.mxu0 0.0
          %2771 = vmatprep.subr.mxu0 0.0
          %2772 = vmatpush2.msra.mxu0 0.0
          %2773 = vmatprep.subr.mxu0 0.0
          %2774 = vmatpush2.msra.mxu0 0.0
          %2775 = vmatprep.subr.mxu0 0.0
          %2776 = vmatpush2.msra.mxu0 0.0
          %2777 = vmatprep.subr.mxu0 0.0
          %2778 = vmatpush2.msra.mxu0 0.0
          %2779 = vmatprep.subr.mxu0 0.0
          %2780 = vmatpush2.msra.mxu0 0.0
          %2781 = vmatprep.mubr.f32.mxu0 0.0
          %2782 = vmatmul.mubr.f32.gmra.mxu0 %v2481
          %v2783 = vpop.f32.mrf.mxu0
          %v2784 = vadd.f32 %v1000, %v2783
          %v2785 = vpop.f32.mrf.mxu0
          %v2786 = vadd.f32 %v1001, %v2785
          %2787 = vmatprep.mubr.f32.mxu0 0.0
          %2788 = vmatmul.mubr.f32.gmra.mxu0 %v2484
          %v2789 = vpop.f32.mrf.mxu0
          %v2790 = vadd.f32 %v1000, %v2789
          %v2791 = vpop.f32.mrf.mxu0
          %v2792 = vadd.f32 %v1001, %v2791
          %2793 = vdwg.mxu0
          %2794 = vmatprep.subr.mxu0 0.0
          %2795 = vmatpush1.msra.mxu0 0.0
          %2796 = vmatprep.subr.mxu0 0.0
          %2797 = vmatpush1.msra.mxu0 0.0
          %2798 = vmatprep.subr.mxu0 0.0
          %2799 = vmatpush1.msra.mxu0 0.0
          %2800 = vmatprep.subr.mxu0 0.0
          %2801 = vmatpush1.msra.mxu0 0.0
          %2802 = vmatprep.subr.mxu0 0.0
          %2803 = vmatpush1.msra.mxu0 0.0
          %2804 = vmatprep.subr.mxu0 0.0
          %2805 = vmatpush1.msra.mxu0 0.0
          %2806 = vmatprep.subr.mxu0 0.0
          %2807 = vmatpush1.msra.mxu0 0.0
          %2808 = vmatprep.subr.mxu0 0.0
          %2809 = vmatpush1.msra.mxu0 0.0
          %2810 = vmatprep.subr.mxu0 0.0
          %2811 = vmatpush1.msra.mxu0 0.0
          %2812 = vmatprep.subr.mxu0 0.0
          %2813 = vmatpush1.msra.mxu0 0.0
          %2814 = vmatprep.subr.mxu0 0.0
          %2815 = vmatpush1.msra.mxu0 0.0
          %2816 = vmatprep.subr.mxu0 0.0
          %2817 = vmatpush1.msra.mxu0 0.0
          %2818 = vmatprep.subr.mxu0 0.0
          %2819 = vmatpush1.msra.mxu0 0.0
          %2820 = vmatprep.subr.mxu0 0.0
          %2821 = vmatpush1.msra.mxu0 0.0
          %2822 = vmatprep.subr.mxu0 0.0
          %2823 = vmatpush1.msra.mxu0 0.0
          %2824 = vmatprep.subr.mxu0 %v2473
          %2825 = vmatpush1.msra.mxu0 %v2472
          %2826 = vmatprep.subr.mxu0 0.0
          %2827 = vmatpush2.msra.mxu0 0.0
          %2828 = vmatprep.subr.mxu0 0.0
          %2829 = vmatpush2.msra.mxu0 0.0
          %2830 = vmatprep.subr.mxu0 0.0
          %2831 = vmatpush2.msra.mxu0 0.0
          %2832 = vmatprep.subr.mxu0 0.0
          %2833 = vmatpush2.msra.mxu0 0.0
          %2834 = vmatprep.subr.mxu0 0.0
          %2835 = vmatpush2.msra.mxu0 0.0
          %2836 = vmatprep.subr.mxu0 0.0
          %2837 = vmatpush2.msra.mxu0 0.0
          %2838 = vmatprep.subr.mxu0 0.0
          %2839 = vmatpush2.msra.mxu0 0.0
          %2840 = vmatprep.subr.mxu0 0.0
          %2841 = vmatpush2.msra.mxu0 0.0
          %2842 = vmatprep.subr.mxu0 0.0
          %2843 = vmatpush2.msra.mxu0 0.0
          %2844 = vmatprep.subr.mxu0 0.0
          %2845 = vmatpush2.msra.mxu0 0.0
          %2846 = vmatprep.subr.mxu0 0.0
          %2847 = vmatpush2.msra.mxu0 0.0
          %2848 = vmatprep.subr.mxu0 0.0
          %2849 = vmatpush2.msra.mxu0 0.0
          %2850 = vmatprep.subr.mxu0 0.0
          %2851 = vmatpush2.msra.mxu0 0.0
          %2852 = vmatprep.subr.mxu0 0.0
          %2853 = vmatpush2.msra.mxu0 0.0
          %2854 = vmatprep.subr.mxu0 0.0
          %2855 = vmatpush2.msra.mxu0 0.0
          %2856 = vmatprep.subr.mxu0 0.0
          %2857 = vmatpush2.msra.mxu0 0.0
          %2858 = vmatprep.mubr.f32.mxu0 0.0
          %2859 = vmatmul.mubr.f32.gmra.mxu0 %v2481
          %v2860 = vpop.f32.mrf.mxu0
          %v2861 = vadd.f32 %v994, %v2860
          %v2862 = vpop.f32.mrf.mxu0
          %v2863 = vadd.f32 %v995, %v2862
          %2864 = vmatprep.mubr.f32.mxu0 0.0
          %2865 = vmatmul.mubr.f32.gmra.mxu0 %v2484
          %v2866 = vpop.f32.mrf.mxu0
          %v2867 = vadd.f32 %v994, %v2866
          %v2868 = vpop.f32.mrf.mxu0
          %v2869 = vadd.f32 %v995, %v2868
          %2870 = vdwg.mxu0
          %2871 = vmatprep.subr.mxu0 0.0
          %2872 = vmatpush1.msra.mxu0 0.0
          %2873 = vmatprep.subr.mxu0 0.0
          %2874 = vmatpush1.msra.mxu0 0.0
          %2875 = vmatprep.subr.mxu0 0.0
          %2876 = vmatpush1.msra.mxu0 0.0
          %2877 = vmatprep.subr.mxu0 0.0
          %2878 = vmatpush1.msra.mxu0 0.0
          %2879 = vmatprep.subr.mxu0 0.0
          %2880 = vmatpush1.msra.mxu0 0.0
          %2881 = vmatprep.subr.mxu0 0.0
          %2882 = vmatpush1.msra.mxu0 0.0
          %2883 = vmatprep.subr.mxu0 0.0
          %2884 = vmatpush1.msra.mxu0 0.0
          %2885 = vmatprep.subr.mxu0 0.0
          %2886 = vmatpush1.msra.mxu0 0.0
          %2887 = vmatprep.subr.mxu0 0.0
          %2888 = vmatpush1.msra.mxu0 0.0
          %2889 = vmatprep.subr.mxu0 0.0
          %2890 = vmatpush1.msra.mxu0 0.0
          %2891 = vmatprep.subr.mxu0 0.0
          %2892 = vmatpush1.msra.mxu0 0.0
          %2893 = vmatprep.subr.mxu0 0.0
          %2894 = vmatpush1.msra.mxu0 0.0
          %2895 = vmatprep.subr.mxu0 0.0
          %2896 = vmatpush1.msra.mxu0 0.0
          %2897 = vmatprep.subr.mxu0 0.0
          %2898 = vmatpush1.msra.mxu0 0.0
          %2899 = vmatprep.subr.mxu0 0.0
          %2900 = vmatpush1.msra.mxu0 0.0
          %2901 = vmatprep.subr.mxu0 %v2475
          %2902 = vmatpush1.msra.mxu0 %v2474
          %2903 = vmatprep.subr.mxu0 0.0
          %2904 = vmatpush2.msra.mxu0 0.0
          %2905 = vmatprep.subr.mxu0 0.0
          %2906 = vmatpush2.msra.mxu0 0.0
          %2907 = vmatprep.subr.mxu0 0.0
          %2908 = vmatpush2.msra.mxu0 0.0
          %2909 = vmatprep.subr.mxu0 0.0
          %2910 = vmatpush2.msra.mxu0 0.0
          %2911 = vmatprep.subr.mxu0 0.0
          %2912 = vmatpush2.msra.mxu0 0.0
          %2913 = vmatprep.subr.mxu0 0.0
          %2914 = vmatpush2.msra.mxu0 0.0
          %2915 = vmatprep.subr.mxu0 0.0
          %2916 = vmatpush2.msra.mxu0 0.0
          %2917 = vmatprep.subr.mxu0 0.0
          %2918 = vmatpush2.msra.mxu0 0.0
          %2919 = vmatprep.subr.mxu0 0.0
          %2920 = vmatpush2.msra.mxu0 0.0
          %2921 = vmatprep.subr.mxu0 0.0
          %2922 = vmatpush2.msra.mxu0 0.0
          %2923 = vmatprep.subr.mxu0 0.0
          %2924 = vmatpush2.msra.mxu0 0.0
          %2925 = vmatprep.subr.mxu0 0.0
          %2926 = vmatpush2.msra.mxu0 0.0
          %2927 = vmatprep.subr.mxu0 0.0
          %2928 = vmatpush2.msra.mxu0 0.0
          %2929 = vmatprep.subr.mxu0 0.0
          %2930 = vmatpush2.msra.mxu0 0.0
          %2931 = vmatprep.subr.mxu0 0.0
          %2932 = vmatpush2.msra.mxu0 0.0
          %2933 = vmatprep.subr.mxu0 0.0
          %2934 = vmatpush2.msra.mxu0 0.0
          %2935 = vmatprep.mubr.f32.mxu0 0.0
          %2936 = vmatmul.mubr.f32.gmra.mxu0 %v2481
          %v2937 = vpop.f32.mrf.mxu0
          %v2938 = vadd.f32 %v996, %v2937
          %v2939 = vpop.f32.mrf.mxu0
          %v2940 = vadd.f32 %v997, %v2939
          %2941 = vmatprep.mubr.f32.mxu0 0.0
          %2942 = vmatmul.mubr.f32.gmra.mxu0 %v2484
          %v2943 = vpop.f32.mrf.mxu0
          %v2944 = vadd.f32 %v996, %v2943
          %v2945 = vpop.f32.mrf.mxu0
          %v2946 = vadd.f32 %v997, %v2945
          %2947 = vdwg.mxu0
          %2948 = vmatprep.subr.mxu0 0.0
          %2949 = vmatpush1.msra.mxu0 0.0
          %2950 = vmatprep.subr.mxu0 0.0
          %2951 = vmatpush1.msra.mxu0 0.0
          %2952 = vmatprep.subr.mxu0 0.0
          %2953 = vmatpush1.msra.mxu0 0.0
          %2954 = vmatprep.subr.mxu0 0.0
          %2955 = vmatpush1.msra.mxu0 0.0
          %2956 = vmatprep.subr.mxu0 0.0
          %2957 = vmatpush1.msra.mxu0 0.0
          %2958 = vmatprep.subr.mxu0 0.0
          %2959 = vmatpush1.msra.mxu0 0.0
          %2960 = vmatprep.subr.mxu0 0.0
          %2961 = vmatpush1.msra.mxu0 0.0
          %2962 = vmatprep.subr.mxu0 0.0
          %2963 = vmatpush1.msra.mxu0 0.0
          %2964 = vmatprep.subr.mxu0 0.0
          %2965 = vmatpush1.msra.mxu0 0.0
          %2966 = vmatprep.subr.mxu0 0.0
          %2967 = vmatpush1.msra.mxu0 0.0
          %2968 = vmatprep.subr.mxu0 0.0
          %2969 = vmatpush1.msra.mxu0 0.0
          %2970 = vmatprep.subr.mxu0 0.0
          %2971 = vmatpush1.msra.mxu0 0.0
          %2972 = vmatprep.subr.mxu0 0.0
          %2973 = vmatpush1.msra.mxu0 0.0
          %2974 = vmatprep.subr.mxu0 0.0
          %2975 = vmatpush1.msra.mxu0 0.0
          %2976 = vmatprep.subr.mxu0 0.0
          %2977 = vmatpush1.msra.mxu0 0.0
          %2978 = vmatprep.subr.mxu0 %v2477
          %2979 = vmatpush1.msra.mxu0 %v2476
          %2980 = vmatprep.subr.mxu0 0.0
          %2981 = vmatpush2.msra.mxu0 0.0
          %2982 = vmatprep.subr.mxu0 0.0
          %2983 = vmatpush2.msra.mxu0 0.0
          %2984 = vmatprep.subr.mxu0 0.0
          %2985 = vmatpush2.msra.mxu0 0.0
          %2986 = vmatprep.subr.mxu0 0.0
          %2987 = vmatpush2.msra.mxu0 0.0
          %2988 = vmatprep.subr.mxu0 0.0
          %2989 = vmatpush2.msra.mxu0 0.0
          %2990 = vmatprep.subr.mxu0 0.0
          %2991 = vmatpush2.msra.mxu0 0.0
          %2992 = vmatprep.subr.mxu0 0.0
          %2993 = vmatpush2.msra.mxu0 0.0
          %2994 = vmatprep.subr.mxu0 0.0
          %2995 = vmatpush2.msra.mxu0 0.0
          %2996 = vmatprep.subr.mxu0 0.0
          %2997 = vmatpush2.msra.mxu0 0.0
          %2998 = vmatprep.subr.mxu0 0.0
          %2999 = vmatpush2.msra.mxu0 0.0
          %3000 = vmatprep.subr.mxu0 0.0
          %3001 = vmatpush2.msra.mxu0 0.0
          %3002 = vmatprep.subr.mxu0 0.0
          %3003 = vmatpush2.msra.mxu0 0.0
          %3004 = vmatprep.subr.mxu0 0.0
          %3005 = vmatpush2.msra.mxu0 0.0
          %3006 = vmatprep.subr.mxu0 0.0
          %3007 = vmatpush2.msra.mxu0 0.0
          %3008 = vmatprep.subr.mxu0 0.0
          %3009 = vmatpush2.msra.mxu0 0.0
          %3010 = vmatprep.subr.mxu0 0.0
          %3011 = vmatpush2.msra.mxu0 0.0
          %3012 = vmatprep.mubr.f32.mxu0 0.0
          %3013 = vmatmul.mubr.f32.gmra.mxu0 %v2481
          %v3014 = vpop.f32.mrf.mxu0
          %v3015 = vadd.f32 %v998, %v3014
          %v3016 = vpop.f32.mrf.mxu0
          %v3017 = vadd.f32 %v999, %v3016
          %3018 = vmatprep.mubr.f32.mxu0 0.0
          %3019 = vmatmul.mubr.f32.gmra.mxu0 %v2484
          %v3020 = vpop.f32.mrf.mxu0
          %v3021 = vadd.f32 %v998, %v3020
          %v3022 = vpop.f32.mrf.mxu0
          %v3023 = vadd.f32 %v999, %v3022
          %3024 = vdwg.mxu0
          %3025 = vmatprep.subr.mxu0 0.0
          %3026 = vmatpush1.msra.mxu0 0.0
          %3027 = vmatprep.subr.mxu0 0.0
          %3028 = vmatpush1.msra.mxu0 0.0
          %3029 = vmatprep.subr.mxu0 0.0
          %3030 = vmatpush1.msra.mxu0 0.0
          %3031 = vmatprep.subr.mxu0 0.0
          %3032 = vmatpush1.msra.mxu0 0.0
          %3033 = vmatprep.subr.mxu0 0.0
          %3034 = vmatpush1.msra.mxu0 0.0
          %3035 = vmatprep.subr.mxu0 0.0
          %3036 = vmatpush1.msra.mxu0 0.0
          %3037 = vmatprep.subr.mxu0 0.0
          %3038 = vmatpush1.msra.mxu0 0.0
          %3039 = vmatprep.subr.mxu0 0.0
          %3040 = vmatpush1.msra.mxu0 0.0
          %3041 = vmatprep.subr.mxu0 0.0
          %3042 = vmatpush1.msra.mxu0 0.0
          %3043 = vmatprep.subr.mxu0 0.0
          %3044 = vmatpush1.msra.mxu0 0.0
          %3045 = vmatprep.subr.mxu0 0.0
          %3046 = vmatpush1.msra.mxu0 0.0
          %3047 = vmatprep.subr.mxu0 0.0
          %3048 = vmatpush1.msra.mxu0 0.0
          %3049 = vmatprep.subr.mxu0 0.0
          %3050 = vmatpush1.msra.mxu0 0.0
          %3051 = vmatprep.subr.mxu0 0.0
          %3052 = vmatpush1.msra.mxu0 0.0
          %3053 = vmatprep.subr.mxu0 0.0
          %3054 = vmatpush1.msra.mxu0 0.0
          %3055 = vmatprep.subr.mxu0 %v2479
          %3056 = vmatpush1.msra.mxu0 %v2478
          %3057 = vmatprep.subr.mxu0 0.0
          %3058 = vmatpush2.msra.mxu0 0.0
          %3059 = vmatprep.subr.mxu0 0.0
          %3060 = vmatpush2.msra.mxu0 0.0
          %3061 = vmatprep.subr.mxu0 0.0
          %3062 = vmatpush2.msra.mxu0 0.0
          %3063 = vmatprep.subr.mxu0 0.0
          %3064 = vmatpush2.msra.mxu0 0.0
          %3065 = vmatprep.subr.mxu0 0.0
          %3066 = vmatpush2.msra.mxu0 0.0
          %3067 = vmatprep.subr.mxu0 0.0
          %3068 = vmatpush2.msra.mxu0 0.0
          %3069 = vmatprep.subr.mxu0 0.0
          %3070 = vmatpush2.msra.mxu0 0.0
          %3071 = vmatprep.subr.mxu0 0.0
          %3072 = vmatpush2.msra.mxu0 0.0
          %3073 = vmatprep.subr.mxu0 0.0
          %3074 = vmatpush2.msra.mxu0 0.0
          %3075 = vmatprep.subr.mxu0 0.0
          %3076 = vmatpush2.msra.mxu0 0.0
          %3077 = vmatprep.subr.mxu0 0.0
          %3078 = vmatpush2.msra.mxu0 0.0
          %3079 = vmatprep.subr.mxu0 0.0
          %3080 = vmatpush2.msra.mxu0 0.0
          %3081 = vmatprep.subr.mxu0 0.0
          %3082 = vmatpush2.msra.mxu0 0.0
          %3083 = vmatprep.subr.mxu0 0.0
          %3084 = vmatpush2.msra.mxu0 0.0
          %3085 = vmatprep.subr.mxu0 0.0
          %3086 = vmatpush2.msra.mxu0 0.0
          %3087 = vmatprep.subr.mxu0 0.0
          %3088 = vmatpush2.msra.mxu0 0.0
          %3089 = vmatprep.mubr.f32.mxu0 0.0
          %3090 = vmatmul.mubr.f32.gmra.mxu0 %v2481
          %v3091 = vpop.f32.mrf.mxu0
          %v3092 = vadd.f32 %v1000, %v3091
          %v3093 = vpop.f32.mrf.mxu0
          %v3094 = vadd.f32 %v1001, %v3093
          %3095 = vmatprep.mubr.f32.mxu0 0.0
          %3096 = vmatmul.mubr.f32.gmra.mxu0 %v2484
          %v3097 = vpop.f32.mrf.mxu0
          %v3098 = vadd.f32 %v1000, %v3097
          %v3099 = vpop.f32.mrf.mxu0
          %v3100 = vadd.f32 %v1001, %v3099
          %3101 = vdwg.mxu0
          %v3102 = vcombine.low %v2553, %v2630
          %v3103 = vcombine.high %v2553, %v2630
          %v3105 = vunpack.c.l.s4 1983009808
          %v3106 = vunpack.c.0.s8 %v3105
          %v3107 = vlaneseq
          %v3108 = vshrl.u32 %v3107, 7
          %v3109 = vsub.s32 %v3106, %v3108
          %v3110 = vrot.slane %v3102, %v3109
          %v3112 = vunpack.c.l.s4 1983009808
          %v3113 = vunpack.c.0.s8 %v3112
          %v3114 = vlaneseq
          %v3115 = vshrl.u32 %v3114, 7
          %v3116 = vsub.s32 %v3113, %v3115
          %v3117 = vrot.slane %v3103, %v3116
          %v3118 = vcombine.low %v2555, %v2632
          %v3119 = vcombine.high %v2555, %v2632
          %v3121 = vunpack.c.l.s4 1983009808
          %v3122 = vunpack.c.0.s8 %v3121
          %v3123 = vlaneseq
          %v3124 = vshrl.u32 %v3123, 7
          %v3125 = vsub.s32 %v3122, %v3124
          %v3126 = vrot.slane %v3118, %v3125
          %v3128 = vunpack.c.l.s4 1983009808
          %v3129 = vunpack.c.0.s8 %v3128
          %v3130 = vlaneseq
          %v3131 = vshrl.u32 %v3130, 7
          %v3132 = vsub.s32 %v3129, %v3131
          %v3133 = vrot.slane %v3119, %v3132
          %v3134 = vcombine.low %v2707, %v2784
          %v3135 = vcombine.high %v2707, %v2784
          %v3137 = vunpack.c.l.s4 1983009808
          %v3138 = vunpack.c.0.s8 %v3137
          %v3139 = vlaneseq
          %v3140 = vshrl.u32 %v3139, 7
          %v3141 = vsub.s32 %v3138, %v3140
          %v3142 = vrot.slane %v3134, %v3141
          %v3144 = vunpack.c.l.s4 1983009808
          %v3145 = vunpack.c.0.s8 %v3144
          %v3146 = vlaneseq
          %v3147 = vshrl.u32 %v3146, 7
          %v3148 = vsub.s32 %v3145, %v3147
          %v3149 = vrot.slane %v3135, %v3148
          %v3150 = vcombine.low %v2709, %v2786
          %v3151 = vcombine.high %v2709, %v2786
          %v3153 = vunpack.c.l.s4 1983009808
          %v3154 = vunpack.c.0.s8 %v3153
          %v3155 = vlaneseq
          %v3156 = vshrl.u32 %v3155, 7
          %v3157 = vsub.s32 %v3154, %v3156
          %v3158 = vrot.slane %v3150, %v3157
          %v3160 = vunpack.c.l.s4 1983009808
          %v3161 = vunpack.c.0.s8 %v3160
          %v3162 = vlaneseq
          %v3163 = vshrl.u32 %v3162, 7
          %v3164 = vsub.s32 %v3161, %v3163
          %v3165 = vrot.slane %v3151, %v3164
          %v3166 = vcombine.low %v3110, %v3126
          %v3167 = vcombine.high %v3110, %v3126
          %v3169 = vunpack.c.l.s4 1934713408
          %v3170 = vunpack.c.0.s8 %v3169
          %v3171 = vlaneseq
          %v3172 = vshrl.u32 %v3171, 7
          %v3173 = vsub.s32 %v3170, %v3172
          %v3174 = vrot.slane %v3166, %v3173
          %v3176 = vunpack.c.l.s4 1934713408
          %v3177 = vunpack.c.0.s8 %v3176
          %v3178 = vlaneseq
          %v3179 = vshrl.u32 %v3178, 7
          %v3180 = vsub.s32 %v3177, %v3179
          %v3181 = vrot.slane %v3167, %v3180
          %v3182 = vcombine.low %v3117, %v3133
          %v3183 = vcombine.high %v3117, %v3133
          %v3185 = vunpack.c.l.s4 1934713408
          %v3186 = vunpack.c.0.s8 %v3185
          %v3187 = vlaneseq
          %v3188 = vshrl.u32 %v3187, 7
          %v3189 = vsub.s32 %v3186, %v3188
          %v3190 = vrot.slane %v3182, %v3189
          %v3192 = vunpack.c.l.s4 1934713408
          %v3193 = vunpack.c.0.s8 %v3192
          %v3194 = vlaneseq
          %v3195 = vshrl.u32 %v3194, 7
          %v3196 = vsub.s32 %v3193, %v3195
          %v3197 = vrot.slane %v3183, %v3196
          %v3198 = vcombine.low %v3142, %v3158
          %v3199 = vcombine.high %v3142, %v3158
          %v3201 = vunpack.c.l.s4 1934713408
          %v3202 = vunpack.c.0.s8 %v3201
          %v3203 = vlaneseq
          %v3204 = vshrl.u32 %v3203, 7
          %v3205 = vsub.s32 %v3202, %v3204
          %v3206 = vrot.slane %v3198, %v3205
          %v3208 = vunpack.c.l.s4 1934713408
          %v3209 = vunpack.c.0.s8 %v3208
          %v3210 = vlaneseq
          %v3211 = vshrl.u32 %v3210, 7
          %v3212 = vsub.s32 %v3209, %v3211
          %v3213 = vrot.slane %v3199, %v3212
          %v3214 = vcombine.low %v3149, %v3165
          %v3215 = vcombine.high %v3149, %v3165
          %v3217 = vunpack.c.l.s4 1934713408
          %v3218 = vunpack.c.0.s8 %v3217
          %v3219 = vlaneseq
          %v3220 = vshrl.u32 %v3219, 7
          %v3221 = vsub.s32 %v3218, %v3220
          %v3222 = vrot.slane %v3214, %v3221
          %v3224 = vunpack.c.l.s4 1934713408
          %v3225 = vunpack.c.0.s8 %v3224
          %v3226 = vlaneseq
          %v3227 = vshrl.u32 %v3226, 7
          %v3228 = vsub.s32 %v3225, %v3227
          %v3229 = vrot.slane %v3215, %v3228
          %v3230 = vcombine.low %v3174, %v3206
          %v3231 = vcombine.high %v3174, %v3206
          %v3232 = vcombine.low %v3181, %v3213
          %v3233 = vcombine.high %v3181, %v3213
          %v3234 = vcombine.low %v3190, %v3222
          %v3235 = vcombine.high %v3190, %v3222
          %v3236 = vcombine.low %v3197, %v3229
          %v3237 = vcombine.high %v3197, %v3229
          %v3238 = vcombine.low %v2861, %v2938
          %v3239 = vcombine.high %v2861, %v2938
          %v3241 = vunpack.c.l.s4 1983009808
          %v3242 = vunpack.c.0.s8 %v3241
          %v3243 = vlaneseq
          %v3244 = vshrl.u32 %v3243, 7
          %v3245 = vsub.s32 %v3242, %v3244
          %v3246 = vrot.slane %v3238, %v3245
          %v3248 = vunpack.c.l.s4 1983009808
          %v3249 = vunpack.c.0.s8 %v3248
          %v3250 = vlaneseq
          %v3251 = vshrl.u32 %v3250, 7
          %v3252 = vsub.s32 %v3249, %v3251
          %v3253 = vrot.slane %v3239, %v3252
          %v3254 = vcombine.low %v2863, %v2940
          %v3255 = vcombine.high %v2863, %v2940
          %v3257 = vunpack.c.l.s4 1983009808
          %v3258 = vunpack.c.0.s8 %v3257
          %v3259 = vlaneseq
          %v3260 = vshrl.u32 %v3259, 7
          %v3261 = vsub.s32 %v3258, %v3260
          %v3262 = vrot.slane %v3254, %v3261
          %v3264 = vunpack.c.l.s4 1983009808
          %v3265 = vunpack.c.0.s8 %v3264
          %v3266 = vlaneseq
          %v3267 = vshrl.u32 %v3266, 7
          %v3268 = vsub.s32 %v3265, %v3267
          %v3269 = vrot.slane %v3255, %v3268
          %v3270 = vcombine.low %v3015, %v3092
          %v3271 = vcombine.high %v3015, %v3092
          %v3273 = vunpack.c.l.s4 1983009808
          %v3274 = vunpack.c.0.s8 %v3273
          %v3275 = vlaneseq
          %v3276 = vshrl.u32 %v3275, 7
          %v3277 = vsub.s32 %v3274, %v3276
          %v3278 = vrot.slane %v3270, %v3277
          %v3280 = vunpack.c.l.s4 1983009808
          %v3281 = vunpack.c.0.s8 %v3280
          %v3282 = vlaneseq
          %v3283 = vshrl.u32 %v3282, 7
          %v3284 = vsub.s32 %v3281, %v3283
          %v3285 = vrot.slane %v3271, %v3284
          %v3286 = vcombine.low %v3017, %v3094
          %v3287 = vcombine.high %v3017, %v3094
          %v3289 = vunpack.c.l.s4 1983009808
          %v3290 = vunpack.c.0.s8 %v3289
          %v3291 = vlaneseq
          %v3292 = vshrl.u32 %v3291, 7
          %v3293 = vsub.s32 %v3290, %v3292
          %v3294 = vrot.slane %v3286, %v3293
          %v3296 = vunpack.c.l.s4 1983009808
          %v3297 = vunpack.c.0.s8 %v3296
          %v3298 = vlaneseq
          %v3299 = vshrl.u32 %v3298, 7
          %v3300 = vsub.s32 %v3297, %v3299
          %v3301 = vrot.slane %v3287, %v3300
          %v3302 = vcombine.low %v3246, %v3262
          %v3303 = vcombine.high %v3246, %v3262
          %v3305 = vunpack.c.l.s4 1934713408
          %v3306 = vunpack.c.0.s8 %v3305
          %v3307 = vlaneseq
          %v3308 = vshrl.u32 %v3307, 7
          %v3309 = vsub.s32 %v3306, %v3308
          %v3310 = vrot.slane %v3302, %v3309
          %v3312 = vunpack.c.l.s4 1934713408
          %v3313 = vunpack.c.0.s8 %v3312
          %v3314 = vlaneseq
          %v3315 = vshrl.u32 %v3314, 7
          %v3316 = vsub.s32 %v3313, %v3315
          %v3317 = vrot.slane %v3303, %v3316
          %v3318 = vcombine.low %v3253, %v3269
          %v3319 = vcombine.high %v3253, %v3269
          %v3321 = vunpack.c.l.s4 1934713408
          %v3322 = vunpack.c.0.s8 %v3321
          %v3323 = vlaneseq
          %v3324 = vshrl.u32 %v3323, 7
          %v3325 = vsub.s32 %v3322, %v3324
          %v3326 = vrot.slane %v3318, %v3325
          %v3328 = vunpack.c.l.s4 1934713408
          %v3329 = vunpack.c.0.s8 %v3328
          %v3330 = vlaneseq
          %v3331 = vshrl.u32 %v3330, 7
          %v3332 = vsub.s32 %v3329, %v3331
          %v3333 = vrot.slane %v3319, %v3332
          %v3334 = vcombine.low %v3278, %v3294
          %v3335 = vcombine.high %v3278, %v3294
          %v3337 = vunpack.c.l.s4 1934713408
          %v3338 = vunpack.c.0.s8 %v3337
          %v3339 = vlaneseq
          %v3340 = vshrl.u32 %v3339, 7
          %v3341 = vsub.s32 %v3338, %v3340
          %v3342 = vrot.slane %v3334, %v3341
          %v3344 = vunpack.c.l.s4 1934713408
          %v3345 = vunpack.c.0.s8 %v3344
          %v3346 = vlaneseq
          %v3347 = vshrl.u32 %v3346, 7
          %v3348 = vsub.s32 %v3345, %v3347
          %v3349 = vrot.slane %v3335, %v3348
          %v3350 = vcombine.low %v3285, %v3301
          %v3351 = vcombine.high %v3285, %v3301
          %v3353 = vunpack.c.l.s4 1934713408
          %v3354 = vunpack.c.0.s8 %v3353
          %v3355 = vlaneseq
          %v3356 = vshrl.u32 %v3355, 7
          %v3357 = vsub.s32 %v3354, %v3356
          %v3358 = vrot.slane %v3350, %v3357
          %v3360 = vunpack.c.l.s4 1934713408
          %v3361 = vunpack.c.0.s8 %v3360
          %v3362 = vlaneseq
          %v3363 = vshrl.u32 %v3362, 7
          %v3364 = vsub.s32 %v3361, %v3363
          %v3365 = vrot.slane %v3351, %v3364
          %v3366 = vcombine.low %v3310, %v3342
          %v3367 = vcombine.high %v3310, %v3342
          %v3368 = vcombine.low %v3317, %v3349
          %v3369 = vcombine.high %v3317, %v3349
          %v3370 = vcombine.low %v3326, %v3358
          %v3371 = vcombine.high %v3326, %v3358
          %v3372 = vcombine.low %v3333, %v3365
          %v3373 = vcombine.high %v3333, %v3365
          %v3374 = vcombine.low %v2559, %v2636
          %v3375 = vcombine.high %v2559, %v2636
          %v3377 = vunpack.c.l.s4 1983009808
          %v3378 = vunpack.c.0.s8 %v3377
          %v3379 = vlaneseq
          %v3380 = vshrl.u32 %v3379, 7
          %v3381 = vsub.s32 %v3378, %v3380
          %v3382 = vrot.slane %v3374, %v3381
          %v3384 = vunpack.c.l.s4 1983009808
          %v3385 = vunpack.c.0.s8 %v3384
          %v3386 = vlaneseq
          %v3387 = vshrl.u32 %v3386, 7
          %v3388 = vsub.s32 %v3385, %v3387
          %v3389 = vrot.slane %v3375, %v3388
          %v3390 = vcombine.low %v2561, %v2638
          %v3391 = vcombine.high %v2561, %v2638
          %v3393 = vunpack.c.l.s4 1983009808
          %v3394 = vunpack.c.0.s8 %v3393
          %v3395 = vlaneseq
          %v3396 = vshrl.u32 %v3395, 7
          %v3397 = vsub.s32 %v3394, %v3396
          %v3398 = vrot.slane %v3390, %v3397
          %v3400 = vunpack.c.l.s4 1983009808
          %v3401 = vunpack.c.0.s8 %v3400
          %v3402 = vlaneseq
          %v3403 = vshrl.u32 %v3402, 7
          %v3404 = vsub.s32 %v3401, %v3403
          %v3405 = vrot.slane %v3391, %v3404
          %v3406 = vcombine.low %v2713, %v2790
          %v3407 = vcombine.high %v2713, %v2790
          %v3409 = vunpack.c.l.s4 1983009808
          %v3410 = vunpack.c.0.s8 %v3409
          %v3411 = vlaneseq
          %v3412 = vshrl.u32 %v3411, 7
          %v3413 = vsub.s32 %v3410, %v3412
          %v3414 = vrot.slane %v3406, %v3413
          %v3416 = vunpack.c.l.s4 1983009808
          %v3417 = vunpack.c.0.s8 %v3416
          %v3418 = vlaneseq
          %v3419 = vshrl.u32 %v3418, 7
          %v3420 = vsub.s32 %v3417, %v3419
          %v3421 = vrot.slane %v3407, %v3420
          %v3422 = vcombine.low %v2715, %v2792
          %v3423 = vcombine.high %v2715, %v2792
          %v3425 = vunpack.c.l.s4 1983009808
          %v3426 = vunpack.c.0.s8 %v3425
          %v3427 = vlaneseq
          %v3428 = vshrl.u32 %v3427, 7
          %v3429 = vsub.s32 %v3426, %v3428
          %v3430 = vrot.slane %v3422, %v3429
          %v3432 = vunpack.c.l.s4 1983009808
          %v3433 = vunpack.c.0.s8 %v3432
          %v3434 = vlaneseq
          %v3435 = vshrl.u32 %v3434, 7
          %v3436 = vsub.s32 %v3433, %v3435
          %v3437 = vrot.slane %v3423, %v3436
          %v3438 = vcombine.low %v3382, %v3398
          %v3439 = vcombine.high %v3382, %v3398
          %v3441 = vunpack.c.l.s4 1934713408
          %v3442 = vunpack.c.0.s8 %v3441
          %v3443 = vlaneseq
          %v3444 = vshrl.u32 %v3443, 7
          %v3445 = vsub.s32 %v3442, %v3444
          %v3446 = vrot.slane %v3438, %v3445
          %v3448 = vunpack.c.l.s4 1934713408
          %v3449 = vunpack.c.0.s8 %v3448
          %v3450 = vlaneseq
          %v3451 = vshrl.u32 %v3450, 7
          %v3452 = vsub.s32 %v3449, %v3451
          %v3453 = vrot.slane %v3439, %v3452
          %v3454 = vcombine.low %v3389, %v3405
          %v3455 = vcombine.high %v3389, %v3405
          %v3457 = vunpack.c.l.s4 1934713408
          %v3458 = vunpack.c.0.s8 %v3457
          %v3459 = vlaneseq
          %v3460 = vshrl.u32 %v3459, 7
          %v3461 = vsub.s32 %v3458, %v3460
          %v3462 = vrot.slane %v3454, %v3461
          %v3464 = vunpack.c.l.s4 1934713408
          %v3465 = vunpack.c.0.s8 %v3464
          %v3466 = vlaneseq
          %v3467 = vshrl.u32 %v3466, 7
          %v3468 = vsub.s32 %v3465, %v3467
          %v3469 = vrot.slane %v3455, %v3468
          %v3470 = vcombine.low %v3414, %v3430
          %v3471 = vcombine.high %v3414, %v3430
          %v3473 = vunpack.c.l.s4 1934713408
          %v3474 = vunpack.c.0.s8 %v3473
          %v3475 = vlaneseq
          %v3476 = vshrl.u32 %v3475, 7
          %v3477 = vsub.s32 %v3474, %v3476
          %v3478 = vrot.slane %v3470, %v3477
          %v3480 = vunpack.c.l.s4 1934713408
          %v3481 = vunpack.c.0.s8 %v3480
          %v3482 = vlaneseq
          %v3483 = vshrl.u32 %v3482, 7
          %v3484 = vsub.s32 %v3481, %v3483
          %v3485 = vrot.slane %v3471, %v3484
          %v3486 = vcombine.low %v3421, %v3437
          %v3487 = vcombine.high %v3421, %v3437
          %v3489 = vunpack.c.l.s4 1934713408
          %v3490 = vunpack.c.0.s8 %v3489
          %v3491 = vlaneseq
          %v3492 = vshrl.u32 %v3491, 7
          %v3493 = vsub.s32 %v3490, %v3492
          %v3494 = vrot.slane %v3486, %v3493
          %v3496 = vunpack.c.l.s4 1934713408
          %v3497 = vunpack.c.0.s8 %v3496
          %v3498 = vlaneseq
          %v3499 = vshrl.u32 %v3498, 7
          %v3500 = vsub.s32 %v3497, %v3499
          %v3501 = vrot.slane %v3487, %v3500
          %v3502 = vcombine.low %v3446, %v3478
          %v3503 = vcombine.high %v3446, %v3478
          %v3504 = vcombine.low %v3453, %v3485
          %v3505 = vcombine.high %v3453, %v3485
          %v3506 = vcombine.low %v3462, %v3494
          %v3507 = vcombine.high %v3462, %v3494
          %v3508 = vcombine.low %v3469, %v3501
          %v3509 = vcombine.high %v3469, %v3501
          %v3510 = vcombine.low %v2867, %v2944
          %v3511 = vcombine.high %v2867, %v2944
          %v3513 = vunpack.c.l.s4 1983009808
          %v3514 = vunpack.c.0.s8 %v3513
          %v3515 = vlaneseq
          %v3516 = vshrl.u32 %v3515, 7
          %v3517 = vsub.s32 %v3514, %v3516
          %v3518 = vrot.slane %v3510, %v3517
          %v3520 = vunpack.c.l.s4 1983009808
          %v3521 = vunpack.c.0.s8 %v3520
          %v3522 = vlaneseq
          %v3523 = vshrl.u32 %v3522, 7
          %v3524 = vsub.s32 %v3521, %v3523
          %v3525 = vrot.slane %v3511, %v3524
          %v3526 = vcombine.low %v2869, %v2946
          %v3527 = vcombine.high %v2869, %v2946
          %v3529 = vunpack.c.l.s4 1983009808
          %v3530 = vunpack.c.0.s8 %v3529
          %v3531 = vlaneseq
          %v3532 = vshrl.u32 %v3531, 7
          %v3533 = vsub.s32 %v3530, %v3532
          %v3534 = vrot.slane %v3526, %v3533
          %v3536 = vunpack.c.l.s4 1983009808
          %v3537 = vunpack.c.0.s8 %v3536
          %v3538 = vlaneseq
          %v3539 = vshrl.u32 %v3538, 7
          %v3540 = vsub.s32 %v3537, %v3539
          %v3541 = vrot.slane %v3527, %v3540
          %v3542 = vcombine.low %v3021, %v3098
          %v3543 = vcombine.high %v3021, %v3098
          %v3545 = vunpack.c.l.s4 1983009808
          %v3546 = vunpack.c.0.s8 %v3545
          %v3547 = vlaneseq
          %v3548 = vshrl.u32 %v3547, 7
          %v3549 = vsub.s32 %v3546, %v3548
          %v3550 = vrot.slane %v3542, %v3549
          %v3552 = vunpack.c.l.s4 1983009808
          %v3553 = vunpack.c.0.s8 %v3552
          %v3554 = vlaneseq
          %v3555 = vshrl.u32 %v3554, 7
          %v3556 = vsub.s32 %v3553, %v3555
          %v3557 = vrot.slane %v3543, %v3556
          %v3558 = vcombine.low %v3023, %v3100
          %v3559 = vcombine.high %v3023, %v3100
          %v3561 = vunpack.c.l.s4 1983009808
          %v3562 = vunpack.c.0.s8 %v3561
          %v3563 = vlaneseq
          %v3564 = vshrl.u32 %v3563, 7
          %v3565 = vsub.s32 %v3562, %v3564
          %v3566 = vrot.slane %v3558, %v3565
          %v3568 = vunpack.c.l.s4 1983009808
          %v3569 = vunpack.c.0.s8 %v3568
          %v3570 = vlaneseq
          %v3571 = vshrl.u32 %v3570, 7
          %v3572 = vsub.s32 %v3569, %v3571
          %v3573 = vrot.slane %v3559, %v3572
          %v3574 = vcombine.low %v3518, %v3534
          %v3575 = vcombine.high %v3518, %v3534
          %v3577 = vunpack.c.l.s4 1934713408
          %v3578 = vunpack.c.0.s8 %v3577
          %v3579 = vlaneseq
          %v3580 = vshrl.u32 %v3579, 7
          %v3581 = vsub.s32 %v3578, %v3580
          %v3582 = vrot.slane %v3574, %v3581
          %v3584 = vunpack.c.l.s4 1934713408
          %v3585 = vunpack.c.0.s8 %v3584
          %v3586 = vlaneseq
          %v3587 = vshrl.u32 %v3586, 7
          %v3588 = vsub.s32 %v3585, %v3587
          %v3589 = vrot.slane %v3575, %v3588
          %v3590 = vcombine.low %v3525, %v3541
          %v3591 = vcombine.high %v3525, %v3541
          %v3593 = vunpack.c.l.s4 1934713408
          %v3594 = vunpack.c.0.s8 %v3593
          %v3595 = vlaneseq
          %v3596 = vshrl.u32 %v3595, 7
          %v3597 = vsub.s32 %v3594, %v3596
          %v3598 = vrot.slane %v3590, %v3597
          %v3600 = vunpack.c.l.s4 1934713408
          %v3601 = vunpack.c.0.s8 %v3600
          %v3602 = vlaneseq
          %v3603 = vshrl.u32 %v3602, 7
          %v3604 = vsub.s32 %v3601, %v3603
          %v3605 = vrot.slane %v3591, %v3604
          %v3606 = vcombine.low %v3550, %v3566
          %v3607 = vcombine.high %v3550, %v3566
          %v3609 = vunpack.c.l.s4 1934713408
          %v3610 = vunpack.c.0.s8 %v3609
          %v3611 = vlaneseq
          %v3612 = vshrl.u32 %v3611, 7
          %v3613 = vsub.s32 %v3610, %v3612
          %v3614 = vrot.slane %v3606, %v3613
          %v3616 = vunpack.c.l.s4 1934713408
          %v3617 = vunpack.c.0.s8 %v3616
          %v3618 = vlaneseq
          %v3619 = vshrl.u32 %v3618, 7
          %v3620 = vsub.s32 %v3617, %v3619
          %v3621 = vrot.slane %v3607, %v3620
          %v3622 = vcombine.low %v3557, %v3573
          %v3623 = vcombine.high %v3557, %v3573
          %v3625 = vunpack.c.l.s4 1934713408
          %v3626 = vunpack.c.0.s8 %v3625
          %v3627 = vlaneseq
          %v3628 = vshrl.u32 %v3627, 7
          %v3629 = vsub.s32 %v3626, %v3628
          %v3630 = vrot.slane %v3622, %v3629
          %v3632 = vunpack.c.l.s4 1934713408
          %v3633 = vunpack.c.0.s8 %v3632
          %v3634 = vlaneseq
          %v3635 = vshrl.u32 %v3634, 7
          %v3636 = vsub.s32 %v3633, %v3635
          %v3637 = vrot.slane %v3623, %v3636
          %v3638 = vcombine.low %v3582, %v3614
          %v3639 = vcombine.high %v3582, %v3614
          %v3640 = vcombine.low %v3589, %v3621
          %v3641 = vcombine.high %v3589, %v3621
          %v3642 = vcombine.low %v3598, %v3630
          %v3643 = vcombine.high %v3598, %v3630
          %v3644 = vcombine.low %v3605, %v3637
          %v3645 = vcombine.high %v3605, %v3637
          %3646 = vst [vmem:[%s334] sm:$0xff] %v3230
          %3647 = vst [vmem:[%s334 + $0x8] sm:$0xff] %v3366
          %3648 = vst [vmem:[%s334 + $0x10] sm:$0xff] %v3231
          %3649 = vst [vmem:[%s334 + $0x18] sm:$0xff] %v3367
          %3650 = vst [vmem:[%s334 + $0x20] sm:$0xff] %v3232
          %3651 = vst [vmem:[%s334 + $0x28] sm:$0xff] %v3368
          %3652 = vst [vmem:[%s334 + $0x30] sm:$0xff] %v3233
          %3653 = vst [vmem:[%s334 + $0x38] sm:$0xff] %v3369
          %3654 = vst [vmem:[%s334 + $0x40] sm:$0xff] %v3234
          %3655 = vst [vmem:[%s334 + $0x48] sm:$0xff] %v3370
          %3656 = vst [vmem:[%s334 + $0x50] sm:$0xff] %v3235
          %3657 = vst [vmem:[%s334 + $0x58] sm:$0xff] %v3371
          %3658 = vst [vmem:[%s334 + $0x60] sm:$0xff] %v3236
          %3659 = vst [vmem:[%s334 + $0x68] sm:$0xff] %v3372
          %3660 = vst [vmem:[%s334 + $0x70] sm:$0xff] %v3237
          %3661 = vst [vmem:[%s334 + $0x78] sm:$0xff] %v3373
          %3662 = vst [vmem:[%s334 + $0x80] sm:$0xff] %v3502
          %3663 = vst [vmem:[%s334 + $0x88] sm:$0xff] %v3638
          %3664 = vst [vmem:[%s334 + $0x90] sm:$0xff] %v3503
          %3665 = vst [vmem:[%s334 + $0x98] sm:$0xff] %v3639
          %3666 = vst [vmem:[%s334 + $0xa0] sm:$0xff] %v3504
          %3667 = vst [vmem:[%s334 + $0xa8] sm:$0xff] %v3640
          %3668 = vst [vmem:[%s334 + $0xb0] sm:$0xff] %v3505
          %3669 = vst [vmem:[%s334 + $0xb8] sm:$0xff] %v3641
          %3670 = vst [vmem:[%s334 + $0xc0] sm:$0xff] %v3506
          %3671 = vst [vmem:[%s334 + $0xc8] sm:$0xff] %v3642
          %3672 = vst [vmem:[%s334 + $0xd0] sm:$0xff] %v3507
          %3673 = vst [vmem:[%s334 + $0xd8] sm:$0xff] %v3643
          %3674 = vst [vmem:[%s334 + $0xe0] sm:$0xff] %v3508
          %3675 = vst [vmem:[%s334 + $0xe8] sm:$0xff] %v3644
          %3676 = vst [vmem:[%s334 + $0xf0] sm:$0xff] %v3509
          %3677 = vst [vmem:[%s334 + $0xf8] sm:$0xff] %v3645
        $region64: #{tpu_custom_call.1} parent=47 // pred_fallthru
          _
        %s3678 = sand.u32 %s204, 1
        %s3679 = scalar_lea.sflag [#allocation5], %s3678
        %s3680 = sand.u32 %s204, 1
        %s3681 = smul.addr %s3680, 256
        %s3682 = scalar_lea.vmem [#allocation8], %s3681
        // Predicated region
        $region65: #{tpu_custom_call.1} parent=47 // pred_check
          %p3683 = pneg %p214
        $region66: #{tpu_custom_call.1} parent=47 // pred_check_branch
          %3685 = sbr.rel (%p3683) target = $region68
        $region67: #{tpu_custom_call.1} parent=47 // pred_region
          %s3687 = ssub.s32 4096, 4096
          %3688 = vsyncadd %s3679, %s3687
          %s3689 = smul.addr %s29, 32
          %s3690 = smul.addr %s3689, 128
          %s3691 = scalar_lea.hbm %s7, %s3690
          %s3692 = sshll.u32 %s3682, 4
          %s3693 = int_to_ptr.vmem [resolvable:$true] %s3692
          %3698 = dma.vmem_to_hbm [thread:$0]  %s3693, 4096, %s3691, %s3679, 128, 128, 8
        $region68: #{tpu_custom_call.1} parent=47 // pred_fallthru
          _
      $region48: #{tpu_custom_call.1} parent=5 // pred_fallthru
        _
      %p3699 = scmp.le.s32.totalorder 2, %s20
      // Predicated region
      $region69: #{tpu_custom_call.1} parent=5 // pred_check
        %p3700 = pneg %p3699
      $region70: #{tpu_custom_call.1} parent=5 // pred_check_branch
        %3702 = sbr.rel (%p3700) target = $region72
      $region71: #{tpu_custom_call.1} parent=5 // pred_region
        %s3703 = ssub.s32 %s20, 2
        // Predicated region
        $region73: #{tpu_custom_call.1} parent=71 // pred_check
          %p3704 = pneg %p220
        $region74: #{tpu_custom_call.1} parent=71 // pred_check_branch
          %3706 = sbr.rel (%p3704) target = $region76
        $region75: #{tpu_custom_call.1} parent=71 // pred_region
          %s3707 = sand.u32 %s205, 1
          %s3708 = scalar_lea.sflag [#allocation5], %s3707
          %s3709 = sand.u32 %s205, 1
          %s3710 = smul.addr %s3709, 256
          %s3711 = scalar_lea.vmem [#allocation8], %s3710
          %3712 = dma.done %s3708, 4096
        $region76: #{tpu_custom_call.1} parent=71 // pred_fallthru
          _
      $region72: #{tpu_custom_call.1} parent=5 // pred_fallthru
        _
    $region6: #{tpu_custom_call.1} parent=1 // loop_footer
      %s24 = sadd.s32 1, %s20
    $region7: #{tpu_custom_call.1} parent=1 // loop_footer_branch
      %19 = sbr.rel target = $region3
    $region8: #{tpu_custom_call.1} parent=1 // loop_exit
      _
    %3713 = vsyncpa [#allocation4], 1
    %s3714 = scalar_lea.sflag [#allocation4], 1
    %3715 = vsyncpa %s3714, 1
    %3716 = vsyncpa [#allocation7], 1
    %3717 = vsyncpa [#allocation5], 1
    %s3718 = scalar_lea.sflag [#allocation5], 1
    %3719 = vsyncpa %s3718, 1

</llo_original>
